<compile_context>
chip_gen: v6e
topology: v6e:2x2x1
jax: 0.10.0
libtpu: 0.0.40
codegen_flags: <defaults>
</compile_context>

<pallas_src>
import functools

import jax
import jax.numpy as jnp
from jax.experimental import pallas as pl
from jax.experimental.pallas import tpu as pltpu


# ----------------------------------------------------------------------------
# Pallas kernel 1: M-tiled fused (X @ W_scaled) + shift [+ ReLU]
# ----------------------------------------------------------------------------
def _mm_shift_kernel(x_ref, w_ref, shift_ref, o_ref, *, apply_relu):
    y = jnp.dot(x_ref[...], w_ref[...], preferred_element_type=jnp.float32)
    y = y + shift_ref[...]
    if apply_relu:
        y = jnp.maximum(y, 0.0)
    o_ref[...] = y.astype(o_ref.dtype)


def fused_matmul_shift(x, w, shift, *, apply_relu, tm=512):
    """x: (M, K) f32, w: (K, N) f32 (BN scale pre-folded), shift: (1, N).

    M is tiled so VMEM use does not scale with batch and HBM traffic overlaps
    compute; K and N stay whole per grid step (K<=1600, N<=64 here).
    """
    M, K = x.shape
    K2, N = w.shape
    assert K == K2
    tm = M if M <= tm else tm
    grid_m = pl.cdiv(M, tm)
    return pl.pallas_call(
        functools.partial(_mm_shift_kernel, apply_relu=apply_relu),
        out_shape=jax.ShapeDtypeStruct((M, N), jnp.float32),
        grid=(grid_m,),
        in_specs=[
            pl.BlockSpec((tm, K), lambda i: (i, 0)),
            pl.BlockSpec((K, N), lambda i: (0, 0)),
            pl.BlockSpec((1, N), lambda i: (0, 0)),
        ],
        out_specs=pl.BlockSpec((tm, N), lambda i: (i, 0)),
        compiler_params=pltpu.CompilerParams(
            dimension_semantics=("parallel",)),
        cost_estimate=pl.CostEstimate(
            flops=2 * M * K * N,
            transcendentals=0,
            bytes_accessed=4 * (M * K + K * N + M * N + N)),
    )(x, w, shift)


# ----------------------------------------------------------------------------
# Pallas kernel 2: fused conv3 (as matmul) + BN3 + ReLU + linear head.
# One batch element per grid step; the conv3 activation never leaves VMEM.
# ----------------------------------------------------------------------------
def _conv3_head_kernel(p3_ref, w3_ref, shift3_ref, hw_ref, hb_ref, o_ref,
                       *, n_pos, n_chan):
    # conv3 + BN + ReLU for this batch element: (P3, K3) @ (K3, OC)
    y3 = jnp.dot(p3_ref[...], w3_ref[...], preferred_element_type=jnp.float32)
    y3 = jnp.maximum(y3 + shift3_ref[...], 0.0)           # (P3, OC)
    # Head: flatten y3 in (position, channel) order; the head matrix rows are
    # pre-permuted to match, so the head is P3 small matmuls (static unroll).
    hw = hw_ref[...]                                       # (P3*OC, O)
    acc = hb_ref[...]                                      # (1, O)
    for p in range(n_pos):
        acc = acc + jnp.dot(y3[p:p + 1, :],
                            hw[p * n_chan:(p + 1) * n_chan, :],
                            preferred_element_type=jnp.float32)
    o_ref[...] = acc.astype(o_ref.dtype)


# ----------------------------------------------------------------------------
# Glue: NHWC im2col (stride-2, 5x5, VALID), patch order (KH, KW, C)
# ----------------------------------------------------------------------------
def im2col_nhwc(x, k, s):
    b, h, w, c = x.shape
    oh = (h - k) // s + 1
    ow = (w - k) // s + 1
    cols = []
    for i in range(k):
        for j in range(k):
            cols.append(x[:, i:i + s * oh:s, j:j + s * ow:s, :])  # (B,OH,OW,C)
    patches = jnp.stack(cols, axis=3)                  # (B, OH, OW, K*K, C)
    patches = patches.reshape(b * oh * ow, k * k * c)  # flat = (i*K+j)*C + c
    return patches, oh, ow


def _fold_bn(conv_w, conv_b, gamma, beta, rmean, rvar, eps):
    """Return (w2d_scaled (KKC, OC), shift (1, OC)) with BN folded in."""
    oc, c, k, _ = conv_w.shape
    scale = gamma / jnp.sqrt(rvar + eps)                        # (OC,)
    w2d = conv_w.transpose(2, 3, 1, 0).reshape(k * k * c, oc)   # (KH,KW,C)->rows
    w2d = w2d * scale[None, :]                                  # fold BN scale
    shift = ((conv_b - rmean) * scale + beta).reshape(1, oc)
    return w2d, shift


def conv_bn_relu_nhwc(x, conv_w, conv_b, gamma, beta, rmean, rvar, eps=1e-5):
    """x: (B, H, W, C) -> (B, OH, OW, OC). Conv(5, stride=2) + BN + ReLU."""
    oc, c, k, _ = conv_w.shape
    b = x.shape[0]
    patches, oh, ow = im2col_nhwc(x, k, 2)
    w2d, shift = _fold_bn(conv_w, conv_b, gamma, beta, rmean, rvar, eps)
    y = fused_matmul_shift(patches, w2d, shift, apply_relu=True)  # (B*OH*OW, OC)
    return y.reshape(b, oh, ow, oc)


def conv3_head_fused(x, c3w, c3b, g3, be3, m3, v3, head_w, head_b, eps=1e-5):
    """x: (B, H, W, 64) NHWC -> (B, outputs). Fused conv3+BN3+ReLU+Linear."""
    oc, c, k, _ = c3w.shape
    b = x.shape[0]
    patches, oh, ow = im2col_nhwc(x, k, 2)             # (B*P3, K3)
    p3 = oh * ow
    k3 = c * k * k
    patches = patches.reshape(b, p3, k3)
    w3, shift3 = _fold_bn(c3w, c3b, g3, be3, m3, v3, eps)

    n_out = head_w.shape[0]
    assert head_w.shape[1] == oc * p3
    # PyTorch flattens NCHW (c, h, w); reorder head columns to (h, w, c).
    hw = head_w.reshape(n_out, oc, oh, ow).transpose(2, 3, 1, 0)
    hw = hw.reshape(p3 * oc, n_out)
    hb = head_b.reshape(1, n_out)

    out = pl.pallas_call(
        functools.partial(_conv3_head_kernel, n_pos=p3, n_chan=oc),
        out_shape=jax.ShapeDtypeStruct((b, 1, n_out), jnp.float32),
        grid=(b,),
        in_specs=[
            pl.BlockSpec((None, p3, k3), lambda i: (i, 0, 0)),
            pl.BlockSpec((k3, oc), lambda i: (0, 0)),
            pl.BlockSpec((1, oc), lambda i: (0, 0)),
            pl.BlockSpec((p3 * oc, n_out), lambda i: (0, 0)),
            pl.BlockSpec((1, n_out), lambda i: (0, 0)),
        ],
        out_specs=pl.BlockSpec((None, 1, n_out), lambda i: (i, 0, 0)),
        compiler_params=pltpu.CompilerParams(
            dimension_semantics=("parallel",)),
        cost_estimate=pl.CostEstimate(
            flops=2 * b * (p3 * k3 * oc + p3 * oc * n_out),
            transcendentals=0,
            bytes_accessed=4 * (b * p3 * k3 + k3 * oc + p3 * oc * n_out
                                + b * n_out)),
    )(patches, w3, shift3, hw, hb)
    return out.reshape(b, n_out)


# ----------------------------------------------------------------------------
# Parameter init (deterministic, synthetic)
# ----------------------------------------------------------------------------
def init_params(key, h, w, outputs):
    def conv2d_size_out(size, kernel_size=5, stride=2):
        return (size - (kernel_size - 1) - 1) // stride + 1

    convw = conv2d_size_out(conv2d_size_out(conv2d_size_out(w)))
    convh = conv2d_size_out(conv2d_size_out(conv2d_size_out(h)))
    linear_input_size = convw * convh * 64

    keys = jax.random.split(key, 16)
    p = {}

    def conv_block(i, in_c, out_c, prefix):
        p[f"{prefix}_w"] = 0.05 * jax.random.normal(keys[i], (out_c, in_c, 5, 5), jnp.float32)
        p[f"{prefix}_b"] = 0.05 * jax.random.normal(keys[i + 1], (out_c,), jnp.float32)
        p[f"{prefix}_gamma"] = 1.0 + 0.1 * jax.random.normal(keys[i + 2], (out_c,), jnp.float32)
        p[f"{prefix}_beta"] = 0.1 * jax.random.normal(keys[i + 3], (out_c,), jnp.float32)
        p[f"{prefix}_mean"] = 0.05 * jax.random.normal(keys[i + 4], (out_c,), jnp.float32)
        p[f"{prefix}_var"] = 0.5 + jnp.abs(0.5 * jax.random.normal(keys[i], (out_c,), jnp.float32))

    conv_block(0, 4, 32, "c1")
    conv_block(4, 32, 64, "c2")
    conv_block(8, 64, 64, "c3")

    p["head_w"] = 0.05 * jax.random.normal(keys[12], (outputs, linear_input_size), jnp.float32)
    p["head_b"] = 0.05 * jax.random.normal(keys[13], (outputs,), jnp.float32)
    return p


# ----------------------------------------------------------------------------
# Full forward pass (PyTorch-equivalent semantics, inference-mode BN)
# ----------------------------------------------------------------------------
def dqn_forward(params, x):
    # x: (B, C, H, W) NCHW like PyTorch; go channels-last once.
    x = jnp.transpose(x, (0, 2, 3, 1))
    x = conv_bn_relu_nhwc(x, params["c1_w"], params["c1_b"], params["c1_gamma"],
                          params["c1_beta"], params["c1_mean"], params["c1_var"])
    x = conv_bn_relu_nhwc(x, params["c2_w"], params["c2_b"], params["c2_gamma"],
                          params["c2_beta"], params["c2_mean"], params["c2_var"])
    return conv3_head_fused(x, params["c3_w"], params["c3_b"], params["c3_gamma"],
                            params["c3_beta"], params["c3_mean"], params["c3_var"],
                            params["head_w"], params["head_b"])


if __name__ == "__main__":
    H = W = 40          # conv sizes 18 -> 7 -> 2, linear_input_size = 2*2*64 = 256
    OUTPUTS = 4
    BATCH = 2

    key = jax.random.PRNGKey(0)
    pkey, xkey = jax.random.split(key)
    params = init_params(pkey, H, W, OUTPUTS)
    x = jax.random.normal(xkey, (BATCH, 4, H, W), jnp.float32)

    out = jax.jit(dqn_forward)(params, x)
    out = jax.block_until_ready(out)
    assert out.shape == (BATCH, OUTPUTS), out.shape
    assert jnp.all(jnp.isfinite(out))
    print("KERNEL_OK")
</pallas_src>

<mosaic_0001>
module attributes {stable_mosaic.version = 11 : i64} {
  func.func @_mm_shift_kernel(%arg0: i32, %arg1: memref<512x100xf32, #tpu.memory_space<vmem>>, %arg2: memref<100x32xf32, #tpu.memory_space<vmem>>, %arg3: memref<1x32xf32, #tpu.memory_space<vmem>>, %arg4: memref<512x32xf32, #tpu.memory_space<vmem>>) attributes {dimension_semantics = [#tpu.dimension_semantics<parallel>], iteration_bounds = array<i64: 2>, scalar_prefetch = 0 : i64, scratch_operands = 0 : i64, tpu.core_type = #tpu.core_type<tc>, window_params = [{transform_indices = @transform_0, window_bounds = array<i64: 512, 100>}, {pipeline_mode = #tpu.pipeline_mode<synchronous>, transform_indices = @transform_1, window_bounds = array<i64: 100, 32>}, {pipeline_mode = #tpu.pipeline_mode<synchronous>, transform_indices = @transform_2, window_bounds = array<i64: 1, 32>}, {transform_indices = @transform_3, window_bounds = array<i64: 512, 32>}]} {
    %c0 = arith.constant 0 : index
    %c0_0 = arith.constant 0 : index
    %0 = vector.load %arg1[%c0, %c0_0] : memref<512x100xf32, #tpu.memory_space<vmem>>, vector<512x100xf32>
    %c0_1 = arith.constant 0 : index
    %c0_2 = arith.constant 0 : index
    %1 = vector.load %arg2[%c0_1, %c0_2] : memref<100x32xf32, #tpu.memory_space<vmem>>, vector<100x32xf32>
    %cst = arith.constant dense<0.000000e+00> : vector<512x32xf32>
    %2 = tpu.matmul %0, %1, %cst {dimension_numbers = #tpu.dot_dimension_numbers<[1], [0], [0], [1], [0, 0, 1, 1], [], []>} : vector<512x100xf32>, vector<100x32xf32>, vector<512x32xf32> -> vector<512x32xf32>
    %c0_3 = arith.constant 0 : index
    %c0_4 = arith.constant 0 : index
    %3 = vector.load %arg3[%c0_3, %c0_4] : memref<1x32xf32, #tpu.memory_space<vmem>>, vector<1x32xf32>
    %4 = vector.broadcast %3 : vector<1x32xf32> to vector<512x32xf32>
    %5 = arith.addf %2, %4 : vector<512x32xf32>
    %cst_5 = arith.constant 0.000000e+00 : f32
    %6 = vector.broadcast %cst_5 : f32 to vector<512x32xf32>
    %7 = arith.maximumf %5, %6 : vector<512x32xf32>
    %c0_6 = arith.constant 0 : index
    %c0_7 = arith.constant 0 : index
    %8 = vector.load %arg4[%c0_6, %c0_7] : memref<512x32xf32, #tpu.memory_space<vmem>>, vector<512x32xf32>
    tpu.vector_store %arg4[%c0_6, %c0_7], %7 {strides = array<i32>} : memref<512x32xf32, #tpu.memory_space<vmem>>, vector<512x32xf32>,
    return
  }
  func.func @transform_0(%arg0: i32) -> (i32, i32) {
    %c0_i32 = arith.constant 0 : i32
    %c0_i32_0 = arith.constant 0 : i32
    return %arg0, %c0_i32 : i32, i32
  }
  func.func @transform_1(%arg0: i32) -> (i32, i32) {
    %c0_i32 = arith.constant 0 : i32
    %c0_i32_0 = arith.constant 0 : i32
    %c0_i32_1 = arith.constant 0 : i32
    return %c0_i32, %c0_i32_0 : i32, i32
  }
  func.func @transform_2(%arg0: i32) -> (i32, i32) {
    %c0_i32 = arith.constant 0 : i32
    %c0_i32_0 = arith.constant 0 : i32
    %c0_i32_1 = arith.constant 0 : i32
    return %c0_i32, %c0_i32_0 : i32, i32
  }
  func.func @transform_3(%arg0: i32) -> (i32, i32) {
    %c0_i32 = arith.constant 0 : i32
    %c0_i32_0 = arith.constant 0 : i32
    return %arg0, %c0_i32 : i32, i32
  }
}

module attributes {stable_mosaic.version = 11 : i64} {
  func.func @_mm_shift_kernel(%arg0: i32, %arg1: memref<98x800xf32, #tpu.memory_space<vmem>>, %arg2: memref<800x64xf32, #tpu.memory_space<vmem>>, %arg3: memref<1x64xf32, #tpu.memory_space<vmem>>, %arg4: memref<98x64xf32, #tpu.memory_space<vmem>>) attributes {dimension_semantics = [#tpu.dimension_semantics<parallel>], iteration_bounds = array<i64: 1>, scalar_prefetch = 0 : i64, scratch_operands = 0 : i64, tpu.core_type = #tpu.core_type<tc>, window_params = [{transform_indices = @transform_0, window_bounds = array<i64: 98, 800>}, {pipeline_mode = #tpu.pipeline_mode<synchronous>, transform_indices = @transform_1, window_bounds = array<i64: 800, 64>}, {pipeline_mode = #tpu.pipeline_mode<synchronous>, transform_indices = @transform_2, window_bounds = array<i64: 1, 64>}, {transform_indices = @transform_3, window_bounds = array<i64: 98, 64>}]} {
    %c0 = arith.constant 0 : index
    %c0_0 = arith.constant 0 : index
    %0 = vector.load %arg1[%c0, %c0_0] : memref<98x800xf32, #tpu.memory_space<vmem>>, vector<98x800xf32>
    %c0_1 = arith.constant 0 : index
    %c0_2 = arith.constant 0 : index
    %1 = vector.load %arg2[%c0_1, %c0_2] : memref<800x64xf32, #tpu.memory_space<vmem>>, vector<800x64xf32>
    %cst = arith.constant dense<0.000000e+00> : vector<98x64xf32>
    %2 = tpu.matmul %0, %1, %cst {dimension_numbers = #tpu.dot_dimension_numbers<[1], [0], [0], [1], [0, 0, 1, 1], [], []>} : vector<98x800xf32>, vector<800x64xf32>, vector<98x64xf32> -> vector<98x64xf32>
    %c0_3 = arith.constant 0 : index
    %c0_4 = arith.constant 0 : index
    %3 = vector.load %arg3[%c0_3, %c0_4] : memref<1x64xf32, #tpu.memory_space<vmem>>, vector<1x64xf32>
    %4 = vector.broadcast %3 : vector<1x64xf32> to vector<98x64xf32>
    %5 = arith.addf %2, %4 : vector<98x64xf32>
    %cst_5 = arith.constant 0.000000e+00 : f32
    %6 = vector.broadcast %cst_5 : f32 to vector<98x64xf32>
    %7 = arith.maximumf %5, %6 : vector<98x64xf32>
    %c0_6 = arith.constant 0 : index
    %c0_7 = arith.constant 0 : index
    %8 = vector.load %arg4[%c0_6, %c0_7] : memref<98x64xf32, #tpu.memory_space<vmem>>, vector<98x64xf32>
    tpu.vector_store %arg4[%c0_6, %c0_7], %7 {strides = array<i32>} : memref<98x64xf32, #tpu.memory_space<vmem>>, vector<98x64xf32>,
    return
  }
  func.func @transform_0(%arg0: i32) -> (i32, i32) {
    %c0_i32 = arith.constant 0 : i32
    %c0_i32_0 = arith.constant 0 : i32
    return %arg0, %c0_i32 : i32, i32
  }
  func.func @transform_1(%arg0: i32) -> (i32, i32) {
    %c0_i32 = arith.constant 0 : i32
    %c0_i32_0 = arith.constant 0 : i32
    %c0_i32_1 = arith.constant 0 : i32
    return %c0_i32, %c0_i32_0 : i32, i32
  }
  func.func @transform_2(%arg0: i32) -> (i32, i32) {
    %c0_i32 = arith.constant 0 : i32
    %c0_i32_0 = arith.constant 0 : i32
    %c0_i32_1 = arith.constant 0 : i32
    return %c0_i32, %c0_i32_0 : i32, i32
  }
  func.func @transform_3(%arg0: i32) -> (i32, i32) {
    %c0_i32 = arith.constant 0 : i32
    %c0_i32_0 = arith.constant 0 : i32
    return %arg0, %c0_i32 : i32, i32
  }
}

module attributes {stable_mosaic.version = 11 : i64} {
  func.func @_conv3_head_kernel(%arg0: i32, %arg1: memref<1x4x1600xf32, #tpu.memory_space<vmem>>, %arg2: memref<1600x64xf32, #tpu.memory_space<vmem>>, %arg3: memref<1x64xf32, #tpu.memory_space<vmem>>, %arg4: memref<256x4xf32, #tpu.memory_space<vmem>>, %arg5: memref<1x4xf32, #tpu.memory_space<vmem>>, %arg6: memref<1x1x4xf32, #tpu.memory_space<vmem>>) attributes {dimension_semantics = [#tpu.dimension_semantics<parallel>], iteration_bounds = array<i64: 2>, scalar_prefetch = 0 : i64, scratch_operands = 0 : i64, tpu.core_type = #tpu.core_type<tc>, window_params = [{transform_indices = @transform_0, window_bounds = array<i64: 1, 4, 1600>}, {pipeline_mode = #tpu.pipeline_mode<synchronous>, transform_indices = @transform_1, window_bounds = array<i64: 1600, 64>}, {pipeline_mode = #tpu.pipeline_mode<synchronous>, transform_indices = @transform_2, window_bounds = array<i64: 1, 64>}, {pipeline_mode = #tpu.pipeline_mode<synchronous>, transform_indices = @transform_3, window_bounds = array<i64: 256, 4>}, {pipeline_mode = #tpu.pipeline_mode<synchronous>, transform_indices = @transform_4, window_bounds = array<i64: 1, 4>}, {transform_indices = @transform_5, window_bounds = array<i64: 1, 1, 4>}]} {
    %c0 = arith.constant 0 : index
    %c0_0 = arith.constant 0 : index
    %c0_1 = arith.constant 0 : index
    %0 = vector.load %arg1[%c0, %c0_0, %c0_1] : memref<1x4x1600xf32, #tpu.memory_space<vmem>>, vector<1x4x1600xf32>
    %1 = vector.shape_cast %0 : vector<1x4x1600xf32> to vector<4x1600xf32>
    %c0_2 = arith.constant 0 : index
    %c0_3 = arith.constant 0 : index
    %2 = vector.load %arg2[%c0_2, %c0_3] : memref<1600x64xf32, #tpu.memory_space<vmem>>, vector<1600x64xf32>
    %cst = arith.constant dense<0.000000e+00> : vector<4x64xf32>
    %3 = tpu.matmul %1, %2, %cst {dimension_numbers = #tpu.dot_dimension_numbers<[1], [0], [0], [1], [0, 0, 1, 1], [], []>} : vector<4x1600xf32>, vector<1600x64xf32>, vector<4x64xf32> -> vector<4x64xf32>
    %c0_4 = arith.constant 0 : index
    %c0_5 = arith.constant 0 : index
    %4 = vector.load %arg3[%c0_4, %c0_5] : memref<1x64xf32, #tpu.memory_space<vmem>>, vector<1x64xf32>
    %5 = vector.broadcast %4 : vector<1x64xf32> to vector<4x64xf32>
    %6 = arith.addf %3, %5 : vector<4x64xf32>
    %cst_6 = arith.constant 0.000000e+00 : f32
    %7 = vector.broadcast %cst_6 : f32 to vector<4x64xf32>
    %8 = arith.maximumf %6, %7 : vector<4x64xf32>
    %c0_7 = arith.constant 0 : index
    %c0_8 = arith.constant 0 : index
    %9 = vector.load %arg4[%c0_7, %c0_8] : memref<256x4xf32, #tpu.memory_space<vmem>>, vector<256x4xf32>
    %c0_9 = arith.constant 0 : index
    %c0_10 = arith.constant 0 : index
    %10 = vector.load %arg5[%c0_9, %c0_10] : memref<1x4xf32, #tpu.memory_space<vmem>>, vector<1x4xf32>
    %11 = vector.extract_strided_slice %8 {offsets = [0, 0], sizes = [1, 64], strides = [1, 1]} : vector<4x64xf32> to vector<1x64xf32>
    %12 = vector.extract_strided_slice %9 {offsets = [0, 0], sizes = [64, 4], strides = [1, 1]} : vector<256x4xf32> to vector<64x4xf32>
    %cst_11 = arith.constant dense<0.000000e+00> : vector<1x4xf32>
    %13 = tpu.matmul %11, %12, %cst_11 {dimension_numbers = #tpu.dot_dimension_numbers<[1], [0], [0], [1], [0, 0, 1, 1], [], []>} : vector<1x64xf32>, vector<64x4xf32>, vector<1x4xf32> -> vector<1x4xf32>
    %14 = arith.addf %10, %13 : vector<1x4xf32>
    %15 = vector.extract_strided_slice %8 {offsets = [1, 0], sizes = [1, 64], strides = [1, 1]} : vector<4x64xf32> to vector<1x64xf32>
    %16 = vector.extract_strided_slice %9 {offsets = [64, 0], sizes = [64, 4], strides = [1, 1]} : vector<256x4xf32> to vector<64x4xf32>
    %cst_12 = arith.constant dense<0.000000e+00> : vector<1x4xf32>
    %17 = tpu.matmul %15, %16, %cst_12 {dimension_numbers = #tpu.dot_dimension_numbers<[1], [0], [0], [1], [0, 0, 1, 1], [], []>} : vector<1x64xf32>, vector<64x4xf32>, vector<1x4xf32> -> vector<1x4xf32>
    %18 = arith.addf %14, %17 : vector<1x4xf32>
    %19 = vector.extract_strided_slice %8 {offsets = [2, 0], sizes = [1, 64], strides = [1, 1]} : vector<4x64xf32> to vector<1x64xf32>
    %20 = vector.extract_strided_slice %9 {offsets = [128, 0], sizes = [64, 4], strides = [1, 1]} : vector<256x4xf32> to vector<64x4xf32>
    %cst_13 = arith.constant dense<0.000000e+00> : vector<1x4xf32>
    %21 = tpu.matmul %19, %20, %cst_13 {dimension_numbers = #tpu.dot_dimension_numbers<[1], [0], [0], [1], [0, 0, 1, 1], [], []>} : vector<1x64xf32>, vector<64x4xf32>, vector<1x4xf32> -> vector<1x4xf32>
    %22 = arith.addf %18, %21 : vector<1x4xf32>
    %23 = vector.extract_strided_slice %8 {offsets = [3, 0], sizes = [1, 64], strides = [1, 1]} : vector<4x64xf32> to vector<1x64xf32>
    %24 = vector.extract_strided_slice %9 {offsets = [192, 0], sizes = [64, 4], strides = [1, 1]} : vector<256x4xf32> to vector<64x4xf32>
    %cst_14 = arith.constant dense<0.000000e+00> : vector<1x4xf32>
    %25 = tpu.matmul %23, %24, %cst_14 {dimension_numbers = #tpu.dot_dimension_numbers<[1], [0], [0], [1], [0, 0, 1, 1], [], []>} : vector<1x64xf32>, vector<64x4xf32>, vector<1x4xf32> -> vector<1x4xf32>
    %26 = arith.addf %22, %25 : vector<1x4xf32>
    %c0_15 = arith.constant 0 : index
    %c0_16 = arith.constant 0 : index
    %c0_17 = arith.constant 0 : index
    %27 = vector.load %arg6[%c0_15, %c0_16, %c0_17] : memref<1x1x4xf32, #tpu.memory_space<vmem>>, vector<1x1x4xf32>
    %28 = vector.shape_cast %27 : vector<1x1x4xf32> to vector<1x4xf32>
    %29 = vector.shape_cast %26 : vector<1x4xf32> to vector<1x1x4xf32>
    tpu.vector_store %arg6[%c0_15, %c0_16, %c0_17], %29 {strides = array<i32>} : memref<1x1x4xf32, #tpu.memory_space<vmem>>, vector<1x1x4xf32>,
    return
  }
  func.func @transform_0(%arg0: i32) -> (i32, i32, i32) {
    %c0_i32 = arith.constant 0 : i32
    %c0_i32_0 = arith.constant 0 : i32
    %c0_i32_1 = arith.constant 0 : i32
    return %arg0, %c0_i32, %c0_i32_0 : i32, i32, i32
  }
  func.func @transform_1(%arg0: i32) -> (i32, i32) {
    %c0_i32 = arith.constant 0 : i32
    %c0_i32_0 = arith.constant 0 : i32
    %c0_i32_1 = arith.constant 0 : i32
    return %c0_i32, %c0_i32_0 : i32, i32
  }
  func.func @transform_2(%arg0: i32) -> (i32, i32) {
    %c0_i32 = arith.constant 0 : i32
    %c0_i32_0 = arith.constant 0 : i32
    %c0_i32_1 = arith.constant 0 : i32
    return %c0_i32, %c0_i32_0 : i32, i32
  }
  func.func @transform_3(%arg0: i32) -> (i32, i32) {
    %c0_i32 = arith.constant 0 : i32
    %c0_i32_0 = arith.constant 0 : i32
    %c0_i32_1 = arith.constant 0 : i32
    return %c0_i32, %c0_i32_0 : i32, i32
  }
  func.func @transform_4(%arg0: i32) -> (i32, i32) {
    %c0_i32 = arith.constant 0 : i32
    %c0_i32_0 = arith.constant 0 : i32
    %c0_i32_1 = arith.constant 0 : i32
    return %c0_i32, %c0_i32_0 : i32, i32
  }
  func.func @transform_5(%arg0: i32) -> (i32, i32, i32) {
    %c0_i32 = arith.constant 0 : i32
    %c0_i32_0 = arith.constant 0 : i32
    %c0_i32_1 = arith.constant 0 : i32
    return %arg0, %c0_i32, %c0_i32_0 : i32, i32, i32
  }
}

</mosaic_0001>

<llo_original>
// kernel: dqn_forward.3
$region0: #{dqn_forward.3}
  #allocation0 [shape = 'u32[]', space=smem, size = 0x4, offset = 0x4, fixed_abs, tag = 'smem constant byte address 0x4 - core index']
  #allocation1 [shape = 'u32[144,128]{1,0:T(1,128)}', space=vmem, size = 0x12000, scoped, tag = 'internal scratch']
  %s0 = inlined_call_operand.vmem [shape: f32[648,100], index: 0, kind: input, shape index: {}]
  %s1 = inlined_call_operand.vmem [shape: f32[100,32], index: 1, kind: input, shape index: {}]
  %s2 = inlined_call_operand.vmem [shape: f32[1,32], index: 2, kind: input, shape index: {}]
  %s3 = inlined_call_operand.vmem [shape: f32[648,32], index: 3, kind: output, shape index: {}]
  %s4 = sld [smem:[#allocation0]]
  $region93: #{dqn_forward.3} parent=0
    _
  %s6 = ssub.s32 1, %s4
  %s7 = scalar_select 0, %s6, %s4
  $region1: #{dqn_forward.3} parent=0
    #allocation2 [shape = 'u8[524288]{0}', space=vmem, size = 0x80000, scoped, tag = 'output window, operand 0']
    loop: start=0, step=1, limit=4
    $region2: #{dqn_forward.3} parent=1 // loop_pre_header
      _
    $region3: #{dqn_forward.3} parent=1 // loop_header
      %s9 = sphi 0, %s13
      %p10 = scmp.ge.s32.totalorder %s9, 4
      %s19 = sphi 0, %s21
      %s22 = sphi 0, %s19
      %s23 = sphi 0, %s22
      %s39 = sphi 0, %s23
      %s43 = sphi 0, %s43
      %s45 = sphi 0, %s43
      %s46 = sphi 0, %s45
      %s60 = sphi 0, %s46
      %s64 = sphi 0, %s64
      %s66 = sphi 0, %s64
      %s67 = sphi 0, %s66
      %s81 = sphi 0, %s67
      %s87 = sphi 0, %s89
      %s90 = sphi 0, %s87
      %s91 = sphi 0, %s90
      %s107 = sphi 0, %s91
    $region4: #{dqn_forward.3} parent=1 // loop_header_branch
      %12 = sbr.rel (%p10) target = $region8
    $region5: #{dqn_forward.3} parent=1 // loop_body
      %s14 = ssub.s32 %s9, 1
      %s15 = ssub.s32 %s9, 2
      %s16 = sadd.s32 %s9, 1
      %s17 = ssub.s32 %s9, %s16
      %p18 = scmp.eq.s32.totalorder %s17, 0
      %s20 = sadd.s32 %s19, 1
      %s21 = scalar_select %p18, %s19, %s20
      %p24 = pneg %p18
      %p25 = scmp.eq.s32.totalorder %s9, 1
      %p26 = por %p24, %p25
      %p27 = scmp.ne.s32.totalorder %s19, %s22
      %p28 = scmp.eq.s32.totalorder %s9, 0
      %p29 = por %p27, %p28
      %p30 = scmp.ne.s32.totalorder %s19, %s22
      %p31 = scmp.eq.s32.totalorder %s14, 1
      %p32 = por %p30, %p31
      %p33 = scmp.ne.s32.totalorder %s22, %s23
      %p34 = scmp.eq.s32.totalorder %s14, 0
      %p35 = por %p33, %p34
      %p36 = scmp.ne.s32.totalorder %s22, %s23
      %p37 = scmp.eq.s32.totalorder %s15, 1
      %p38 = por %p36, %p37
      %p40 = scmp.ne.s32.totalorder %s23, %s39
      %p41 = scmp.eq.s32.totalorder %s15, 0
      %p42 = por %p40, %p41
      %s44 = sadd.s32 %s43, 1
      %p47 = scmp.eq.s32.totalorder %s9, 1
      %p48 = scmp.ne.s32.totalorder %s43, %s45
      %p49 = scmp.eq.s32.totalorder %s9, 0
      %p50 = por %p48, %p49
      %p51 = scmp.ne.s32.totalorder %s43, %s45
      %p52 = scmp.eq.s32.totalorder %s14, 1
      %p53 = por %p51, %p52
      %p54 = scmp.ne.s32.totalorder %s45, %s46
      %p55 = scmp.eq.s32.totalorder %s14, 0
      %p56 = por %p54, %p55
      %p57 = scmp.ne.s32.totalorder %s45, %s46
      %p58 = scmp.eq.s32.totalorder %s15, 1
      %p59 = por %p57, %p58
      %p61 = scmp.ne.s32.totalorder %s46, %s60
      %p62 = scmp.eq.s32.totalorder %s15, 0
      %p63 = por %p61, %p62
      %s65 = sadd.s32 %s64, 1
      %p68 = scmp.eq.s32.totalorder %s9, 1
      %p69 = scmp.ne.s32.totalorder %s64, %s66
      %p70 = scmp.eq.s32.totalorder %s9, 0
      %p71 = por %p69, %p70
      %p72 = scmp.ne.s32.totalorder %s64, %s66
      %p73 = scmp.eq.s32.totalorder %s14, 1
      %p74 = por %p72, %p73
      %p75 = scmp.ne.s32.totalorder %s66, %s67
      %p76 = scmp.eq.s32.totalorder %s14, 0
      %p77 = por %p75, %p76
      %p78 = scmp.ne.s32.totalorder %s66, %s67
      %p79 = scmp.eq.s32.totalorder %s15, 1
      %p80 = por %p78, %p79
      %p82 = scmp.ne.s32.totalorder %s67, %s81
      %p83 = scmp.eq.s32.totalorder %s15, 0
      %p84 = por %p82, %p83
      %s85 = ssub.s32 %s9, %s16
      %p86 = scmp.eq.s32.totalorder %s85, 0
      %s88 = sadd.s32 %s87, 1
      %s89 = scalar_select %p86, %s87, %s88
      %p92 = pneg %p86
      %p93 = scmp.eq.s32.totalorder %s9, 1
      %p94 = por %p92, %p93
      %p95 = scmp.ne.s32.totalorder %s87, %s90
      %p96 = scmp.eq.s32.totalorder %s9, 0
      %p97 = por %p95, %p96
      %p98 = scmp.ne.s32.totalorder %s87, %s90
      %p99 = scmp.eq.s32.totalorder %s14, 1
      %p100 = por %p98, %p99
      %p101 = scmp.ne.s32.totalorder %s90, %s91
      %p102 = scmp.eq.s32.totalorder %s14, 0
      %p103 = por %p101, %p102
      %p104 = scmp.ne.s32.totalorder %s90, %s91
      %p105 = scmp.eq.s32.totalorder %s15, 1
      %p106 = por %p104, %p105
      %p108 = scmp.ne.s32.totalorder %s91, %s107
      %p109 = scmp.eq.s32.totalorder %s15, 0
      %p110 = por %p108, %p109
      %p111 = scmp.le.s32.totalorder 1, %s9
      %p112 = scmp.lt.s32.totalorder %s9, 3
      %p113 = pnand %p111, %p112
      %p114 = pneg %p113
      // Predicated region
      $region9: #{dqn_forward.3} parent=5 // pred_check
        _
      $region10: #{dqn_forward.3} parent=5 // pred_check_branch
        %116 = sbr.rel (%p113) target = $region12
      $region11: #{dqn_forward.3} parent=5 // pred_region
        %s117 = ssub.s32 %s9, 1
        // Predicated region
        $region13: #{dqn_forward.3} parent=11 // pred_check
          %p118 = pneg %p56
        $region14: #{dqn_forward.3} parent=11 // pred_check_branch
          %120 = sbr.rel (%p118) target = $region16
        $region15: #{dqn_forward.3} parent=11 // pred_region
          _
        $region16: #{dqn_forward.3} parent=11 // pred_fallthru
          _
        // Predicated region
        $region17: #{dqn_forward.3} parent=11 // pred_check
          %p121 = pneg %p77
        $region18: #{dqn_forward.3} parent=11 // pred_check_branch
          %123 = sbr.rel (%p121) target = $region20
        $region19: #{dqn_forward.3} parent=11 // pred_region
          _
        $region20: #{dqn_forward.3} parent=11 // pred_fallthru
          _
      $region12: #{dqn_forward.3} parent=5 // pred_fallthru
        _
      %p124 = scmp.lt.s32.totalorder %s9, 2
      // Predicated region
      $region21: #{dqn_forward.3} parent=5 // pred_check
        %p125 = pneg %p124
      $region22: #{dqn_forward.3} parent=5 // pred_check_branch
        %127 = sbr.rel (%p125) target = $region24
      $region23: #{dqn_forward.3} parent=5 // pred_region
        // Predicated region
        $region25: #{dqn_forward.3} parent=23 // pred_check
          %p128 = pneg %p29
        $region26: #{dqn_forward.3} parent=23 // pred_check_branch
          %130 = sbr.rel (%p128) target = $region28
        $region27: #{dqn_forward.3} parent=23 // pred_region
          %s131 = smul.u32 64, %s9
          %s132 = ssub.s32 81, %s131
          %p133 = scmp.lt.s32.totalorder %s132, 64
          %s134 = scalar_select %p133, %s132, 64
          %s135 = smul.u32 128, %s134
          %p136 = scmp.lt.s32.totalorder %s131, 80
          %s137 = scalar_select %p136, %s131, 80
          %s138 = smul.addr %s137, 8
          %s139 = scalar_lea.vmem %s0, %s138
          %s140 = smul.u32 64, %s9
          %s141 = ssub.s32 81, %s140
          %p142 = scmp.lt.s32.totalorder %s141, 64
          %s143 = scalar_select %p142, %s141, 64
          %s144 = smul.u32 128, %s143
        $region28: #{dqn_forward.3} parent=23 // pred_fallthru
          _
      $region24: #{dqn_forward.3} parent=5 // pred_fallthru
        _
      %p145 = scmp.le.s32.totalorder 1, %s9
      %p146 = scmp.lt.s32.totalorder %s9, 3
      %p147 = pnand %p145, %p146
      %p148 = pneg %p147
      // Predicated region
      $region29: #{dqn_forward.3} parent=5 // pred_check
        _
      $region30: #{dqn_forward.3} parent=5 // pred_check_branch
        %150 = sbr.rel (%p147) target = $region32
      $region31: #{dqn_forward.3} parent=5 // pred_region
        %s151 = ssub.s32 %s9, 1
        %s152 = smul.u32 64, %s14
        %s153 = ssub.s32 81, %s152
        %p154 = scmp.lt.s32.totalorder %s153, 64
        %s155 = scalar_select %p154, %s153, 64
        %s156 = smul.u32 128, %s155
        %p157 = scmp.lt.s32.totalorder %s152, 80
        %s158 = scalar_select %p157, %s152, 80
        %s159 = smul.addr %s158, 8
        %s160 = scalar_lea.vmem %s0, %s159
        %p161 = pneg %p35
        %p162 = pneg %p32
        %p163 = pneg %p56
        %p164 = pneg %p53
        %p165 = pneg %p77
        %p166 = pneg %p74
        %p167 = pneg %p103
        %p168 = pneg %p100
        %s169 = sand.u32 %s90, 1
        %s170 = sand.u32 %s90, 1
        %s171 = smul.addr %s170, 512
        %s172 = scalar_lea.vmem [#allocation2], %s171
        %s173 = smul.u32 64, %s14
        %s174 = ssub.s32 81, %s173
        %p175 = scmp.lt.s32.totalorder %s174, 64
        %s176 = scalar_select %p175, %s174, 64
        %s177 = smul.u32 128, %s176
        %p178 = scmp.lt.s32.totalorder %s173, 80
        %s179 = scalar_select %p178, %s173, 80
        %s180 = smul.addr %s179, 8
        %s181 = scalar_lea.vmem %s0, %s180
        %s182 = smul.u32 64, %s14
        %s183 = ssub.s32 81, %s182
        %p184 = scmp.lt.s32.totalorder %s183, 64
        %s185 = scalar_select %p184, %s183, 64
        %s186 = smul.u32 128, %s185
        %s187 = smul.u32 64, %s14
        %s188 = ssub.s32 81, %s187
        %p189 = scmp.lt.s32.totalorder %s188, 64
        %s190 = scalar_select %p189, %s188, 64
        %s191 = smul.u32 128, %s190
        %v192 = vld [vmem:[%s181] sm:$0xff]
        %v193 = vld [vmem:[%s181 + $0x8] sm:$0xff]
        %v194 = vld [vmem:[%s181 + $0x10] sm:$0xff]
        %v195 = vld [vmem:[%s181 + $0x18] sm:$0xff]
        %v196 = vld [vmem:[%s181 + $0x20] sm:$0xff]
        %v197 = vld [vmem:[%s181 + $0x28] sm:$0xff]
        %v198 = vld [vmem:[%s181 + $0x30] sm:$0xff]
        %v199 = vld [vmem:[%s181 + $0x38] sm:$0xff]
        %v200 = vld [vmem:[%s181 + $0x40] sm:$0xff]
        %v201 = vld [vmem:[%s181 + $0x48] sm:$0xff]
        %v202 = vld [vmem:[%s181 + $0x50] sm:$0xff]
        %v203 = vld [vmem:[%s181 + $0x58] sm:$0xff]
        %v204 = vld [vmem:[%s181 + $0x60] sm:$0xff]
        %v205 = vld [vmem:[%s181 + $0x68] sm:$0xff]
        %v206 = vld [vmem:[%s181 + $0x70] sm:$0xff]
        %v207 = vld [vmem:[%s181 + $0x78] sm:$0xff]
        %v208 = vld [vmem:[%s181 + $0x80] sm:$0xff]
        %v209 = vld [vmem:[%s181 + $0x88] sm:$0xff]
        %v210 = vld [vmem:[%s181 + $0x90] sm:$0xff]
        %v211 = vld [vmem:[%s181 + $0x98] sm:$0xff]
        %v212 = vld [vmem:[%s181 + $0xa0] sm:$0xff]
        %v213 = vld [vmem:[%s181 + $0xa8] sm:$0xff]
        %v214 = vld [vmem:[%s181 + $0xb0] sm:$0xff]
        %v215 = vld [vmem:[%s181 + $0xb8] sm:$0xff]
        %v216 = vld [vmem:[%s181 + $0xc0] sm:$0xff]
        %v217 = vld [vmem:[%s181 + $0xc8] sm:$0xff]
        %v218 = vld [vmem:[%s181 + $0xd0] sm:$0xff]
        %v219 = vld [vmem:[%s181 + $0xd8] sm:$0xff]
        %v220 = vld [vmem:[%s181 + $0xe0] sm:$0xff]
        %v221 = vld [vmem:[%s181 + $0xe8] sm:$0xff]
        %v222 = vld [vmem:[%s181 + $0xf0] sm:$0xff]
        %v223 = vld [vmem:[%s181 + $0xf8] sm:$0xff]
        %v224 = vld [vmem:[%s181 + $0x100] sm:$0xff]
        %v225 = vld [vmem:[%s181 + $0x108] sm:$0xff]
        %v226 = vld [vmem:[%s181 + $0x110] sm:$0xff]
        %v227 = vld [vmem:[%s181 + $0x118] sm:$0xff]
        %v228 = vld [vmem:[%s181 + $0x120] sm:$0xff]
        %v229 = vld [vmem:[%s181 + $0x128] sm:$0xff]
        %v230 = vld [vmem:[%s181 + $0x130] sm:$0xff]
        %v231 = vld [vmem:[%s181 + $0x138] sm:$0xff]
        %v232 = vld [vmem:[%s181 + $0x140] sm:$0xff]
        %v233 = vld [vmem:[%s181 + $0x148] sm:$0xff]
        %v234 = vld [vmem:[%s181 + $0x150] sm:$0xff]
        %v235 = vld [vmem:[%s181 + $0x158] sm:$0xff]
        %v236 = vld [vmem:[%s181 + $0x160] sm:$0xff]
        %v237 = vld [vmem:[%s181 + $0x168] sm:$0xff]
        %v238 = vld [vmem:[%s181 + $0x170] sm:$0xff]
        %v239 = vld [vmem:[%s181 + $0x178] sm:$0xff]
        %v240 = vld [vmem:[%s181 + $0x180] sm:$0xff]
        %v241 = vld [vmem:[%s181 + $0x188] sm:$0xff]
        %v242 = vld [vmem:[%s181 + $0x190] sm:$0xff]
        %v243 = vld [vmem:[%s181 + $0x198] sm:$0xff]
        %v244 = vld [vmem:[%s181 + $0x1a0] sm:$0xff]
        %v245 = vld [vmem:[%s181 + $0x1a8] sm:$0xff]
        %v246 = vld [vmem:[%s181 + $0x1b0] sm:$0xff]
        %v247 = vld [vmem:[%s181 + $0x1b8] sm:$0xff]
        %v248 = vld [vmem:[%s181 + $0x1c0] sm:$0xff]
        %v249 = vld [vmem:[%s181 + $0x1c8] sm:$0xff]
        %v250 = vld [vmem:[%s181 + $0x1d0] sm:$0xff]
        %v251 = vld [vmem:[%s181 + $0x1d8] sm:$0xff]
        %v252 = vld [vmem:[%s181 + $0x1e0] sm:$0xff]
        %v253 = vld [vmem:[%s181 + $0x1e8] sm:$0xff]
        %v254 = vld [vmem:[%s181 + $0x1f0] sm:$0xff]
        %v255 = vld [vmem:[%s181 + $0x1f8] sm:$0xff]
        %v256 = vld [vmem:[%s1] sm:$0xff]
        %v257 = vld [vmem:[%s1 + $0x8] sm:$0xff]
        %v258 = vld [vmem:[%s1 + $0x10] sm:$0xff]
        %v259 = vld [vmem:[%s1 + $0x18] sm:$0xff]
        %v260 = vld [vmem:[%s1 + $0x20] sm:$0xff]
        %v261 = vld [vmem:[%s1 + $0x28] sm:$0xff]
        %v262 = vld [vmem:[%s1 + $0x30] sm:$0xff]
        %v263 = vld [vmem:[%s1 + $0x38] sm:$0xff]
        %v264 = vld [vmem:[%s1 + $0x40] sm:$0xff]
        %v265 = vld [vmem:[%s1 + $0x48] sm:$0xff]
        %v266 = vld [vmem:[%s1 + $0x50] sm:$0xff]
        %v267 = vld [vmem:[%s1 + $0x58] sm:$0xff]
        %v268 = vld [vmem:[%s1 + $0x60] sm:$0xf]
        %v269 = vld [vmem:[%s2] sm:$0x1]
        %v271 = vlaneseq
        %v272 = vshrl.u32 %v271, 7
        %v273 = vsub.s32 0, %v272
        %v274 = vrot.slane %v269, %v273
        %vm276 = vcmask 818176
        %v278 = vsel %vm276, %v192, 0
        %v281 = vsel %vm276, %v193, 0
        %v284 = vsel %vm276, %v194, 0
        %v287 = vsel %vm276, %v195, 0
        %v290 = vsel %vm276, %v196, 0
        %v293 = vsel %vm276, %v197, 0
        %v296 = vsel %vm276, %v198, 0
        %v299 = vsel %vm276, %v199, 0
        %v302 = vsel %vm276, %v200, 0
        %v305 = vsel %vm276, %v201, 0
        %v308 = vsel %vm276, %v202, 0
        %v311 = vsel %vm276, %v203, 0
        %v314 = vsel %vm276, %v204, 0
        %v317 = vsel %vm276, %v205, 0
        %v320 = vsel %vm276, %v206, 0
        %v323 = vsel %vm276, %v207, 0
        %v326 = vsel %vm276, %v208, 0
        %v329 = vsel %vm276, %v209, 0
        %v332 = vsel %vm276, %v210, 0
        %v335 = vsel %vm276, %v211, 0
        %v338 = vsel %vm276, %v212, 0
        %v341 = vsel %vm276, %v213, 0
        %v344 = vsel %vm276, %v214, 0
        %v347 = vsel %vm276, %v215, 0
        %v350 = vsel %vm276, %v216, 0
        %v353 = vsel %vm276, %v217, 0
        %v356 = vsel %vm276, %v218, 0
        %v359 = vsel %vm276, %v219, 0
        %v362 = vsel %vm276, %v220, 0
        %v365 = vsel %vm276, %v221, 0
        %v368 = vsel %vm276, %v222, 0
        %v371 = vsel %vm276, %v223, 0
        %v374 = vsel %vm276, %v224, 0
        %v377 = vsel %vm276, %v225, 0
        %v380 = vsel %vm276, %v226, 0
        %v383 = vsel %vm276, %v227, 0
        %v386 = vsel %vm276, %v228, 0
        %v389 = vsel %vm276, %v229, 0
        %v392 = vsel %vm276, %v230, 0
        %v395 = vsel %vm276, %v231, 0
        %v398 = vsel %vm276, %v232, 0
        %v401 = vsel %vm276, %v233, 0
        %v404 = vsel %vm276, %v234, 0
        %v407 = vsel %vm276, %v235, 0
        %v410 = vsel %vm276, %v236, 0
        %v413 = vsel %vm276, %v237, 0
        %v416 = vsel %vm276, %v238, 0
        %v419 = vsel %vm276, %v239, 0
        %v422 = vsel %vm276, %v240, 0
        %v425 = vsel %vm276, %v241, 0
        %v428 = vsel %vm276, %v242, 0
        %v431 = vsel %vm276, %v243, 0
        %v434 = vsel %vm276, %v244, 0
        %v437 = vsel %vm276, %v245, 0
        %v440 = vsel %vm276, %v246, 0
        %v443 = vsel %vm276, %v247, 0
        %v446 = vsel %vm276, %v248, 0
        %v449 = vsel %vm276, %v249, 0
        %v452 = vsel %vm276, %v250, 0
        %v455 = vsel %vm276, %v251, 0
        %v458 = vsel %vm276, %v252, 0
        %v461 = vsel %vm276, %v253, 0
        %v464 = vsel %vm276, %v254, 0
        %v467 = vsel %vm276, %v255, 0
        %vm469 = vcmask 1043456
        %v471 = vsel %vm469, %v268, 0
        %473 = vmatprep.subr.mxu0 0.0
        %474 = vmatpush1.msra.mxu0 0.0
        %475 = vmatprep.subr.mxu0 0.0
        %476 = vmatpush1.msra.mxu0 0.0
        %477 = vmatprep.subr.mxu0 0.0
        %478 = vmatpush1.msra.mxu0 0.0
        %479 = vmatprep.subr.mxu0 0.0
        %480 = vmatpush1.msra.mxu0 %v471
        %481 = vmatprep.subr.mxu0 0.0
        %482 = vmatpush1.msra.mxu0 %v267
        %483 = vmatprep.subr.mxu0 0.0
        %484 = vmatpush1.msra.mxu0 %v266
        %485 = vmatprep.subr.mxu0 0.0
        %486 = vmatpush1.msra.mxu0 %v265
        %487 = vmatprep.subr.mxu0 0.0
        %488 = vmatpush1.msra.mxu0 %v264
        %489 = vmatprep.subr.mxu0 0.0
        %490 = vmatpush1.msra.mxu0 %v263
        %491 = vmatprep.subr.mxu0 0.0
        %492 = vmatpush1.msra.mxu0 %v262
        %493 = vmatprep.subr.mxu0 0.0
        %494 = vmatpush1.msra.mxu0 %v261
        %495 = vmatprep.subr.mxu0 0.0
        %496 = vmatpush1.msra.mxu0 %v260
        %497 = vmatprep.subr.mxu0 0.0
        %498 = vmatpush1.msra.mxu0 %v259
        %499 = vmatprep.subr.mxu0 0.0
        %500 = vmatpush1.msra.mxu0 %v258
        %501 = vmatprep.subr.mxu0 0.0
        %502 = vmatpush1.msra.mxu0 %v257
        %503 = vmatprep.subr.mxu0 0.0
        %504 = vmatpush1.msra.mxu0 %v256
        %505 = vmatprep.subr.mxu0 0.0
        %506 = vmatpush2.msra.mxu0 0.0
        %507 = vmatprep.subr.mxu0 0.0
        %508 = vmatpush2.msra.mxu0 0.0
        %509 = vmatprep.subr.mxu0 0.0
        %510 = vmatpush2.msra.mxu0 0.0
        %511 = vmatprep.subr.mxu0 0.0
        %512 = vmatpush2.msra.mxu0 0.0
        %513 = vmatprep.subr.mxu0 0.0
        %514 = vmatpush2.msra.mxu0 0.0
        %515 = vmatprep.subr.mxu0 0.0
        %516 = vmatpush2.msra.mxu0 0.0
        %517 = vmatprep.subr.mxu0 0.0
        %518 = vmatpush2.msra.mxu0 0.0
        %519 = vmatprep.subr.mxu0 0.0
        %520 = vmatpush2.msra.mxu0 0.0
        %521 = vmatprep.subr.mxu0 0.0
        %522 = vmatpush2.msra.mxu0 0.0
        %523 = vmatprep.subr.mxu0 0.0
        %524 = vmatpush2.msra.mxu0 0.0
        %525 = vmatprep.subr.mxu0 0.0
        %526 = vmatpush2.msra.mxu0 0.0
        %527 = vmatprep.subr.mxu0 0.0
        %528 = vmatpush2.msra.mxu0 0.0
        %529 = vmatprep.subr.mxu0 0.0
        %530 = vmatpush2.msra.mxu0 0.0
        %531 = vmatprep.subr.mxu0 0.0
        %532 = vmatpush2.msra.mxu0 0.0
        %533 = vmatprep.subr.mxu0 0.0
        %534 = vmatpush2.msra.mxu0 0.0
        %535 = vmatprep.subr.mxu0 0.0
        %536 = vmatpush2.msra.mxu0 0.0
        %537 = vmatprep.mubr.f32.mxu0 0.0
        %538 = vmatmul.mubr.f32.gmra.mxu0 %v278
        %v539 = vpop.f32.mrf.mxu0
        %v540 = vadd.f32 %v274, %v539
        %v541 = vpop.f32.mrf.mxu0
        %542 = vmatprep.mubr.f32.mxu0 0.0
        %543 = vmatmul.mubr.f32.gmra.mxu0 %v281
        %v544 = vpop.f32.mrf.mxu0
        %v545 = vadd.f32 %v274, %v544
        %v546 = vpop.f32.mrf.mxu0
        %547 = vmatprep.mubr.f32.mxu0 0.0
        %548 = vmatmul.mubr.f32.gmra.mxu0 %v284
        %v549 = vpop.f32.mrf.mxu0
        %v550 = vadd.f32 %v274, %v549
        %v551 = vpop.f32.mrf.mxu0
        %552 = vmatprep.mubr.f32.mxu0 0.0
        %553 = vmatmul.mubr.f32.gmra.mxu0 %v287
        %v554 = vpop.f32.mrf.mxu0
        %v555 = vadd.f32 %v274, %v554
        %v556 = vpop.f32.mrf.mxu0
        %557 = vmatprep.mubr.f32.mxu0 0.0
        %558 = vmatmul.mubr.f32.gmra.mxu0 %v290
        %v559 = vpop.f32.mrf.mxu0
        %v560 = vadd.f32 %v274, %v559
        %v561 = vpop.f32.mrf.mxu0
        %562 = vmatprep.mubr.f32.mxu0 0.0
        %563 = vmatmul.mubr.f32.gmra.mxu0 %v293
        %v564 = vpop.f32.mrf.mxu0
        %v565 = vadd.f32 %v274, %v564
        %v566 = vpop.f32.mrf.mxu0
        %567 = vmatprep.mubr.f32.mxu0 0.0
        %568 = vmatmul.mubr.f32.gmra.mxu0 %v296
        %v569 = vpop.f32.mrf.mxu0
        %v570 = vadd.f32 %v274, %v569
        %v571 = vpop.f32.mrf.mxu0
        %572 = vmatprep.mubr.f32.mxu0 0.0
        %573 = vmatmul.mubr.f32.gmra.mxu0 %v299
        %v574 = vpop.f32.mrf.mxu0
        %v575 = vadd.f32 %v274, %v574
        %v576 = vpop.f32.mrf.mxu0
        %577 = vmatprep.mubr.f32.mxu0 0.0
        %578 = vmatmul.mubr.f32.gmra.mxu0 %v302
        %v579 = vpop.f32.mrf.mxu0
        %v580 = vadd.f32 %v274, %v579
        %v581 = vpop.f32.mrf.mxu0
        %582 = vmatprep.mubr.f32.mxu0 0.0
        %583 = vmatmul.mubr.f32.gmra.mxu0 %v305
        %v584 = vpop.f32.mrf.mxu0
        %v585 = vadd.f32 %v274, %v584
        %v586 = vpop.f32.mrf.mxu0
        %587 = vmatprep.mubr.f32.mxu0 0.0
        %588 = vmatmul.mubr.f32.gmra.mxu0 %v308
        %v589 = vpop.f32.mrf.mxu0
        %v590 = vadd.f32 %v274, %v589
        %v591 = vpop.f32.mrf.mxu0
        %592 = vmatprep.mubr.f32.mxu0 0.0
        %593 = vmatmul.mubr.f32.gmra.mxu0 %v311
        %v594 = vpop.f32.mrf.mxu0
        %v595 = vadd.f32 %v274, %v594
        %v596 = vpop.f32.mrf.mxu0
        %597 = vmatprep.mubr.f32.mxu0 0.0
        %598 = vmatmul.mubr.f32.gmra.mxu0 %v314
        %v599 = vpop.f32.mrf.mxu0
        %v600 = vadd.f32 %v274, %v599
        %v601 = vpop.f32.mrf.mxu0
        %602 = vmatprep.mubr.f32.mxu0 0.0
        %603 = vmatmul.mubr.f32.gmra.mxu0 %v317
        %v604 = vpop.f32.mrf.mxu0
        %v605 = vadd.f32 %v274, %v604
        %v606 = vpop.f32.mrf.mxu0
        %607 = vmatprep.mubr.f32.mxu0 0.0
        %608 = vmatmul.mubr.f32.gmra.mxu0 %v320
        %v609 = vpop.f32.mrf.mxu0
        %v610 = vadd.f32 %v274, %v609
        %v611 = vpop.f32.mrf.mxu0
        %612 = vmatprep.mubr.f32.mxu0 0.0
        %613 = vmatmul.mubr.f32.gmra.mxu0 %v323
        %v614 = vpop.f32.mrf.mxu0
        %v615 = vadd.f32 %v274, %v614
        %v616 = vpop.f32.mrf.mxu0
        %617 = vmatprep.mubr.f32.mxu0 0.0
        %618 = vmatmul.mubr.f32.gmra.mxu0 %v326
        %v619 = vpop.f32.mrf.mxu0
        %v620 = vadd.f32 %v274, %v619
        %v621 = vpop.f32.mrf.mxu0
        %622 = vmatprep.mubr.f32.mxu0 0.0
        %623 = vmatmul.mubr.f32.gmra.mxu0 %v329
        %v624 = vpop.f32.mrf.mxu0
        %v625 = vadd.f32 %v274, %v624
        %v626 = vpop.f32.mrf.mxu0
        %627 = vmatprep.mubr.f32.mxu0 0.0
        %628 = vmatmul.mubr.f32.gmra.mxu0 %v332
        %v629 = vpop.f32.mrf.mxu0
        %v630 = vadd.f32 %v274, %v629
        %v631 = vpop.f32.mrf.mxu0
        %632 = vmatprep.mubr.f32.mxu0 0.0
        %633 = vmatmul.mubr.f32.gmra.mxu0 %v335
        %v634 = vpop.f32.mrf.mxu0
        %v635 = vadd.f32 %v274, %v634
        %v636 = vpop.f32.mrf.mxu0
        %637 = vmatprep.mubr.f32.mxu0 0.0
        %638 = vmatmul.mubr.f32.gmra.mxu0 %v338
        %v639 = vpop.f32.mrf.mxu0
        %v640 = vadd.f32 %v274, %v639
        %v641 = vpop.f32.mrf.mxu0
        %642 = vmatprep.mubr.f32.mxu0 0.0
        %643 = vmatmul.mubr.f32.gmra.mxu0 %v341
        %v644 = vpop.f32.mrf.mxu0
        %v645 = vadd.f32 %v274, %v644
        %v646 = vpop.f32.mrf.mxu0
        %647 = vmatprep.mubr.f32.mxu0 0.0
        %648 = vmatmul.mubr.f32.gmra.mxu0 %v344
        %v649 = vpop.f32.mrf.mxu0
        %v650 = vadd.f32 %v274, %v649
        %v651 = vpop.f32.mrf.mxu0
        %652 = vmatprep.mubr.f32.mxu0 0.0
        %653 = vmatmul.mubr.f32.gmra.mxu0 %v347
        %v654 = vpop.f32.mrf.mxu0
        %v655 = vadd.f32 %v274, %v654
        %v656 = vpop.f32.mrf.mxu0
        %657 = vmatprep.mubr.f32.mxu0 0.0
        %658 = vmatmul.mubr.f32.gmra.mxu0 %v350
        %v659 = vpop.f32.mrf.mxu0
        %v660 = vadd.f32 %v274, %v659
        %v661 = vpop.f32.mrf.mxu0
        %662 = vmatprep.mubr.f32.mxu0 0.0
        %663 = vmatmul.mubr.f32.gmra.mxu0 %v353
        %v664 = vpop.f32.mrf.mxu0
        %v665 = vadd.f32 %v274, %v664
        %v666 = vpop.f32.mrf.mxu0
        %667 = vmatprep.mubr.f32.mxu0 0.0
        %668 = vmatmul.mubr.f32.gmra.mxu0 %v356
        %v669 = vpop.f32.mrf.mxu0
        %v670 = vadd.f32 %v274, %v669
        %v671 = vpop.f32.mrf.mxu0
        %672 = vmatprep.mubr.f32.mxu0 0.0
        %673 = vmatmul.mubr.f32.gmra.mxu0 %v359
        %v674 = vpop.f32.mrf.mxu0
        %v675 = vadd.f32 %v274, %v674
        %v676 = vpop.f32.mrf.mxu0
        %677 = vmatprep.mubr.f32.mxu0 0.0
        %678 = vmatmul.mubr.f32.gmra.mxu0 %v362
        %v679 = vpop.f32.mrf.mxu0
        %v680 = vadd.f32 %v274, %v679
        %v681 = vpop.f32.mrf.mxu0
        %682 = vmatprep.mubr.f32.mxu0 0.0
        %683 = vmatmul.mubr.f32.gmra.mxu0 %v365
        %v684 = vpop.f32.mrf.mxu0
        %v685 = vadd.f32 %v274, %v684
        %v686 = vpop.f32.mrf.mxu0
        %687 = vmatprep.mubr.f32.mxu0 0.0
        %688 = vmatmul.mubr.f32.gmra.mxu0 %v368
        %v689 = vpop.f32.mrf.mxu0
        %v690 = vadd.f32 %v274, %v689
        %v691 = vpop.f32.mrf.mxu0
        %692 = vmatprep.mubr.f32.mxu0 0.0
        %693 = vmatmul.mubr.f32.gmra.mxu0 %v371
        %v694 = vpop.f32.mrf.mxu0
        %v695 = vadd.f32 %v274, %v694
        %v696 = vpop.f32.mrf.mxu0
        %697 = vmatprep.mubr.f32.mxu0 0.0
        %698 = vmatmul.mubr.f32.gmra.mxu0 %v374
        %v699 = vpop.f32.mrf.mxu0
        %v700 = vadd.f32 %v274, %v699
        %v701 = vpop.f32.mrf.mxu0
        %702 = vmatprep.mubr.f32.mxu0 0.0
        %703 = vmatmul.mubr.f32.gmra.mxu0 %v377
        %v704 = vpop.f32.mrf.mxu0
        %v705 = vadd.f32 %v274, %v704
        %v706 = vpop.f32.mrf.mxu0
        %707 = vmatprep.mubr.f32.mxu0 0.0
        %708 = vmatmul.mubr.f32.gmra.mxu0 %v380
        %v709 = vpop.f32.mrf.mxu0
        %v710 = vadd.f32 %v274, %v709
        %v711 = vpop.f32.mrf.mxu0
        %712 = vmatprep.mubr.f32.mxu0 0.0
        %713 = vmatmul.mubr.f32.gmra.mxu0 %v383
        %v714 = vpop.f32.mrf.mxu0
        %v715 = vadd.f32 %v274, %v714
        %v716 = vpop.f32.mrf.mxu0
        %717 = vmatprep.mubr.f32.mxu0 0.0
        %718 = vmatmul.mubr.f32.gmra.mxu0 %v386
        %v719 = vpop.f32.mrf.mxu0
        %v720 = vadd.f32 %v274, %v719
        %v721 = vpop.f32.mrf.mxu0
        %722 = vmatprep.mubr.f32.mxu0 0.0
        %723 = vmatmul.mubr.f32.gmra.mxu0 %v389
        %v724 = vpop.f32.mrf.mxu0
        %v725 = vadd.f32 %v274, %v724
        %v726 = vpop.f32.mrf.mxu0
        %727 = vmatprep.mubr.f32.mxu0 0.0
        %728 = vmatmul.mubr.f32.gmra.mxu0 %v392
        %v729 = vpop.f32.mrf.mxu0
        %v730 = vadd.f32 %v274, %v729
        %v731 = vpop.f32.mrf.mxu0
        %732 = vmatprep.mubr.f32.mxu0 0.0
        %733 = vmatmul.mubr.f32.gmra.mxu0 %v395
        %v734 = vpop.f32.mrf.mxu0
        %v735 = vadd.f32 %v274, %v734
        %v736 = vpop.f32.mrf.mxu0
        %737 = vmatprep.mubr.f32.mxu0 0.0
        %738 = vmatmul.mubr.f32.gmra.mxu0 %v398
        %v739 = vpop.f32.mrf.mxu0
        %v740 = vadd.f32 %v274, %v739
        %v741 = vpop.f32.mrf.mxu0
        %742 = vmatprep.mubr.f32.mxu0 0.0
        %743 = vmatmul.mubr.f32.gmra.mxu0 %v401
        %v744 = vpop.f32.mrf.mxu0
        %v745 = vadd.f32 %v274, %v744
        %v746 = vpop.f32.mrf.mxu0
        %747 = vmatprep.mubr.f32.mxu0 0.0
        %748 = vmatmul.mubr.f32.gmra.mxu0 %v404
        %v749 = vpop.f32.mrf.mxu0
        %v750 = vadd.f32 %v274, %v749
        %v751 = vpop.f32.mrf.mxu0
        %752 = vmatprep.mubr.f32.mxu0 0.0
        %753 = vmatmul.mubr.f32.gmra.mxu0 %v407
        %v754 = vpop.f32.mrf.mxu0
        %v755 = vadd.f32 %v274, %v754
        %v756 = vpop.f32.mrf.mxu0
        %757 = vmatprep.mubr.f32.mxu0 0.0
        %758 = vmatmul.mubr.f32.gmra.mxu0 %v410
        %v759 = vpop.f32.mrf.mxu0
        %v760 = vadd.f32 %v274, %v759
        %v761 = vpop.f32.mrf.mxu0
        %762 = vmatprep.mubr.f32.mxu0 0.0
        %763 = vmatmul.mubr.f32.gmra.mxu0 %v413
        %v764 = vpop.f32.mrf.mxu0
        %v765 = vadd.f32 %v274, %v764
        %v766 = vpop.f32.mrf.mxu0
        %767 = vmatprep.mubr.f32.mxu0 0.0
        %768 = vmatmul.mubr.f32.gmra.mxu0 %v416
        %v769 = vpop.f32.mrf.mxu0
        %v770 = vadd.f32 %v274, %v769
        %v771 = vpop.f32.mrf.mxu0
        %772 = vmatprep.mubr.f32.mxu0 0.0
        %773 = vmatmul.mubr.f32.gmra.mxu0 %v419
        %v774 = vpop.f32.mrf.mxu0
        %v775 = vadd.f32 %v274, %v774
        %v776 = vpop.f32.mrf.mxu0
        %777 = vmatprep.mubr.f32.mxu0 0.0
        %778 = vmatmul.mubr.f32.gmra.mxu0 %v422
        %v779 = vpop.f32.mrf.mxu0
        %v780 = vadd.f32 %v274, %v779
        %v781 = vpop.f32.mrf.mxu0
        %782 = vmatprep.mubr.f32.mxu0 0.0
        %783 = vmatmul.mubr.f32.gmra.mxu0 %v425
        %v784 = vpop.f32.mrf.mxu0
        %v785 = vadd.f32 %v274, %v784
        %v786 = vpop.f32.mrf.mxu0
        %787 = vmatprep.mubr.f32.mxu0 0.0
        %788 = vmatmul.mubr.f32.gmra.mxu0 %v428
        %v789 = vpop.f32.mrf.mxu0
        %v790 = vadd.f32 %v274, %v789
        %v791 = vpop.f32.mrf.mxu0
        %792 = vmatprep.mubr.f32.mxu0 0.0
        %793 = vmatmul.mubr.f32.gmra.mxu0 %v431
        %v794 = vpop.f32.mrf.mxu0
        %v795 = vadd.f32 %v274, %v794
        %v796 = vpop.f32.mrf.mxu0
        %797 = vmatprep.mubr.f32.mxu0 0.0
        %798 = vmatmul.mubr.f32.gmra.mxu0 %v434
        %v799 = vpop.f32.mrf.mxu0
        %v800 = vadd.f32 %v274, %v799
        %v801 = vpop.f32.mrf.mxu0
        %802 = vmatprep.mubr.f32.mxu0 0.0
        %803 = vmatmul.mubr.f32.gmra.mxu0 %v437
        %v804 = vpop.f32.mrf.mxu0
        %v805 = vadd.f32 %v274, %v804
        %v806 = vpop.f32.mrf.mxu0
        %807 = vmatprep.mubr.f32.mxu0 0.0
        %808 = vmatmul.mubr.f32.gmra.mxu0 %v440
        %v809 = vpop.f32.mrf.mxu0
        %v810 = vadd.f32 %v274, %v809
        %v811 = vpop.f32.mrf.mxu0
        %812 = vmatprep.mubr.f32.mxu0 0.0
        %813 = vmatmul.mubr.f32.gmra.mxu0 %v443
        %v814 = vpop.f32.mrf.mxu0
        %v815 = vadd.f32 %v274, %v814
        %v816 = vpop.f32.mrf.mxu0
        %817 = vmatprep.mubr.f32.mxu0 0.0
        %818 = vmatmul.mubr.f32.gmra.mxu0 %v446
        %v819 = vpop.f32.mrf.mxu0
        %v820 = vadd.f32 %v274, %v819
        %v821 = vpop.f32.mrf.mxu0
        %822 = vmatprep.mubr.f32.mxu0 0.0
        %823 = vmatmul.mubr.f32.gmra.mxu0 %v449
        %v824 = vpop.f32.mrf.mxu0
        %v825 = vadd.f32 %v274, %v824
        %v826 = vpop.f32.mrf.mxu0
        %827 = vmatprep.mubr.f32.mxu0 0.0
        %828 = vmatmul.mubr.f32.gmra.mxu0 %v452
        %v829 = vpop.f32.mrf.mxu0
        %v830 = vadd.f32 %v274, %v829
        %v831 = vpop.f32.mrf.mxu0
        %832 = vmatprep.mubr.f32.mxu0 0.0
        %833 = vmatmul.mubr.f32.gmra.mxu0 %v455
        %v834 = vpop.f32.mrf.mxu0
        %v835 = vadd.f32 %v274, %v834
        %v836 = vpop.f32.mrf.mxu0
        %837 = vmatprep.mubr.f32.mxu0 0.0
        %838 = vmatmul.mubr.f32.gmra.mxu0 %v458
        %v839 = vpop.f32.mrf.mxu0
        %v840 = vadd.f32 %v274, %v839
        %v841 = vpop.f32.mrf.mxu0
        %842 = vmatprep.mubr.f32.mxu0 0.0
        %843 = vmatmul.mubr.f32.gmra.mxu0 %v461
        %v844 = vpop.f32.mrf.mxu0
        %v845 = vadd.f32 %v274, %v844
        %v846 = vpop.f32.mrf.mxu0
        %847 = vmatprep.mubr.f32.mxu0 0.0
        %848 = vmatmul.mubr.f32.gmra.mxu0 %v464
        %v849 = vpop.f32.mrf.mxu0
        %v850 = vadd.f32 %v274, %v849
        %v851 = vpop.f32.mrf.mxu0
        %852 = vmatprep.mubr.f32.mxu0 0.0
        %853 = vmatmul.mubr.f32.gmra.mxu0 %v467
        %v854 = vpop.f32.mrf.mxu0
        %v855 = vadd.f32 %v274, %v854
        %v856 = vpop.f32.mrf.mxu0
        %857 = vdwg.mxu0
        %v858 = vmax.f32 %v540, 0.0
        %v859 = vmax.f32 %v545, 0.0
        %v860 = vmax.f32 %v550, 0.0
        %v861 = vmax.f32 %v555, 0.0
        %v862 = vmax.f32 %v560, 0.0
        %v863 = vmax.f32 %v565, 0.0
        %v864 = vmax.f32 %v570, 0.0
        %v865 = vmax.f32 %v575, 0.0
        %v866 = vmax.f32 %v580, 0.0
        %v867 = vmax.f32 %v585, 0.0
        %v868 = vmax.f32 %v590, 0.0
        %v869 = vmax.f32 %v595, 0.0
        %v870 = vmax.f32 %v600, 0.0
        %v871 = vmax.f32 %v605, 0.0
        %v872 = vmax.f32 %v610, 0.0
        %v873 = vmax.f32 %v615, 0.0
        %v874 = vmax.f32 %v620, 0.0
        %v875 = vmax.f32 %v625, 0.0
        %v876 = vmax.f32 %v630, 0.0
        %v877 = vmax.f32 %v635, 0.0
        %v878 = vmax.f32 %v640, 0.0
        %v879 = vmax.f32 %v645, 0.0
        %v880 = vmax.f32 %v650, 0.0
        %v881 = vmax.f32 %v655, 0.0
        %v882 = vmax.f32 %v660, 0.0
        %v883 = vmax.f32 %v665, 0.0
        %v884 = vmax.f32 %v670, 0.0
        %v885 = vmax.f32 %v675, 0.0
        %v886 = vmax.f32 %v680, 0.0
        %v887 = vmax.f32 %v685, 0.0
        %v888 = vmax.f32 %v690, 0.0
        %v889 = vmax.f32 %v695, 0.0
        %v890 = vmax.f32 %v700, 0.0
        %v891 = vmax.f32 %v705, 0.0
        %v892 = vmax.f32 %v710, 0.0
        %v893 = vmax.f32 %v715, 0.0
        %v894 = vmax.f32 %v720, 0.0
        %v895 = vmax.f32 %v725, 0.0
        %v896 = vmax.f32 %v730, 0.0
        %v897 = vmax.f32 %v735, 0.0
        %v898 = vmax.f32 %v740, 0.0
        %v899 = vmax.f32 %v745, 0.0
        %v900 = vmax.f32 %v750, 0.0
        %v901 = vmax.f32 %v755, 0.0
        %v902 = vmax.f32 %v760, 0.0
        %v903 = vmax.f32 %v765, 0.0
        %v904 = vmax.f32 %v770, 0.0
        %v905 = vmax.f32 %v775, 0.0
        %v906 = vmax.f32 %v780, 0.0
        %v907 = vmax.f32 %v785, 0.0
        %v908 = vmax.f32 %v790, 0.0
        %v909 = vmax.f32 %v795, 0.0
        %v910 = vmax.f32 %v800, 0.0
        %v911 = vmax.f32 %v805, 0.0
        %v912 = vmax.f32 %v810, 0.0
        %v913 = vmax.f32 %v815, 0.0
        %v914 = vmax.f32 %v820, 0.0
        %v915 = vmax.f32 %v825, 0.0
        %v916 = vmax.f32 %v830, 0.0
        %v917 = vmax.f32 %v835, 0.0
        %v918 = vmax.f32 %v840, 0.0
        %v919 = vmax.f32 %v845, 0.0
        %v920 = vmax.f32 %v850, 0.0
        %v921 = vmax.f32 %v855, 0.0
        %vm922 = vcmask 261120
        %923 = vst.msk [vmem:[%s172] sm:$0xff] %vm922, %v858
        %924 = vst.msk [vmem:[%s172 + $0x8] sm:$0xff] %vm922, %v859
        %925 = vst.msk [vmem:[%s172 + $0x10] sm:$0xff] %vm922, %v860
        %926 = vst.msk [vmem:[%s172 + $0x18] sm:$0xff] %vm922, %v861
        %927 = vst.msk [vmem:[%s172 + $0x20] sm:$0xff] %vm922, %v862
        %928 = vst.msk [vmem:[%s172 + $0x28] sm:$0xff] %vm922, %v863
        %929 = vst.msk [vmem:[%s172 + $0x30] sm:$0xff] %vm922, %v864
        %930 = vst.msk [vmem:[%s172 + $0x38] sm:$0xff] %vm922, %v865
        %931 = vst.msk [vmem:[%s172 + $0x40] sm:$0xff] %vm922, %v866
        %932 = vst.msk [vmem:[%s172 + $0x48] sm:$0xff] %vm922, %v867
        %933 = vst.msk [vmem:[%s172 + $0x50] sm:$0xff] %vm922, %v868
        %934 = vst.msk [vmem:[%s172 + $0x58] sm:$0xff] %vm922, %v869
        %935 = vst.msk [vmem:[%s172 + $0x60] sm:$0xff] %vm922, %v870
        %936 = vst.msk [vmem:[%s172 + $0x68] sm:$0xff] %vm922, %v871
        %937 = vst.msk [vmem:[%s172 + $0x70] sm:$0xff] %vm922, %v872
        %938 = vst.msk [vmem:[%s172 + $0x78] sm:$0xff] %vm922, %v873
        %939 = vst.msk [vmem:[%s172 + $0x80] sm:$0xff] %vm922, %v874
        %940 = vst.msk [vmem:[%s172 + $0x88] sm:$0xff] %vm922, %v875
        %941 = vst.msk [vmem:[%s172 + $0x90] sm:$0xff] %vm922, %v876
        %942 = vst.msk [vmem:[%s172 + $0x98] sm:$0xff] %vm922, %v877
        %943 = vst.msk [vmem:[%s172 + $0xa0] sm:$0xff] %vm922, %v878
        %944 = vst.msk [vmem:[%s172 + $0xa8] sm:$0xff] %vm922, %v879
        %945 = vst.msk [vmem:[%s172 + $0xb0] sm:$0xff] %vm922, %v880
        %946 = vst.msk [vmem:[%s172 + $0xb8] sm:$0xff] %vm922, %v881
        %947 = vst.msk [vmem:[%s172 + $0xc0] sm:$0xff] %vm922, %v882
        %948 = vst.msk [vmem:[%s172 + $0xc8] sm:$0xff] %vm922, %v883
        %949 = vst.msk [vmem:[%s172 + $0xd0] sm:$0xff] %vm922, %v884
        %950 = vst.msk [vmem:[%s172 + $0xd8] sm:$0xff] %vm922, %v885
        %951 = vst.msk [vmem:[%s172 + $0xe0] sm:$0xff] %vm922, %v886
        %952 = vst.msk [vmem:[%s172 + $0xe8] sm:$0xff] %vm922, %v887
        %953 = vst.msk [vmem:[%s172 + $0xf0] sm:$0xff] %vm922, %v888
        %954 = vst.msk [vmem:[%s172 + $0xf8] sm:$0xff] %vm922, %v889
        %955 = vst.msk [vmem:[%s172 + $0x100] sm:$0xff] %vm922, %v890
        %956 = vst.msk [vmem:[%s172 + $0x108] sm:$0xff] %vm922, %v891
        %957 = vst.msk [vmem:[%s172 + $0x110] sm:$0xff] %vm922, %v892
        %958 = vst.msk [vmem:[%s172 + $0x118] sm:$0xff] %vm922, %v893
        %959 = vst.msk [vmem:[%s172 + $0x120] sm:$0xff] %vm922, %v894
        %960 = vst.msk [vmem:[%s172 + $0x128] sm:$0xff] %vm922, %v895
        %961 = vst.msk [vmem:[%s172 + $0x130] sm:$0xff] %vm922, %v896
        %962 = vst.msk [vmem:[%s172 + $0x138] sm:$0xff] %vm922, %v897
        %963 = vst.msk [vmem:[%s172 + $0x140] sm:$0xff] %vm922, %v898
        %964 = vst.msk [vmem:[%s172 + $0x148] sm:$0xff] %vm922, %v899
        %965 = vst.msk [vmem:[%s172 + $0x150] sm:$0xff] %vm922, %v900
        %966 = vst.msk [vmem:[%s172 + $0x158] sm:$0xff] %vm922, %v901
        %967 = vst.msk [vmem:[%s172 + $0x160] sm:$0xff] %vm922, %v902
        %968 = vst.msk [vmem:[%s172 + $0x168] sm:$0xff] %vm922, %v903
        %969 = vst.msk [vmem:[%s172 + $0x170] sm:$0xff] %vm922, %v904
        %970 = vst.msk [vmem:[%s172 + $0x178] sm:$0xff] %vm922, %v905
        %971 = vst.msk [vmem:[%s172 + $0x180] sm:$0xff] %vm922, %v906
        %972 = vst.msk [vmem:[%s172 + $0x188] sm:$0xff] %vm922, %v907
        %973 = vst.msk [vmem:[%s172 + $0x190] sm:$0xff] %vm922, %v908
        %974 = vst.msk [vmem:[%s172 + $0x198] sm:$0xff] %vm922, %v909
        %975 = vst.msk [vmem:[%s172 + $0x1a0] sm:$0xff] %vm922, %v910
        %976 = vst.msk [vmem:[%s172 + $0x1a8] sm:$0xff] %vm922, %v911
        %977 = vst.msk [vmem:[%s172 + $0x1b0] sm:$0xff] %vm922, %v912
        %978 = vst.msk [vmem:[%s172 + $0x1b8] sm:$0xff] %vm922, %v913
        %979 = vst.msk [vmem:[%s172 + $0x1c0] sm:$0xff] %vm922, %v914
        %980 = vst.msk [vmem:[%s172 + $0x1c8] sm:$0xff] %vm922, %v915
        %981 = vst.msk [vmem:[%s172 + $0x1d0] sm:$0xff] %vm922, %v916
        %982 = vst.msk [vmem:[%s172 + $0x1d8] sm:$0xff] %vm922, %v917
        %983 = vst.msk [vmem:[%s172 + $0x1e0] sm:$0xff] %vm922, %v918
        %984 = vst.msk [vmem:[%s172 + $0x1e8] sm:$0xff] %vm922, %v919
        %985 = vst.msk [vmem:[%s172 + $0x1f0] sm:$0xff] %vm922, %v920
        %986 = vst.msk [vmem:[%s172 + $0x1f8] sm:$0xff] %vm922, %v921
        %s987 = sand.u32 %s90, 1
        %s988 = sand.u32 %s90, 1
        %s989 = smul.addr %s988, 512
        %s990 = scalar_lea.vmem [#allocation2], %s989
        // Predicated region
        $region33: #{dqn_forward.3} parent=31 // pred_check
          %p991 = pneg %p100
        $region34: #{dqn_forward.3} parent=31 // pred_check_branch
          %993 = sbr.rel (%p991) target = $region36
        $region35: #{dqn_forward.3} parent=31 // pred_region
          %s994 = smul.u32 64, %s14
          %s995 = ssub.s32 81, %s994
          %p996 = scmp.lt.s32.totalorder %s995, 64
          %s997 = scalar_select %p996, %s995, 64
          %s998 = smul.u32 128, %s997
          %p999 = scmp.ne.s32.totalorder 0, %s998
          %s1000 = smul.addr %s994, 8
          %s1001 = scalar_lea.vmem %s3, %s1000
          // Predicated region
          $region37: #{dqn_forward.3} parent=35 // pred_check
            %p1002 = pneg %p999
          $region38: #{dqn_forward.3} parent=35 // pred_check_branch
            %1004 = sbr.rel (%p1002) target = $region40
          $region39: #{dqn_forward.3} parent=35 // pred_region
            // Predicated region
            $region41: #{dqn_forward.3} parent=39 // pred_check
              _
            $region42: #{dqn_forward.3} parent=39 // pred_check_branch
              %1006 = sbr.rel (0) target = $region44
            $region43: #{dqn_forward.3} parent=39 // pred_region
              // Predicated region
              $region63: #{dqn_forward.3} parent=43 // pred_check
                _
              $region64: #{dqn_forward.3} parent=43 // pred_check_branch
                %1182 = sbr.rel (0) target = $region66
              $region65: #{dqn_forward.3} parent=43 // pred_region
                %s1183 = sshrl.u32 %s997, 6
                // While loop
                $region67: #{dqn_forward.3} parent=65 // loop_pre_header
                  _
                $region68: #{dqn_forward.3} parent=65 // loop_header
                  %s1185 = sphi 0, %s1187
                  %p1186 = scmp.ge.s32.totalorder %s1185, %s1183
                  %s1190 = sphi 0, %s1323
                  %s1191 = sphi %s990, %s1326
                  %s1192 = sphi %s1001, %s1327
                $region69: #{dqn_forward.3} parent=65 // loop_header_branch
                  %1189 = sbr.rel (%p1186) target = $region73
                $region70: #{dqn_forward.3} parent=65 // loop_body
                  %v1193 = vld [vmem:[%s1191] sm:$0xff]
                  %1194 = vst [vmem:[%s1192] sm:$0xff] %v1193
                  %v1195 = vld [vmem:[%s1191 + $0x8] sm:$0xff]
                  %1196 = vst [vmem:[%s1192 + $0x8] sm:$0xff] %v1195
                  %v1197 = vld [vmem:[%s1191 + $0x10] sm:$0xff]
                  %1198 = vst [vmem:[%s1192 + $0x10] sm:$0xff] %v1197
                  %v1199 = vld [vmem:[%s1191 + $0x18] sm:$0xff]
                  %1200 = vst [vmem:[%s1192 + $0x18] sm:$0xff] %v1199
                  %v1201 = vld [vmem:[%s1191 + $0x20] sm:$0xff]
                  %1202 = vst [vmem:[%s1192 + $0x20] sm:$0xff] %v1201
                  %v1203 = vld [vmem:[%s1191 + $0x28] sm:$0xff]
                  %1204 = vst [vmem:[%s1192 + $0x28] sm:$0xff] %v1203
                  %v1205 = vld [vmem:[%s1191 + $0x30] sm:$0xff]
                  %1206 = vst [vmem:[%s1192 + $0x30] sm:$0xff] %v1205
                  %v1207 = vld [vmem:[%s1191 + $0x38] sm:$0xff]
                  %1208 = vst [vmem:[%s1192 + $0x38] sm:$0xff] %v1207
                  %v1209 = vld [vmem:[%s1191 + $0x40] sm:$0xff]
                  %1210 = vst [vmem:[%s1192 + $0x40] sm:$0xff] %v1209
                  %v1211 = vld [vmem:[%s1191 + $0x48] sm:$0xff]
                  %1212 = vst [vmem:[%s1192 + $0x48] sm:$0xff] %v1211
                  %v1213 = vld [vmem:[%s1191 + $0x50] sm:$0xff]
                  %1214 = vst [vmem:[%s1192 + $0x50] sm:$0xff] %v1213
                  %v1215 = vld [vmem:[%s1191 + $0x58] sm:$0xff]
                  %1216 = vst [vmem:[%s1192 + $0x58] sm:$0xff] %v1215
                  %v1217 = vld [vmem:[%s1191 + $0x60] sm:$0xff]
                  %1218 = vst [vmem:[%s1192 + $0x60] sm:$0xff] %v1217
                  %v1219 = vld [vmem:[%s1191 + $0x68] sm:$0xff]
                  %1220 = vst [vmem:[%s1192 + $0x68] sm:$0xff] %v1219
                  %v1221 = vld [vmem:[%s1191 + $0x70] sm:$0xff]
                  %1222 = vst [vmem:[%s1192 + $0x70] sm:$0xff] %v1221
                  %v1223 = vld [vmem:[%s1191 + $0x78] sm:$0xff]
                  %1224 = vst [vmem:[%s1192 + $0x78] sm:$0xff] %v1223
                  %v1225 = vld [vmem:[%s1191 + $0x80] sm:$0xff]
                  %1226 = vst [vmem:[%s1192 + $0x80] sm:$0xff] %v1225
                  %v1227 = vld [vmem:[%s1191 + $0x88] sm:$0xff]
                  %1228 = vst [vmem:[%s1192 + $0x88] sm:$0xff] %v1227
                  %v1229 = vld [vmem:[%s1191 + $0x90] sm:$0xff]
                  %1230 = vst [vmem:[%s1192 + $0x90] sm:$0xff] %v1229
                  %v1231 = vld [vmem:[%s1191 + $0x98] sm:$0xff]
                  %1232 = vst [vmem:[%s1192 + $0x98] sm:$0xff] %v1231
                  %v1233 = vld [vmem:[%s1191 + $0xa0] sm:$0xff]
                  %1234 = vst [vmem:[%s1192 + $0xa0] sm:$0xff] %v1233
                  %v1235 = vld [vmem:[%s1191 + $0xa8] sm:$0xff]
                  %1236 = vst [vmem:[%s1192 + $0xa8] sm:$0xff] %v1235
                  %v1237 = vld [vmem:[%s1191 + $0xb0] sm:$0xff]
                  %1238 = vst [vmem:[%s1192 + $0xb0] sm:$0xff] %v1237
                  %v1239 = vld [vmem:[%s1191 + $0xb8] sm:$0xff]
                  %1240 = vst [vmem:[%s1192 + $0xb8] sm:$0xff] %v1239
                  %v1241 = vld [vmem:[%s1191 + $0xc0] sm:$0xff]
                  %1242 = vst [vmem:[%s1192 + $0xc0] sm:$0xff] %v1241
                  %v1243 = vld [vmem:[%s1191 + $0xc8] sm:$0xff]
                  %1244 = vst [vmem:[%s1192 + $0xc8] sm:$0xff] %v1243
                  %v1245 = vld [vmem:[%s1191 + $0xd0] sm:$0xff]
                  %1246 = vst [vmem:[%s1192 + $0xd0] sm:$0xff] %v1245
                  %v1247 = vld [vmem:[%s1191 + $0xd8] sm:$0xff]
                  %1248 = vst [vmem:[%s1192 + $0xd8] sm:$0xff] %v1247
                  %v1249 = vld [vmem:[%s1191 + $0xe0] sm:$0xff]
                  %1250 = vst [vmem:[%s1192 + $0xe0] sm:$0xff] %v1249
                  %v1251 = vld [vmem:[%s1191 + $0xe8] sm:$0xff]
                  %1252 = vst [vmem:[%s1192 + $0xe8] sm:$0xff] %v1251
                  %v1253 = vld [vmem:[%s1191 + $0xf0] sm:$0xff]
                  %1254 = vst [vmem:[%s1192 + $0xf0] sm:$0xff] %v1253
                  %v1255 = vld [vmem:[%s1191 + $0xf8] sm:$0xff]
                  %1256 = vst [vmem:[%s1192 + $0xf8] sm:$0xff] %v1255
                  %v1257 = vld [vmem:[%s1191 + $0x100] sm:$0xff]
                  %1258 = vst [vmem:[%s1192 + $0x100] sm:$0xff] %v1257
                  %v1259 = vld [vmem:[%s1191 + $0x108] sm:$0xff]
                  %1260 = vst [vmem:[%s1192 + $0x108] sm:$0xff] %v1259
                  %v1261 = vld [vmem:[%s1191 + $0x110] sm:$0xff]
                  %1262 = vst [vmem:[%s1192 + $0x110] sm:$0xff] %v1261
                  %v1263 = vld [vmem:[%s1191 + $0x118] sm:$0xff]
                  %1264 = vst [vmem:[%s1192 + $0x118] sm:$0xff] %v1263
                  %v1265 = vld [vmem:[%s1191 + $0x120] sm:$0xff]
                  %1266 = vst [vmem:[%s1192 + $0x120] sm:$0xff] %v1265
                  %v1267 = vld [vmem:[%s1191 + $0x128] sm:$0xff]
                  %1268 = vst [vmem:[%s1192 + $0x128] sm:$0xff] %v1267
                  %v1269 = vld [vmem:[%s1191 + $0x130] sm:$0xff]
                  %1270 = vst [vmem:[%s1192 + $0x130] sm:$0xff] %v1269
                  %v1271 = vld [vmem:[%s1191 + $0x138] sm:$0xff]
                  %1272 = vst [vmem:[%s1192 + $0x138] sm:$0xff] %v1271
                  %v1273 = vld [vmem:[%s1191 + $0x140] sm:$0xff]
                  %1274 = vst [vmem:[%s1192 + $0x140] sm:$0xff] %v1273
                  %v1275 = vld [vmem:[%s1191 + $0x148] sm:$0xff]
                  %1276 = vst [vmem:[%s1192 + $0x148] sm:$0xff] %v1275
                  %v1277 = vld [vmem:[%s1191 + $0x150] sm:$0xff]
                  %1278 = vst [vmem:[%s1192 + $0x150] sm:$0xff] %v1277
                  %v1279 = vld [vmem:[%s1191 + $0x158] sm:$0xff]
                  %1280 = vst [vmem:[%s1192 + $0x158] sm:$0xff] %v1279
                  %v1281 = vld [vmem:[%s1191 + $0x160] sm:$0xff]
                  %1282 = vst [vmem:[%s1192 + $0x160] sm:$0xff] %v1281
                  %v1283 = vld [vmem:[%s1191 + $0x168] sm:$0xff]
                  %1284 = vst [vmem:[%s1192 + $0x168] sm:$0xff] %v1283
                  %v1285 = vld [vmem:[%s1191 + $0x170] sm:$0xff]
                  %1286 = vst [vmem:[%s1192 + $0x170] sm:$0xff] %v1285
                  %v1287 = vld [vmem:[%s1191 + $0x178] sm:$0xff]
                  %1288 = vst [vmem:[%s1192 + $0x178] sm:$0xff] %v1287
                  %v1289 = vld [vmem:[%s1191 + $0x180] sm:$0xff]
                  %1290 = vst [vmem:[%s1192 + $0x180] sm:$0xff] %v1289
                  %v1291 = vld [vmem:[%s1191 + $0x188] sm:$0xff]
                  %1292 = vst [vmem:[%s1192 + $0x188] sm:$0xff] %v1291
                  %v1293 = vld [vmem:[%s1191 + $0x190] sm:$0xff]
                  %1294 = vst [vmem:[%s1192 + $0x190] sm:$0xff] %v1293
                  %v1295 = vld [vmem:[%s1191 + $0x198] sm:$0xff]
                  %1296 = vst [vmem:[%s1192 + $0x198] sm:$0xff] %v1295
                  %v1297 = vld [vmem:[%s1191 + $0x1a0] sm:$0xff]
                  %1298 = vst [vmem:[%s1192 + $0x1a0] sm:$0xff] %v1297
                  %v1299 = vld [vmem:[%s1191 + $0x1a8] sm:$0xff]
                  %1300 = vst [vmem:[%s1192 + $0x1a8] sm:$0xff] %v1299
                  %v1301 = vld [vmem:[%s1191 + $0x1b0] sm:$0xff]
                  %1302 = vst [vmem:[%s1192 + $0x1b0] sm:$0xff] %v1301
                  %v1303 = vld [vmem:[%s1191 + $0x1b8] sm:$0xff]
                  %1304 = vst [vmem:[%s1192 + $0x1b8] sm:$0xff] %v1303
                  %v1305 = vld [vmem:[%s1191 + $0x1c0] sm:$0xff]
                  %1306 = vst [vmem:[%s1192 + $0x1c0] sm:$0xff] %v1305
                  %v1307 = vld [vmem:[%s1191 + $0x1c8] sm:$0xff]
                  %1308 = vst [vmem:[%s1192 + $0x1c8] sm:$0xff] %v1307
                  %v1309 = vld [vmem:[%s1191 + $0x1d0] sm:$0xff]
                  %1310 = vst [vmem:[%s1192 + $0x1d0] sm:$0xff] %v1309
                  %v1311 = vld [vmem:[%s1191 + $0x1d8] sm:$0xff]
                  %1312 = vst [vmem:[%s1192 + $0x1d8] sm:$0xff] %v1311
                  %v1313 = vld [vmem:[%s1191 + $0x1e0] sm:$0xff]
                  %1314 = vst [vmem:[%s1192 + $0x1e0] sm:$0xff] %v1313
                  %v1315 = vld [vmem:[%s1191 + $0x1e8] sm:$0xff]
                  %1316 = vst [vmem:[%s1192 + $0x1e8] sm:$0xff] %v1315
                  %v1317 = vld [vmem:[%s1191 + $0x1f0] sm:$0xff]
                  %1318 = vst [vmem:[%s1192 + $0x1f0] sm:$0xff] %v1317
                  %v1319 = vld [vmem:[%s1191 + $0x1f8] sm:$0xff]
                  %1320 = vst [vmem:[%s1192 + $0x1f8] sm:$0xff] %v1319
                  %s1321 = sadd.s32 1, %s1190
                  %p1322 = scmp.ge.s32.totalorder %s1321, %s1183
                  %s1323 = scalar_select %p1322, 0, %s1321
                  %s1324 = smul.u32 %s1323, 512
                  %s1325 = smul.u32 %s1323, 512
                  %s1326 = scalar_lea.vmem %s990, %s1324 [#allocation2]
                  %s1327 = scalar_lea.vmem %s1001, %s1325
                $region71: #{dqn_forward.3} parent=65 // loop_footer
                  %s1187 = sadd.s32 %s1185, 1
                $region72: #{dqn_forward.3} parent=65 // loop_footer_branch
                  %1184 = sbr.rel target = $region68
                $region73: #{dqn_forward.3} parent=65 // loop_exit
                  _
                %s1328 = sshrl.u32 %s997, 6
                %s1329 = sand.u32 %s997, 63
                %s1330 = smul.u32 %s1328, 64
                %s1331 = smul.u32 8, %s1330
                %s1332 = scalar_lea.vmem %s990, %s1331 [#allocation2]
                %s1333 = smul.u32 8, %s1330
                %s1334 = scalar_lea.vmem %s1001, %s1333
                // While loop
                $region74: #{dqn_forward.3} parent=65 // loop_pre_header
                  _
                $region75: #{dqn_forward.3} parent=65 // loop_header
                  %s1336 = sphi 0, %s1338
                  %p1337 = scmp.ge.s32.totalorder %s1336, %s1329
                  %s1341 = sphi 0, %s1348
                  %s1342 = sphi %s1332, %s1351
                  %s1343 = sphi %s1334, %s1352
                $region76: #{dqn_forward.3} parent=65 // loop_header_branch
                  %1340 = sbr.rel (%p1337) target = $region80
                $region77: #{dqn_forward.3} parent=65 // loop_body
                  %v1344 = vld [vmem:[%s1342] sm:$0xff]
                  %1345 = vst [vmem:[%s1343] sm:$0xff] %v1344
                  %s1346 = sadd.s32 1, %s1341
                  %p1347 = scmp.ge.s32.totalorder %s1346, %s1329
                  %s1348 = scalar_select %p1347, 0, %s1346
                  %s1349 = smul.u32 %s1348, 8
                  %s1350 = smul.u32 %s1348, 8
                  %s1351 = scalar_lea.vmem %s1332, %s1349 [#allocation2]
                  %s1352 = scalar_lea.vmem %s1334, %s1350
                $region78: #{dqn_forward.3} parent=65 // loop_footer
                  %s1338 = sadd.s32 %s1336, 1
                $region79: #{dqn_forward.3} parent=65 // loop_footer_branch
                  %1335 = sbr.rel target = $region75
                $region80: #{dqn_forward.3} parent=65 // loop_exit
                  _
              $region66: #{dqn_forward.3} parent=43 // pred_fallthru
                _
              // Predicated region
              $region81: #{dqn_forward.3} parent=43 // pred_check
                _
              $region82: #{dqn_forward.3} parent=43 // pred_check_branch
                %1354 = sbr.rel target = $region84
              $region83: #{dqn_forward.3} parent=43 // pred_region
                _
              $region84: #{dqn_forward.3} parent=43 // pred_fallthru
                _
            $region44: #{dqn_forward.3} parent=39 // pred_fallthru
              _
            // Predicated region
            $region45: #{dqn_forward.3} parent=39 // pred_check
              _
            $region46: #{dqn_forward.3} parent=39 // pred_check_branch
              %1008 = sbr.rel target = $region48
            $region47: #{dqn_forward.3} parent=39 // pred_region
              %s1010 = ssub.s32 256, 1
              %s1011 = sshrl.u32 %s997, 6
              // While loop
              $region49: #{dqn_forward.3} parent=47 // loop_pre_header
                _
              $region50: #{dqn_forward.3} parent=47 // loop_header
                %s1013 = sphi 0, %s1015
                %p1014 = scmp.ge.s32.totalorder %s1013, %s1011
                %s1018 = sphi 0, %s1151
                %s1019 = sphi %s990, %s1154
                %s1020 = sphi %s1001, %s1155
              $region51: #{dqn_forward.3} parent=47 // loop_header_branch
                %1017 = sbr.rel (%p1014) target = $region55
              $region52: #{dqn_forward.3} parent=47 // loop_body
                %v1021 = vld [vmem:[%s1019] sm:%s1010]
                %1022 = vst [vmem:[%s1020] sm:%s1010] %v1021
                %v1023 = vld [vmem:[%s1019 + $0x8] sm:%s1010]
                %1024 = vst [vmem:[%s1020 + $0x8] sm:%s1010] %v1023
                %v1025 = vld [vmem:[%s1019 + $0x10] sm:%s1010]
                %1026 = vst [vmem:[%s1020 + $0x10] sm:%s1010] %v1025
                %v1027 = vld [vmem:[%s1019 + $0x18] sm:%s1010]
                %1028 = vst [vmem:[%s1020 + $0x18] sm:%s1010] %v1027
                %v1029 = vld [vmem:[%s1019 + $0x20] sm:%s1010]
                %1030 = vst [vmem:[%s1020 + $0x20] sm:%s1010] %v1029
                %v1031 = vld [vmem:[%s1019 + $0x28] sm:%s1010]
                %1032 = vst [vmem:[%s1020 + $0x28] sm:%s1010] %v1031
                %v1033 = vld [vmem:[%s1019 + $0x30] sm:%s1010]
                %1034 = vst [vmem:[%s1020 + $0x30] sm:%s1010] %v1033
                %v1035 = vld [vmem:[%s1019 + $0x38] sm:%s1010]
                %1036 = vst [vmem:[%s1020 + $0x38] sm:%s1010] %v1035
                %v1037 = vld [vmem:[%s1019 + $0x40] sm:%s1010]
                %1038 = vst [vmem:[%s1020 + $0x40] sm:%s1010] %v1037
                %v1039 = vld [vmem:[%s1019 + $0x48] sm:%s1010]
                %1040 = vst [vmem:[%s1020 + $0x48] sm:%s1010] %v1039
                %v1041 = vld [vmem:[%s1019 + $0x50] sm:%s1010]
                %1042 = vst [vmem:[%s1020 + $0x50] sm:%s1010] %v1041
                %v1043 = vld [vmem:[%s1019 + $0x58] sm:%s1010]
                %1044 = vst [vmem:[%s1020 + $0x58] sm:%s1010] %v1043
                %v1045 = vld [vmem:[%s1019 + $0x60] sm:%s1010]
                %1046 = vst [vmem:[%s1020 + $0x60] sm:%s1010] %v1045
                %v1047 = vld [vmem:[%s1019 + $0x68] sm:%s1010]
                %1048 = vst [vmem:[%s1020 + $0x68] sm:%s1010] %v1047
                %v1049 = vld [vmem:[%s1019 + $0x70] sm:%s1010]
                %1050 = vst [vmem:[%s1020 + $0x70] sm:%s1010] %v1049
                %v1051 = vld [vmem:[%s1019 + $0x78] sm:%s1010]
                %1052 = vst [vmem:[%s1020 + $0x78] sm:%s1010] %v1051
                %v1053 = vld [vmem:[%s1019 + $0x80] sm:%s1010]
                %1054 = vst [vmem:[%s1020 + $0x80] sm:%s1010] %v1053
                %v1055 = vld [vmem:[%s1019 + $0x88] sm:%s1010]
                %1056 = vst [vmem:[%s1020 + $0x88] sm:%s1010] %v1055
                %v1057 = vld [vmem:[%s1019 + $0x90] sm:%s1010]
                %1058 = vst [vmem:[%s1020 + $0x90] sm:%s1010] %v1057
                %v1059 = vld [vmem:[%s1019 + $0x98] sm:%s1010]
                %1060 = vst [vmem:[%s1020 + $0x98] sm:%s1010] %v1059
                %v1061 = vld [vmem:[%s1019 + $0xa0] sm:%s1010]
                %1062 = vst [vmem:[%s1020 + $0xa0] sm:%s1010] %v1061
                %v1063 = vld [vmem:[%s1019 + $0xa8] sm:%s1010]
                %1064 = vst [vmem:[%s1020 + $0xa8] sm:%s1010] %v1063
                %v1065 = vld [vmem:[%s1019 + $0xb0] sm:%s1010]
                %1066 = vst [vmem:[%s1020 + $0xb0] sm:%s1010] %v1065
                %v1067 = vld [vmem:[%s1019 + $0xb8] sm:%s1010]
                %1068 = vst [vmem:[%s1020 + $0xb8] sm:%s1010] %v1067
                %v1069 = vld [vmem:[%s1019 + $0xc0] sm:%s1010]
                %1070 = vst [vmem:[%s1020 + $0xc0] sm:%s1010] %v1069
                %v1071 = vld [vmem:[%s1019 + $0xc8] sm:%s1010]
                %1072 = vst [vmem:[%s1020 + $0xc8] sm:%s1010] %v1071
                %v1073 = vld [vmem:[%s1019 + $0xd0] sm:%s1010]
                %1074 = vst [vmem:[%s1020 + $0xd0] sm:%s1010] %v1073
                %v1075 = vld [vmem:[%s1019 + $0xd8] sm:%s1010]
                %1076 = vst [vmem:[%s1020 + $0xd8] sm:%s1010] %v1075
                %v1077 = vld [vmem:[%s1019 + $0xe0] sm:%s1010]
                %1078 = vst [vmem:[%s1020 + $0xe0] sm:%s1010] %v1077
                %v1079 = vld [vmem:[%s1019 + $0xe8] sm:%s1010]
                %1080 = vst [vmem:[%s1020 + $0xe8] sm:%s1010] %v1079
                %v1081 = vld [vmem:[%s1019 + $0xf0] sm:%s1010]
                %1082 = vst [vmem:[%s1020 + $0xf0] sm:%s1010] %v1081
                %v1083 = vld [vmem:[%s1019 + $0xf8] sm:%s1010]
                %1084 = vst [vmem:[%s1020 + $0xf8] sm:%s1010] %v1083
                %v1085 = vld [vmem:[%s1019 + $0x100] sm:%s1010]
                %1086 = vst [vmem:[%s1020 + $0x100] sm:%s1010] %v1085
                %v1087 = vld [vmem:[%s1019 + $0x108] sm:%s1010]
                %1088 = vst [vmem:[%s1020 + $0x108] sm:%s1010] %v1087
                %v1089 = vld [vmem:[%s1019 + $0x110] sm:%s1010]
                %1090 = vst [vmem:[%s1020 + $0x110] sm:%s1010] %v1089
                %v1091 = vld [vmem:[%s1019 + $0x118] sm:%s1010]
                %1092 = vst [vmem:[%s1020 + $0x118] sm:%s1010] %v1091
                %v1093 = vld [vmem:[%s1019 + $0x120] sm:%s1010]
                %1094 = vst [vmem:[%s1020 + $0x120] sm:%s1010] %v1093
                %v1095 = vld [vmem:[%s1019 + $0x128] sm:%s1010]
                %1096 = vst [vmem:[%s1020 + $0x128] sm:%s1010] %v1095
                %v1097 = vld [vmem:[%s1019 + $0x130] sm:%s1010]
                %1098 = vst [vmem:[%s1020 + $0x130] sm:%s1010] %v1097
                %v1099 = vld [vmem:[%s1019 + $0x138] sm:%s1010]
                %1100 = vst [vmem:[%s1020 + $0x138] sm:%s1010] %v1099
                %v1101 = vld [vmem:[%s1019 + $0x140] sm:%s1010]
                %1102 = vst [vmem:[%s1020 + $0x140] sm:%s1010] %v1101
                %v1103 = vld [vmem:[%s1019 + $0x148] sm:%s1010]
                %1104 = vst [vmem:[%s1020 + $0x148] sm:%s1010] %v1103
                %v1105 = vld [vmem:[%s1019 + $0x150] sm:%s1010]
                %1106 = vst [vmem:[%s1020 + $0x150] sm:%s1010] %v1105
                %v1107 = vld [vmem:[%s1019 + $0x158] sm:%s1010]
                %1108 = vst [vmem:[%s1020 + $0x158] sm:%s1010] %v1107
                %v1109 = vld [vmem:[%s1019 + $0x160] sm:%s1010]
                %1110 = vst [vmem:[%s1020 + $0x160] sm:%s1010] %v1109
                %v1111 = vld [vmem:[%s1019 + $0x168] sm:%s1010]
                %1112 = vst [vmem:[%s1020 + $0x168] sm:%s1010] %v1111
                %v1113 = vld [vmem:[%s1019 + $0x170] sm:%s1010]
                %1114 = vst [vmem:[%s1020 + $0x170] sm:%s1010] %v1113
                %v1115 = vld [vmem:[%s1019 + $0x178] sm:%s1010]
                %1116 = vst [vmem:[%s1020 + $0x178] sm:%s1010] %v1115
                %v1117 = vld [vmem:[%s1019 + $0x180] sm:%s1010]
                %1118 = vst [vmem:[%s1020 + $0x180] sm:%s1010] %v1117
                %v1119 = vld [vmem:[%s1019 + $0x188] sm:%s1010]
                %1120 = vst [vmem:[%s1020 + $0x188] sm:%s1010] %v1119
                %v1121 = vld [vmem:[%s1019 + $0x190] sm:%s1010]
                %1122 = vst [vmem:[%s1020 + $0x190] sm:%s1010] %v1121
                %v1123 = vld [vmem:[%s1019 + $0x198] sm:%s1010]
                %1124 = vst [vmem:[%s1020 + $0x198] sm:%s1010] %v1123
                %v1125 = vld [vmem:[%s1019 + $0x1a0] sm:%s1010]
                %1126 = vst [vmem:[%s1020 + $0x1a0] sm:%s1010] %v1125
                %v1127 = vld [vmem:[%s1019 + $0x1a8] sm:%s1010]
                %1128 = vst [vmem:[%s1020 + $0x1a8] sm:%s1010] %v1127
                %v1129 = vld [vmem:[%s1019 + $0x1b0] sm:%s1010]
                %1130 = vst [vmem:[%s1020 + $0x1b0] sm:%s1010] %v1129
                %v1131 = vld [vmem:[%s1019 + $0x1b8] sm:%s1010]
                %1132 = vst [vmem:[%s1020 + $0x1b8] sm:%s1010] %v1131
                %v1133 = vld [vmem:[%s1019 + $0x1c0] sm:%s1010]
                %1134 = vst [vmem:[%s1020 + $0x1c0] sm:%s1010] %v1133
                %v1135 = vld [vmem:[%s1019 + $0x1c8] sm:%s1010]
                %1136 = vst [vmem:[%s1020 + $0x1c8] sm:%s1010] %v1135
                %v1137 = vld [vmem:[%s1019 + $0x1d0] sm:%s1010]
                %1138 = vst [vmem:[%s1020 + $0x1d0] sm:%s1010] %v1137
                %v1139 = vld [vmem:[%s1019 + $0x1d8] sm:%s1010]
                %1140 = vst [vmem:[%s1020 + $0x1d8] sm:%s1010] %v1139
                %v1141 = vld [vmem:[%s1019 + $0x1e0] sm:%s1010]
                %1142 = vst [vmem:[%s1020 + $0x1e0] sm:%s1010] %v1141
                %v1143 = vld [vmem:[%s1019 + $0x1e8] sm:%s1010]
                %1144 = vst [vmem:[%s1020 + $0x1e8] sm:%s1010] %v1143
                %v1145 = vld [vmem:[%s1019 + $0x1f0] sm:%s1010]
                %1146 = vst [vmem:[%s1020 + $0x1f0] sm:%s1010] %v1145
                %v1147 = vld [vmem:[%s1019 + $0x1f8] sm:%s1010]
                %1148 = vst [vmem:[%s1020 + $0x1f8] sm:%s1010] %v1147
                %s1149 = sadd.s32 1, %s1018
                %p1150 = scmp.ge.s32.totalorder %s1149, %s1011
                %s1151 = scalar_select %p1150, 0, %s1149
                %s1152 = smul.u32 %s1151, 512
                %s1153 = smul.u32 %s1151, 512
                %s1154 = scalar_lea.vmem %s990, %s1152 [#allocation2]
                %s1155 = scalar_lea.vmem %s1001, %s1153
              $region53: #{dqn_forward.3} parent=47 // loop_footer
                %s1015 = sadd.s32 %s1013, 1
              $region54: #{dqn_forward.3} parent=47 // loop_footer_branch
                %1012 = sbr.rel target = $region50
              $region55: #{dqn_forward.3} parent=47 // loop_exit
                _
              %s1156 = sshrl.u32 %s997, 6
              %s1157 = sand.u32 %s997, 63
              %s1158 = smul.u32 %s1156, 64
              %s1159 = smul.u32 8, %s1158
              %s1160 = scalar_lea.vmem %s990, %s1159 [#allocation2]
              %s1161 = smul.u32 8, %s1158
              %s1162 = scalar_lea.vmem %s1001, %s1161
              // While loop
              $region56: #{dqn_forward.3} parent=47 // loop_pre_header
                _
              $region57: #{dqn_forward.3} parent=47 // loop_header
                %s1164 = sphi 0, %s1166
                %p1165 = scmp.ge.s32.totalorder %s1164, %s1157
                %s1169 = sphi 0, %s1176
                %s1170 = sphi %s1160, %s1179
                %s1171 = sphi %s1162, %s1180
              $region58: #{dqn_forward.3} parent=47 // loop_header_branch
                %1168 = sbr.rel (%p1165) target = $region62
              $region59: #{dqn_forward.3} parent=47 // loop_body
                %v1172 = vld [vmem:[%s1170] sm:%s1010]
                %1173 = vst [vmem:[%s1171] sm:%s1010] %v1172
                %s1174 = sadd.s32 1, %s1169
                %p1175 = scmp.ge.s32.totalorder %s1174, %s1157
                %s1176 = scalar_select %p1175, 0, %s1174
                %s1177 = smul.u32 %s1176, 8
                %s1178 = smul.u32 %s1176, 8
                %s1179 = scalar_lea.vmem %s1160, %s1177 [#allocation2]
                %s1180 = scalar_lea.vmem %s1162, %s1178
              $region60: #{dqn_forward.3} parent=47 // loop_footer
                %s1166 = sadd.s32 %s1164, 1
              $region61: #{dqn_forward.3} parent=47 // loop_footer_branch
                %1163 = sbr.rel target = $region57
              $region62: #{dqn_forward.3} parent=47 // loop_exit
                _
            $region48: #{dqn_forward.3} parent=39 // pred_fallthru
              _
          $region40: #{dqn_forward.3} parent=35 // pred_fallthru
            _
          %1355 = vnop
        $region36: #{dqn_forward.3} parent=31 // pred_fallthru
          _
      $region32: #{dqn_forward.3} parent=5 // pred_fallthru
        _
      %p1356 = scmp.le.s32.totalorder 2, %s9
      // Predicated region
      $region85: #{dqn_forward.3} parent=5 // pred_check
        %p1357 = pneg %p1356
      $region86: #{dqn_forward.3} parent=5 // pred_check_branch
        %1359 = sbr.rel (%p1357) target = $region88
      $region87: #{dqn_forward.3} parent=5 // pred_region
        %s1360 = ssub.s32 %s9, 2
        // Predicated region
        $region89: #{dqn_forward.3} parent=87 // pred_check
          %p1361 = pneg %p106
        $region90: #{dqn_forward.3} parent=87 // pred_check_branch
          %1363 = sbr.rel (%p1361) target = $region92
        $region91: #{dqn_forward.3} parent=87 // pred_region
          %s1364 = sand.u32 %s91, 1
          %s1365 = sand.u32 %s91, 1
          %s1366 = smul.addr %s1365, 512
          %s1367 = scalar_lea.vmem [#allocation2], %s1366
        $region92: #{dqn_forward.3} parent=87 // pred_fallthru
          _
      $region88: #{dqn_forward.3} parent=5 // pred_fallthru
        _
    $region6: #{dqn_forward.3} parent=1 // loop_footer
      %s13 = sadd.s32 1, %s9
    $region7: #{dqn_forward.3} parent=1 // loop_footer_branch
      %8 = sbr.rel target = $region3
    $region8: #{dqn_forward.3} parent=1 // loop_exit
      _

// kernel: dqn_forward.4
$region0: #{dqn_forward.4}
  #allocation0 [shape = 'u32[]', space=smem, size = 0x4, offset = 0x4, fixed_abs, tag = 'smem constant byte address 0x4 - core index']
  #allocation1 [shape = 'u32[144,128]{1,0:T(1,128)}', space=vmem, size = 0x12000, scoped, tag = 'internal scratch']
  %s0 = inlined_call_operand.vmem [shape: f32[98,800], index: 0, kind: input, shape index: {}]
  %s1 = inlined_call_operand.vmem [shape: f32[800,64], index: 1, kind: input, shape index: {}]
  %s2 = inlined_call_operand.vmem [shape: f32[1,64], index: 2, kind: input, shape index: {}]
  %s3 = inlined_call_operand.vmem [shape: f32[98,64], index: 3, kind: output, shape index: {}]
  %s4 = sld [smem:[#allocation0]]
  $region22: #{dqn_forward.4} parent=0
    _
  %s6 = ssub.s32 1, %s4
  %s7 = scalar_select 0, %s6, %s4
  // Predicated region
  $region2: #{dqn_forward.4} parent=0 // pred_check
    _
  $region3: #{dqn_forward.4} parent=0 // pred_check_branch
    %9 = sbr.rel (0) target = $region5
  $region4: #{dqn_forward.4} parent=0 // pred_region
    _
  $region5: #{dqn_forward.4} parent=0 // pred_fallthru
    _
  // Predicated region
  $region6: #{dqn_forward.4} parent=0 // pred_check
    _
  $region7: #{dqn_forward.4} parent=0 // pred_check_branch
    %11 = sbr.rel (0) target = $region9
  $region8: #{dqn_forward.4} parent=0 // pred_region
    _
  $region9: #{dqn_forward.4} parent=0 // pred_fallthru
    _
  // Predicated region
  $region10: #{dqn_forward.4} parent=0 // pred_check
    _
  $region11: #{dqn_forward.4} parent=0 // pred_check_branch
    %13 = sbr.rel (0) target = $region13
  $region12: #{dqn_forward.4} parent=0 // pred_region
    _
  $region13: #{dqn_forward.4} parent=0 // pred_fallthru
    _
  %v14 = vld [vmem:[%s0] sm:$0xff]
  %v15 = vld [vmem:[%s0 + $0x8] sm:$0xff]
  %v16 = vld [vmem:[%s0 + $0x10] sm:$0xff]
  %v17 = vld [vmem:[%s0 + $0x18] sm:$0xff]
  %v18 = vld [vmem:[%s0 + $0x20] sm:$0xff]
  %v19 = vld [vmem:[%s0 + $0x28] sm:$0xff]
  %v20 = vld [vmem:[%s0 + $0x30] sm:$0xff]
  %v21 = vld [vmem:[%s0 + $0x38] sm:$0xff]
  %v22 = vld [vmem:[%s0 + $0x40] sm:$0xff]
  %v23 = vld [vmem:[%s0 + $0x48] sm:$0xff]
  %v24 = vld [vmem:[%s0 + $0x50] sm:$0xff]
  %v25 = vld [vmem:[%s0 + $0x58] sm:$0xff]
  %v26 = vld [vmem:[%s0 + $0x60] sm:$0xff]
  %v27 = vld [vmem:[%s0 + $0x68] sm:$0xff]
  %v28 = vld [vmem:[%s0 + $0x70] sm:$0xff]
  %v29 = vld [vmem:[%s0 + $0x78] sm:$0xff]
  %v30 = vld [vmem:[%s0 + $0x80] sm:$0xff]
  %v31 = vld [vmem:[%s0 + $0x88] sm:$0xff]
  %v32 = vld [vmem:[%s0 + $0x90] sm:$0xff]
  %v33 = vld [vmem:[%s0 + $0x98] sm:$0xff]
  %v34 = vld [vmem:[%s0 + $0xa0] sm:$0xff]
  %v35 = vld [vmem:[%s0 + $0xa8] sm:$0xff]
  %v36 = vld [vmem:[%s0 + $0xb0] sm:$0xff]
  %v37 = vld [vmem:[%s0 + $0xb8] sm:$0xff]
  %v38 = vld [vmem:[%s0 + $0xc0] sm:$0xff]
  %v39 = vld [vmem:[%s0 + $0xc8] sm:$0xff]
  %v40 = vld [vmem:[%s0 + $0xd0] sm:$0xff]
  %v41 = vld [vmem:[%s0 + $0xd8] sm:$0xff]
  %v42 = vld [vmem:[%s0 + $0xe0] sm:$0xff]
  %v43 = vld [vmem:[%s0 + $0xe8] sm:$0xff]
  %v44 = vld [vmem:[%s0 + $0xf0] sm:$0xff]
  %v45 = vld [vmem:[%s0 + $0xf8] sm:$0xff]
  %v46 = vld [vmem:[%s0 + $0x100] sm:$0xff]
  %v47 = vld [vmem:[%s0 + $0x108] sm:$0xff]
  %v48 = vld [vmem:[%s0 + $0x110] sm:$0xff]
  %v49 = vld [vmem:[%s0 + $0x118] sm:$0xff]
  %v50 = vld [vmem:[%s0 + $0x120] sm:$0xff]
  %v51 = vld [vmem:[%s0 + $0x128] sm:$0xff]
  %v52 = vld [vmem:[%s0 + $0x130] sm:$0xff]
  %v53 = vld [vmem:[%s0 + $0x138] sm:$0xff]
  %v54 = vld [vmem:[%s0 + $0x140] sm:$0xff]
  %v55 = vld [vmem:[%s0 + $0x148] sm:$0xff]
  %v56 = vld [vmem:[%s0 + $0x150] sm:$0xff]
  %v57 = vld [vmem:[%s0 + $0x158] sm:$0xff]
  %v58 = vld [vmem:[%s0 + $0x160] sm:$0xff]
  %v59 = vld [vmem:[%s0 + $0x168] sm:$0xff]
  %v60 = vld [vmem:[%s0 + $0x170] sm:$0xff]
  %v61 = vld [vmem:[%s0 + $0x178] sm:$0xff]
  %v62 = vld [vmem:[%s0 + $0x180] sm:$0xff]
  %v63 = vld [vmem:[%s0 + $0x188] sm:$0xff]
  %v64 = vld [vmem:[%s0 + $0x190] sm:$0xff]
  %v65 = vld [vmem:[%s0 + $0x198] sm:$0xff]
  %v66 = vld [vmem:[%s0 + $0x1a0] sm:$0xff]
  %v67 = vld [vmem:[%s0 + $0x1a8] sm:$0xff]
  %v68 = vld [vmem:[%s0 + $0x1b0] sm:$0xff]
  %v69 = vld [vmem:[%s0 + $0x1b8] sm:$0xff]
  %v70 = vld [vmem:[%s0 + $0x1c0] sm:$0xff]
  %v71 = vld [vmem:[%s0 + $0x1c8] sm:$0xff]
  %v72 = vld [vmem:[%s0 + $0x1d0] sm:$0xff]
  %v73 = vld [vmem:[%s0 + $0x1d8] sm:$0xff]
  %v74 = vld [vmem:[%s0 + $0x1e0] sm:$0xff]
  %v75 = vld [vmem:[%s0 + $0x1e8] sm:$0xff]
  %v76 = vld [vmem:[%s0 + $0x1f0] sm:$0xff]
  %v77 = vld [vmem:[%s0 + $0x1f8] sm:$0xff]
  %v78 = vld [vmem:[%s0 + $0x200] sm:$0xff]
  %v79 = vld [vmem:[%s0 + $0x208] sm:$0xff]
  %v80 = vld [vmem:[%s0 + $0x210] sm:$0xff]
  %v81 = vld [vmem:[%s0 + $0x218] sm:$0xff]
  %v82 = vld [vmem:[%s0 + $0x220] sm:$0xff]
  %v83 = vld [vmem:[%s0 + $0x228] sm:$0xff]
  %v84 = vld [vmem:[%s0 + $0x230] sm:$0xff]
  %v85 = vld [vmem:[%s0 + $0x238] sm:$0xff]
  %v86 = vld [vmem:[%s0 + $0x240] sm:$0xff]
  %v87 = vld [vmem:[%s0 + $0x248] sm:$0xff]
  %v88 = vld [vmem:[%s0 + $0x250] sm:$0xff]
  %v89 = vld [vmem:[%s0 + $0x258] sm:$0xff]
  %v90 = vld [vmem:[%s0 + $0x260] sm:$0xff]
  %v91 = vld [vmem:[%s0 + $0x268] sm:$0xff]
  %v92 = vld [vmem:[%s0 + $0x270] sm:$0xff]
  %v93 = vld [vmem:[%s0 + $0x278] sm:$0xff]
  %v94 = vld [vmem:[%s0 + $0x280] sm:$0xff]
  %v95 = vld [vmem:[%s0 + $0x288] sm:$0xff]
  %v96 = vld [vmem:[%s0 + $0x290] sm:$0xff]
  %v97 = vld [vmem:[%s0 + $0x298] sm:$0xff]
  %v98 = vld [vmem:[%s0 + $0x2a0] sm:$0x3]
  %v99 = vld [vmem:[%s0 + $0x2a8] sm:$0x3]
  %v100 = vld [vmem:[%s0 + $0x2b0] sm:$0x3]
  %v101 = vld [vmem:[%s0 + $0x2b8] sm:$0x3]
  %v102 = vld [vmem:[%s0 + $0x2c0] sm:$0x3]
  %v103 = vld [vmem:[%s0 + $0x2c8] sm:$0x3]
  %v104 = vld [vmem:[%s0 + $0x2d0] sm:$0x3]
  %v105 = vld [vmem:[%s1] sm:$0xff]
  %v106 = vld [vmem:[%s1 + $0x8] sm:$0xff]
  %v107 = vld [vmem:[%s1 + $0x10] sm:$0xff]
  %v108 = vld [vmem:[%s1 + $0x18] sm:$0xff]
  %v109 = vld [vmem:[%s1 + $0x20] sm:$0xff]
  %v110 = vld [vmem:[%s1 + $0x28] sm:$0xff]
  %v111 = vld [vmem:[%s1 + $0x30] sm:$0xff]
  %v112 = vld [vmem:[%s1 + $0x38] sm:$0xff]
  %v113 = vld [vmem:[%s1 + $0x40] sm:$0xff]
  %v114 = vld [vmem:[%s1 + $0x48] sm:$0xff]
  %v115 = vld [vmem:[%s1 + $0x50] sm:$0xff]
  %v116 = vld [vmem:[%s1 + $0x58] sm:$0xff]
  %v117 = vld [vmem:[%s1 + $0x60] sm:$0xff]
  %v118 = vld [vmem:[%s1 + $0x68] sm:$0xff]
  %v119 = vld [vmem:[%s1 + $0x70] sm:$0xff]
  %v120 = vld [vmem:[%s1 + $0x78] sm:$0xff]
  %v121 = vld [vmem:[%s1 + $0x80] sm:$0xff]
  %v122 = vld [vmem:[%s1 + $0x88] sm:$0xff]
  %v123 = vld [vmem:[%s1 + $0x90] sm:$0xff]
  %v124 = vld [vmem:[%s1 + $0x98] sm:$0xff]
  %v125 = vld [vmem:[%s1 + $0xa0] sm:$0xff]
  %v126 = vld [vmem:[%s1 + $0xa8] sm:$0xff]
  %v127 = vld [vmem:[%s1 + $0xb0] sm:$0xff]
  %v128 = vld [vmem:[%s1 + $0xb8] sm:$0xff]
  %v129 = vld [vmem:[%s1 + $0xc0] sm:$0xff]
  %v130 = vld [vmem:[%s1 + $0xc8] sm:$0xff]
  %v131 = vld [vmem:[%s1 + $0xd0] sm:$0xff]
  %v132 = vld [vmem:[%s1 + $0xd8] sm:$0xff]
  %v133 = vld [vmem:[%s1 + $0xe0] sm:$0xff]
  %v134 = vld [vmem:[%s1 + $0xe8] sm:$0xff]
  %v135 = vld [vmem:[%s1 + $0xf0] sm:$0xff]
  %v136 = vld [vmem:[%s1 + $0xf8] sm:$0xff]
  %v137 = vld [vmem:[%s1 + $0x100] sm:$0xff]
  %v138 = vld [vmem:[%s1 + $0x108] sm:$0xff]
  %v139 = vld [vmem:[%s1 + $0x110] sm:$0xff]
  %v140 = vld [vmem:[%s1 + $0x118] sm:$0xff]
  %v141 = vld [vmem:[%s1 + $0x120] sm:$0xff]
  %v142 = vld [vmem:[%s1 + $0x128] sm:$0xff]
  %v143 = vld [vmem:[%s1 + $0x130] sm:$0xff]
  %v144 = vld [vmem:[%s1 + $0x138] sm:$0xff]
  %v145 = vld [vmem:[%s1 + $0x140] sm:$0xff]
  %v146 = vld [vmem:[%s1 + $0x148] sm:$0xff]
  %v147 = vld [vmem:[%s1 + $0x150] sm:$0xff]
  %v148 = vld [vmem:[%s1 + $0x158] sm:$0xff]
  %v149 = vld [vmem:[%s1 + $0x160] sm:$0xff]
  %v150 = vld [vmem:[%s1 + $0x168] sm:$0xff]
  %v151 = vld [vmem:[%s1 + $0x170] sm:$0xff]
  %v152 = vld [vmem:[%s1 + $0x178] sm:$0xff]
  %v153 = vld [vmem:[%s1 + $0x180] sm:$0xff]
  %v154 = vld [vmem:[%s1 + $0x188] sm:$0xff]
  %v155 = vld [vmem:[%s1 + $0x190] sm:$0xff]
  %v156 = vld [vmem:[%s1 + $0x198] sm:$0xff]
  %v157 = vld [vmem:[%s1 + $0x1a0] sm:$0xff]
  %v158 = vld [vmem:[%s1 + $0x1a8] sm:$0xff]
  %v159 = vld [vmem:[%s1 + $0x1b0] sm:$0xff]
  %v160 = vld [vmem:[%s1 + $0x1b8] sm:$0xff]
  %v161 = vld [vmem:[%s1 + $0x1c0] sm:$0xff]
  %v162 = vld [vmem:[%s1 + $0x1c8] sm:$0xff]
  %v163 = vld [vmem:[%s1 + $0x1d0] sm:$0xff]
  %v164 = vld [vmem:[%s1 + $0x1d8] sm:$0xff]
  %v165 = vld [vmem:[%s1 + $0x1e0] sm:$0xff]
  %v166 = vld [vmem:[%s1 + $0x1e8] sm:$0xff]
  %v167 = vld [vmem:[%s1 + $0x1f0] sm:$0xff]
  %v168 = vld [vmem:[%s1 + $0x1f8] sm:$0xff]
  %v169 = vld [vmem:[%s1 + $0x200] sm:$0xff]
  %v170 = vld [vmem:[%s1 + $0x208] sm:$0xff]
  %v171 = vld [vmem:[%s1 + $0x210] sm:$0xff]
  %v172 = vld [vmem:[%s1 + $0x218] sm:$0xff]
  %v173 = vld [vmem:[%s1 + $0x220] sm:$0xff]
  %v174 = vld [vmem:[%s1 + $0x228] sm:$0xff]
  %v175 = vld [vmem:[%s1 + $0x230] sm:$0xff]
  %v176 = vld [vmem:[%s1 + $0x238] sm:$0xff]
  %v177 = vld [vmem:[%s1 + $0x240] sm:$0xff]
  %v178 = vld [vmem:[%s1 + $0x248] sm:$0xff]
  %v179 = vld [vmem:[%s1 + $0x250] sm:$0xff]
  %v180 = vld [vmem:[%s1 + $0x258] sm:$0xff]
  %v181 = vld [vmem:[%s1 + $0x260] sm:$0xff]
  %v182 = vld [vmem:[%s1 + $0x268] sm:$0xff]
  %v183 = vld [vmem:[%s1 + $0x270] sm:$0xff]
  %v184 = vld [vmem:[%s1 + $0x278] sm:$0xff]
  %v185 = vld [vmem:[%s1 + $0x280] sm:$0xff]
  %v186 = vld [vmem:[%s1 + $0x288] sm:$0xff]
  %v187 = vld [vmem:[%s1 + $0x290] sm:$0xff]
  %v188 = vld [vmem:[%s1 + $0x298] sm:$0xff]
  %v189 = vld [vmem:[%s1 + $0x2a0] sm:$0xff]
  %v190 = vld [vmem:[%s1 + $0x2a8] sm:$0xff]
  %v191 = vld [vmem:[%s1 + $0x2b0] sm:$0xff]
  %v192 = vld [vmem:[%s1 + $0x2b8] sm:$0xff]
  %v193 = vld [vmem:[%s1 + $0x2c0] sm:$0xff]
  %v194 = vld [vmem:[%s1 + $0x2c8] sm:$0xff]
  %v195 = vld [vmem:[%s1 + $0x2d0] sm:$0xff]
  %v196 = vld [vmem:[%s1 + $0x2d8] sm:$0xff]
  %v197 = vld [vmem:[%s1 + $0x2e0] sm:$0xff]
  %v198 = vld [vmem:[%s1 + $0x2e8] sm:$0xff]
  %v199 = vld [vmem:[%s1 + $0x2f0] sm:$0xff]
  %v200 = vld [vmem:[%s1 + $0x2f8] sm:$0xff]
  %v201 = vld [vmem:[%s1 + $0x300] sm:$0xff]
  %v202 = vld [vmem:[%s1 + $0x308] sm:$0xff]
  %v203 = vld [vmem:[%s1 + $0x310] sm:$0xff]
  %v204 = vld [vmem:[%s1 + $0x318] sm:$0xff]
  %v205 = vld [vmem:[%s2] sm:$0x1]
  %v207 = vlaneseq
  %v208 = vshrl.u32 %v207, 7
  %v209 = vsub.s32 0, %v208
  %v210 = vrot.slane %v205, %v209
  %vm212 = vcmask 261120
  %v214 = vsel %vm212, %v20, 0
  %v217 = vsel %vm212, %v27, 0
  %v220 = vsel %vm212, %v34, 0
  %v223 = vsel %vm212, %v41, 0
  %v226 = vsel %vm212, %v48, 0
  %v229 = vsel %vm212, %v55, 0
  %v232 = vsel %vm212, %v62, 0
  %v235 = vsel %vm212, %v69, 0
  %v238 = vsel %vm212, %v76, 0
  %v241 = vsel %vm212, %v83, 0
  %v244 = vsel %vm212, %v90, 0
  %v247 = vsel %vm212, %v97, 0
  %v250 = vsel %vm212, %v104, 0
  %252 = vmatprep.subr.mxu0 0.0
  %253 = vmatpush1.msra.mxu0 %v120
  %254 = vmatprep.subr.mxu0 0.0
  %255 = vmatpush1.msra.mxu0 %v119
  %256 = vmatprep.subr.mxu0 0.0
  %257 = vmatpush1.msra.mxu0 %v118
  %258 = vmatprep.subr.mxu0 0.0
  %259 = vmatpush1.msra.mxu0 %v117
  %260 = vmatprep.subr.mxu0 0.0
  %261 = vmatpush1.msra.mxu0 %v116
  %262 = vmatprep.subr.mxu0 0.0
  %263 = vmatpush1.msra.mxu0 %v115
  %264 = vmatprep.subr.mxu0 0.0
  %265 = vmatpush1.msra.mxu0 %v114
  %266 = vmatprep.subr.mxu0 0.0
  %267 = vmatpush1.msra.mxu0 %v113
  %268 = vmatprep.subr.mxu0 0.0
  %269 = vmatpush1.msra.mxu0 %v112
  %270 = vmatprep.subr.mxu0 0.0
  %271 = vmatpush1.msra.mxu0 %v111
  %272 = vmatprep.subr.mxu0 0.0
  %273 = vmatpush1.msra.mxu0 %v110
  %274 = vmatprep.subr.mxu0 0.0
  %275 = vmatpush1.msra.mxu0 %v109
  %276 = vmatprep.subr.mxu0 0.0
  %277 = vmatpush1.msra.mxu0 %v108
  %278 = vmatprep.subr.mxu0 0.0
  %279 = vmatpush1.msra.mxu0 %v107
  %280 = vmatprep.subr.mxu0 0.0
  %281 = vmatpush1.msra.mxu0 %v106
  %282 = vmatprep.subr.mxu0 0.0
  %283 = vmatpush1.msra.mxu0 %v105
  %284 = vmatprep.subr.mxu0 0.0
  %285 = vmatpush2.msra.mxu0 %v136
  %286 = vmatprep.subr.mxu0 0.0
  %287 = vmatpush2.msra.mxu0 %v135
  %288 = vmatprep.subr.mxu0 0.0
  %289 = vmatpush2.msra.mxu0 %v134
  %290 = vmatprep.subr.mxu0 0.0
  %291 = vmatpush2.msra.mxu0 %v133
  %292 = vmatprep.subr.mxu0 0.0
  %293 = vmatpush2.msra.mxu0 %v132
  %294 = vmatprep.subr.mxu0 0.0
  %295 = vmatpush2.msra.mxu0 %v131
  %296 = vmatprep.subr.mxu0 0.0
  %297 = vmatpush2.msra.mxu0 %v130
  %298 = vmatprep.subr.mxu0 0.0
  %299 = vmatpush2.msra.mxu0 %v129
  %300 = vmatprep.subr.mxu0 0.0
  %301 = vmatpush2.msra.mxu0 %v128
  %302 = vmatprep.subr.mxu0 0.0
  %303 = vmatpush2.msra.mxu0 %v127
  %304 = vmatprep.subr.mxu0 0.0
  %305 = vmatpush2.msra.mxu0 %v126
  %306 = vmatprep.subr.mxu0 0.0
  %307 = vmatpush2.msra.mxu0 %v125
  %308 = vmatprep.subr.mxu0 0.0
  %309 = vmatpush2.msra.mxu0 %v124
  %310 = vmatprep.subr.mxu0 0.0
  %311 = vmatpush2.msra.mxu0 %v123
  %312 = vmatprep.subr.mxu0 0.0
  %313 = vmatpush2.msra.mxu0 %v122
  %314 = vmatprep.subr.mxu0 0.0
  %315 = vmatpush2.msra.mxu0 %v121
  %316 = vmatprep.mubr.f32.mxu0 %v15
  %317 = vmatmul.mubr.f32.gmra.mxu0 %v14
  %v318 = vpop.f32.mrf.mxu0
  %v319 = vadd.f32 %v210, %v318
  %v320 = vpop.f32.mrf.mxu0
  %321 = vmatprep.mubr.f32.mxu0 %v22
  %322 = vmatmul.mubr.f32.gmra.mxu0 %v21
  %v323 = vpop.f32.mrf.mxu0
  %v324 = vadd.f32 %v210, %v323
  %v325 = vpop.f32.mrf.mxu0
  %326 = vmatprep.mubr.f32.mxu0 %v29
  %327 = vmatmul.mubr.f32.gmra.mxu0 %v28
  %v328 = vpop.f32.mrf.mxu0
  %v329 = vadd.f32 %v210, %v328
  %v330 = vpop.f32.mrf.mxu0
  %331 = vmatprep.mubr.f32.mxu0 %v36
  %332 = vmatmul.mubr.f32.gmra.mxu0 %v35
  %v333 = vpop.f32.mrf.mxu0
  %v334 = vadd.f32 %v210, %v333
  %v335 = vpop.f32.mrf.mxu0
  %336 = vmatprep.mubr.f32.mxu0 %v43
  %337 = vmatmul.mubr.f32.gmra.mxu0 %v42
  %v338 = vpop.f32.mrf.mxu0
  %v339 = vadd.f32 %v210, %v338
  %v340 = vpop.f32.mrf.mxu0
  %341 = vmatprep.mubr.f32.mxu0 %v50
  %342 = vmatmul.mubr.f32.gmra.mxu0 %v49
  %v343 = vpop.f32.mrf.mxu0
  %v344 = vadd.f32 %v210, %v343
  %v345 = vpop.f32.mrf.mxu0
  %346 = vmatprep.mubr.f32.mxu0 %v57
  %347 = vmatmul.mubr.f32.gmra.mxu0 %v56
  %v348 = vpop.f32.mrf.mxu0
  %v349 = vadd.f32 %v210, %v348
  %v350 = vpop.f32.mrf.mxu0
  %351 = vmatprep.mubr.f32.mxu0 %v64
  %352 = vmatmul.mubr.f32.gmra.mxu0 %v63
  %v353 = vpop.f32.mrf.mxu0
  %v354 = vadd.f32 %v210, %v353
  %v355 = vpop.f32.mrf.mxu0
  %356 = vmatprep.mubr.f32.mxu0 %v71
  %357 = vmatmul.mubr.f32.gmra.mxu0 %v70
  %v358 = vpop.f32.mrf.mxu0
  %v359 = vadd.f32 %v210, %v358
  %v360 = vpop.f32.mrf.mxu0
  %361 = vmatprep.mubr.f32.mxu0 %v78
  %362 = vmatmul.mubr.f32.gmra.mxu0 %v77
  %v363 = vpop.f32.mrf.mxu0
  %v364 = vadd.f32 %v210, %v363
  %v365 = vpop.f32.mrf.mxu0
  %366 = vmatprep.mubr.f32.mxu0 %v85
  %367 = vmatmul.mubr.f32.gmra.mxu0 %v84
  %v368 = vpop.f32.mrf.mxu0
  %v369 = vadd.f32 %v210, %v368
  %v370 = vpop.f32.mrf.mxu0
  %371 = vmatprep.mubr.f32.mxu0 %v92
  %372 = vmatmul.mubr.f32.gmra.mxu0 %v91
  %v373 = vpop.f32.mrf.mxu0
  %v374 = vadd.f32 %v210, %v373
  %v375 = vpop.f32.mrf.mxu0
  %376 = vmatprep.mubr.f32.mxu0 %v99
  %377 = vmatmul.mubr.f32.gmra.mxu0 %v98
  %v378 = vpop.f32.mrf.mxu0
  %v379 = vadd.f32 %v210, %v378
  %v380 = vpop.f32.mrf.mxu0
  %381 = vdwg.mxu0
  %382 = vmatprep.subr.mxu0 0.0
  %383 = vmatpush1.msra.mxu0 %v152
  %384 = vmatprep.subr.mxu0 0.0
  %385 = vmatpush1.msra.mxu0 %v151
  %386 = vmatprep.subr.mxu0 0.0
  %387 = vmatpush1.msra.mxu0 %v150
  %388 = vmatprep.subr.mxu0 0.0
  %389 = vmatpush1.msra.mxu0 %v149
  %390 = vmatprep.subr.mxu0 0.0
  %391 = vmatpush1.msra.mxu0 %v148
  %392 = vmatprep.subr.mxu0 0.0
  %393 = vmatpush1.msra.mxu0 %v147
  %394 = vmatprep.subr.mxu0 0.0
  %395 = vmatpush1.msra.mxu0 %v146
  %396 = vmatprep.subr.mxu0 0.0
  %397 = vmatpush1.msra.mxu0 %v145
  %398 = vmatprep.subr.mxu0 0.0
  %399 = vmatpush1.msra.mxu0 %v144
  %400 = vmatprep.subr.mxu0 0.0
  %401 = vmatpush1.msra.mxu0 %v143
  %402 = vmatprep.subr.mxu0 0.0
  %403 = vmatpush1.msra.mxu0 %v142
  %404 = vmatprep.subr.mxu0 0.0
  %405 = vmatpush1.msra.mxu0 %v141
  %406 = vmatprep.subr.mxu0 0.0
  %407 = vmatpush1.msra.mxu0 %v140
  %408 = vmatprep.subr.mxu0 0.0
  %409 = vmatpush1.msra.mxu0 %v139
  %410 = vmatprep.subr.mxu0 0.0
  %411 = vmatpush1.msra.mxu0 %v138
  %412 = vmatprep.subr.mxu0 0.0
  %413 = vmatpush1.msra.mxu0 %v137
  %414 = vmatprep.subr.mxu0 0.0
  %415 = vmatpush2.msra.mxu0 %v168
  %416 = vmatprep.subr.mxu0 0.0
  %417 = vmatpush2.msra.mxu0 %v167
  %418 = vmatprep.subr.mxu0 0.0
  %419 = vmatpush2.msra.mxu0 %v166
  %420 = vmatprep.subr.mxu0 0.0
  %421 = vmatpush2.msra.mxu0 %v165
  %422 = vmatprep.subr.mxu0 0.0
  %423 = vmatpush2.msra.mxu0 %v164
  %424 = vmatprep.subr.mxu0 0.0
  %425 = vmatpush2.msra.mxu0 %v163
  %426 = vmatprep.subr.mxu0 0.0
  %427 = vmatpush2.msra.mxu0 %v162
  %428 = vmatprep.subr.mxu0 0.0
  %429 = vmatpush2.msra.mxu0 %v161
  %430 = vmatprep.subr.mxu0 0.0
  %431 = vmatpush2.msra.mxu0 %v160
  %432 = vmatprep.subr.mxu0 0.0
  %433 = vmatpush2.msra.mxu0 %v159
  %434 = vmatprep.subr.mxu0 0.0
  %435 = vmatpush2.msra.mxu0 %v158
  %436 = vmatprep.subr.mxu0 0.0
  %437 = vmatpush2.msra.mxu0 %v157
  %438 = vmatprep.subr.mxu0 0.0
  %439 = vmatpush2.msra.mxu0 %v156
  %440 = vmatprep.subr.mxu0 0.0
  %441 = vmatpush2.msra.mxu0 %v155
  %442 = vmatprep.subr.mxu0 0.0
  %443 = vmatpush2.msra.mxu0 %v154
  %444 = vmatprep.subr.mxu0 0.0
  %445 = vmatpush2.msra.mxu0 %v153
  %446 = vmatprep.mubr.f32.mxu0 %v17
  %447 = vmatmul.mubr.f32.gmra.mxu0 %v16
  %v448 = vpop.f32.mrf.mxu0
  %v449 = vadd.f32 %v319, %v448
  %v450 = vpop.f32.mrf.mxu0
  %451 = vmatprep.mubr.f32.mxu0 %v24
  %452 = vmatmul.mubr.f32.gmra.mxu0 %v23
  %v453 = vpop.f32.mrf.mxu0
  %v454 = vadd.f32 %v324, %v453
  %v455 = vpop.f32.mrf.mxu0
  %456 = vmatprep.mubr.f32.mxu0 %v31
  %457 = vmatmul.mubr.f32.gmra.mxu0 %v30
  %v458 = vpop.f32.mrf.mxu0
  %v459 = vadd.f32 %v329, %v458
  %v460 = vpop.f32.mrf.mxu0
  %461 = vmatprep.mubr.f32.mxu0 %v38
  %462 = vmatmul.mubr.f32.gmra.mxu0 %v37
  %v463 = vpop.f32.mrf.mxu0
  %v464 = vadd.f32 %v334, %v463
  %v465 = vpop.f32.mrf.mxu0
  %466 = vmatprep.mubr.f32.mxu0 %v45
  %467 = vmatmul.mubr.f32.gmra.mxu0 %v44
  %v468 = vpop.f32.mrf.mxu0
  %v469 = vadd.f32 %v339, %v468
  %v470 = vpop.f32.mrf.mxu0
  %471 = vmatprep.mubr.f32.mxu0 %v52
  %472 = vmatmul.mubr.f32.gmra.mxu0 %v51
  %v473 = vpop.f32.mrf.mxu0
  %v474 = vadd.f32 %v344, %v473
  %v475 = vpop.f32.mrf.mxu0
  %476 = vmatprep.mubr.f32.mxu0 %v59
  %477 = vmatmul.mubr.f32.gmra.mxu0 %v58
  %v478 = vpop.f32.mrf.mxu0
  %v479 = vadd.f32 %v349, %v478
  %v480 = vpop.f32.mrf.mxu0
  %481 = vmatprep.mubr.f32.mxu0 %v66
  %482 = vmatmul.mubr.f32.gmra.mxu0 %v65
  %v483 = vpop.f32.mrf.mxu0
  %v484 = vadd.f32 %v354, %v483
  %v485 = vpop.f32.mrf.mxu0
  %486 = vmatprep.mubr.f32.mxu0 %v73
  %487 = vmatmul.mubr.f32.gmra.mxu0 %v72
  %v488 = vpop.f32.mrf.mxu0
  %v489 = vadd.f32 %v359, %v488
  %v490 = vpop.f32.mrf.mxu0
  %491 = vmatprep.mubr.f32.mxu0 %v80
  %492 = vmatmul.mubr.f32.gmra.mxu0 %v79
  %v493 = vpop.f32.mrf.mxu0
  %v494 = vadd.f32 %v364, %v493
  %v495 = vpop.f32.mrf.mxu0
  %496 = vmatprep.mubr.f32.mxu0 %v87
  %497 = vmatmul.mubr.f32.gmra.mxu0 %v86
  %v498 = vpop.f32.mrf.mxu0
  %v499 = vadd.f32 %v369, %v498
  %v500 = vpop.f32.mrf.mxu0
  %501 = vmatprep.mubr.f32.mxu0 %v94
  %502 = vmatmul.mubr.f32.gmra.mxu0 %v93
  %v503 = vpop.f32.mrf.mxu0
  %v504 = vadd.f32 %v374, %v503
  %v505 = vpop.f32.mrf.mxu0
  %506 = vmatprep.mubr.f32.mxu0 %v101
  %507 = vmatmul.mubr.f32.gmra.mxu0 %v100
  %v508 = vpop.f32.mrf.mxu0
  %v509 = vadd.f32 %v379, %v508
  %v510 = vpop.f32.mrf.mxu0
  %511 = vdwg.mxu0
  %512 = vmatprep.subr.mxu0 0.0
  %513 = vmatpush1.msra.mxu0 %v184
  %514 = vmatprep.subr.mxu0 0.0
  %515 = vmatpush1.msra.mxu0 %v183
  %516 = vmatprep.subr.mxu0 0.0
  %517 = vmatpush1.msra.mxu0 %v182
  %518 = vmatprep.subr.mxu0 0.0
  %519 = vmatpush1.msra.mxu0 %v181
  %520 = vmatprep.subr.mxu0 0.0
  %521 = vmatpush1.msra.mxu0 %v180
  %522 = vmatprep.subr.mxu0 0.0
  %523 = vmatpush1.msra.mxu0 %v179
  %524 = vmatprep.subr.mxu0 0.0
  %525 = vmatpush1.msra.mxu0 %v178
  %526 = vmatprep.subr.mxu0 0.0
  %527 = vmatpush1.msra.mxu0 %v177
  %528 = vmatprep.subr.mxu0 0.0
  %529 = vmatpush1.msra.mxu0 %v176
  %530 = vmatprep.subr.mxu0 0.0
  %531 = vmatpush1.msra.mxu0 %v175
  %532 = vmatprep.subr.mxu0 0.0
  %533 = vmatpush1.msra.mxu0 %v174
  %534 = vmatprep.subr.mxu0 0.0
  %535 = vmatpush1.msra.mxu0 %v173
  %536 = vmatprep.subr.mxu0 0.0
  %537 = vmatpush1.msra.mxu0 %v172
  %538 = vmatprep.subr.mxu0 0.0
  %539 = vmatpush1.msra.mxu0 %v171
  %540 = vmatprep.subr.mxu0 0.0
  %541 = vmatpush1.msra.mxu0 %v170
  %542 = vmatprep.subr.mxu0 0.0
  %543 = vmatpush1.msra.mxu0 %v169
  %544 = vmatprep.subr.mxu0 0.0
  %545 = vmatpush2.msra.mxu0 %v200
  %546 = vmatprep.subr.mxu0 0.0
  %547 = vmatpush2.msra.mxu0 %v199
  %548 = vmatprep.subr.mxu0 0.0
  %549 = vmatpush2.msra.mxu0 %v198
  %550 = vmatprep.subr.mxu0 0.0
  %551 = vmatpush2.msra.mxu0 %v197
  %552 = vmatprep.subr.mxu0 0.0
  %553 = vmatpush2.msra.mxu0 %v196
  %554 = vmatprep.subr.mxu0 0.0
  %555 = vmatpush2.msra.mxu0 %v195
  %556 = vmatprep.subr.mxu0 0.0
  %557 = vmatpush2.msra.mxu0 %v194
  %558 = vmatprep.subr.mxu0 0.0
  %559 = vmatpush2.msra.mxu0 %v193
  %560 = vmatprep.subr.mxu0 0.0
  %561 = vmatpush2.msra.mxu0 %v192
  %562 = vmatprep.subr.mxu0 0.0
  %563 = vmatpush2.msra.mxu0 %v191
  %564 = vmatprep.subr.mxu0 0.0
  %565 = vmatpush2.msra.mxu0 %v190
  %566 = vmatprep.subr.mxu0 0.0
  %567 = vmatpush2.msra.mxu0 %v189
  %568 = vmatprep.subr.mxu0 0.0
  %569 = vmatpush2.msra.mxu0 %v188
  %570 = vmatprep.subr.mxu0 0.0
  %571 = vmatpush2.msra.mxu0 %v187
  %572 = vmatprep.subr.mxu0 0.0
  %573 = vmatpush2.msra.mxu0 %v186
  %574 = vmatprep.subr.mxu0 0.0
  %575 = vmatpush2.msra.mxu0 %v185
  %576 = vmatprep.mubr.f32.mxu0 %v19
  %577 = vmatmul.mubr.f32.gmra.mxu0 %v18
  %v578 = vpop.f32.mrf.mxu0
  %v579 = vadd.f32 %v449, %v578
  %v580 = vpop.f32.mrf.mxu0
  %581 = vmatprep.mubr.f32.mxu0 %v26
  %582 = vmatmul.mubr.f32.gmra.mxu0 %v25
  %v583 = vpop.f32.mrf.mxu0
  %v584 = vadd.f32 %v454, %v583
  %v585 = vpop.f32.mrf.mxu0
  %586 = vmatprep.mubr.f32.mxu0 %v33
  %587 = vmatmul.mubr.f32.gmra.mxu0 %v32
  %v588 = vpop.f32.mrf.mxu0
  %v589 = vadd.f32 %v459, %v588
  %v590 = vpop.f32.mrf.mxu0
  %591 = vmatprep.mubr.f32.mxu0 %v40
  %592 = vmatmul.mubr.f32.gmra.mxu0 %v39
  %v593 = vpop.f32.mrf.mxu0
  %v594 = vadd.f32 %v464, %v593
  %v595 = vpop.f32.mrf.mxu0
  %596 = vmatprep.mubr.f32.mxu0 %v47
  %597 = vmatmul.mubr.f32.gmra.mxu0 %v46
  %v598 = vpop.f32.mrf.mxu0
  %v599 = vadd.f32 %v469, %v598
  %v600 = vpop.f32.mrf.mxu0
  %601 = vmatprep.mubr.f32.mxu0 %v54
  %602 = vmatmul.mubr.f32.gmra.mxu0 %v53
  %v603 = vpop.f32.mrf.mxu0
  %v604 = vadd.f32 %v474, %v603
  %v605 = vpop.f32.mrf.mxu0
  %606 = vmatprep.mubr.f32.mxu0 %v61
  %607 = vmatmul.mubr.f32.gmra.mxu0 %v60
  %v608 = vpop.f32.mrf.mxu0
  %v609 = vadd.f32 %v479, %v608
  %v610 = vpop.f32.mrf.mxu0
  %611 = vmatprep.mubr.f32.mxu0 %v68
  %612 = vmatmul.mubr.f32.gmra.mxu0 %v67
  %v613 = vpop.f32.mrf.mxu0
  %v614 = vadd.f32 %v484, %v613
  %v615 = vpop.f32.mrf.mxu0
  %616 = vmatprep.mubr.f32.mxu0 %v75
  %617 = vmatmul.mubr.f32.gmra.mxu0 %v74
  %v618 = vpop.f32.mrf.mxu0
  %v619 = vadd.f32 %v489, %v618
  %v620 = vpop.f32.mrf.mxu0
  %621 = vmatprep.mubr.f32.mxu0 %v82
  %622 = vmatmul.mubr.f32.gmra.mxu0 %v81
  %v623 = vpop.f32.mrf.mxu0
  %v624 = vadd.f32 %v494, %v623
  %v625 = vpop.f32.mrf.mxu0
  %626 = vmatprep.mubr.f32.mxu0 %v89
  %627 = vmatmul.mubr.f32.gmra.mxu0 %v88
  %v628 = vpop.f32.mrf.mxu0
  %v629 = vadd.f32 %v499, %v628
  %v630 = vpop.f32.mrf.mxu0
  %631 = vmatprep.mubr.f32.mxu0 %v96
  %632 = vmatmul.mubr.f32.gmra.mxu0 %v95
  %v633 = vpop.f32.mrf.mxu0
  %v634 = vadd.f32 %v504, %v633
  %v635 = vpop.f32.mrf.mxu0
  %636 = vmatprep.mubr.f32.mxu0 %v103
  %637 = vmatmul.mubr.f32.gmra.mxu0 %v102
  %v638 = vpop.f32.mrf.mxu0
  %v639 = vadd.f32 %v509, %v638
  %v640 = vpop.f32.mrf.mxu0
  %641 = vdwg.mxu0
  %642 = vmatprep.subr.mxu0 0.0
  %643 = vmatpush1.msra.mxu0 0.0
  %644 = vmatprep.subr.mxu0 0.0
  %645 = vmatpush1.msra.mxu0 0.0
  %646 = vmatprep.subr.mxu0 0.0
  %647 = vmatpush1.msra.mxu0 0.0
  %648 = vmatprep.subr.mxu0 0.0
  %649 = vmatpush1.msra.mxu0 0.0
  %650 = vmatprep.subr.mxu0 0.0
  %651 = vmatpush1.msra.mxu0 0.0
  %652 = vmatprep.subr.mxu0 0.0
  %653 = vmatpush1.msra.mxu0 0.0
  %654 = vmatprep.subr.mxu0 0.0
  %655 = vmatpush1.msra.mxu0 0.0
  %656 = vmatprep.subr.mxu0 0.0
  %657 = vmatpush1.msra.mxu0 0.0
  %658 = vmatprep.subr.mxu0 0.0
  %659 = vmatpush1.msra.mxu0 0.0
  %660 = vmatprep.subr.mxu0 0.0
  %661 = vmatpush1.msra.mxu0 0.0
  %662 = vmatprep.subr.mxu0 0.0
  %663 = vmatpush1.msra.mxu0 0.0
  %664 = vmatprep.subr.mxu0 0.0
  %665 = vmatpush1.msra.mxu0 0.0
  %666 = vmatprep.subr.mxu0 0.0
  %667 = vmatpush1.msra.mxu0 %v204
  %668 = vmatprep.subr.mxu0 0.0
  %669 = vmatpush1.msra.mxu0 %v203
  %670 = vmatprep.subr.mxu0 0.0
  %671 = vmatpush1.msra.mxu0 %v202
  %672 = vmatprep.subr.mxu0 0.0
  %673 = vmatpush1.msra.mxu0 %v201
  %674 = vmatprep.subr.mxu0 0.0
  %675 = vmatpush2.msra.mxu0 0.0
  %676 = vmatprep.subr.mxu0 0.0
  %677 = vmatpush2.msra.mxu0 0.0
  %678 = vmatprep.subr.mxu0 0.0
  %679 = vmatpush2.msra.mxu0 0.0
  %680 = vmatprep.subr.mxu0 0.0
  %681 = vmatpush2.msra.mxu0 0.0
  %682 = vmatprep.subr.mxu0 0.0
  %683 = vmatpush2.msra.mxu0 0.0
  %684 = vmatprep.subr.mxu0 0.0
  %685 = vmatpush2.msra.mxu0 0.0
  %686 = vmatprep.subr.mxu0 0.0
  %687 = vmatpush2.msra.mxu0 0.0
  %688 = vmatprep.subr.mxu0 0.0
  %689 = vmatpush2.msra.mxu0 0.0
  %690 = vmatprep.subr.mxu0 0.0
  %691 = vmatpush2.msra.mxu0 0.0
  %692 = vmatprep.subr.mxu0 0.0
  %693 = vmatpush2.msra.mxu0 0.0
  %694 = vmatprep.subr.mxu0 0.0
  %695 = vmatpush2.msra.mxu0 0.0
  %696 = vmatprep.subr.mxu0 0.0
  %697 = vmatpush2.msra.mxu0 0.0
  %698 = vmatprep.subr.mxu0 0.0
  %699 = vmatpush2.msra.mxu0 0.0
  %700 = vmatprep.subr.mxu0 0.0
  %701 = vmatpush2.msra.mxu0 0.0
  %702 = vmatprep.subr.mxu0 0.0
  %703 = vmatpush2.msra.mxu0 0.0
  %704 = vmatprep.subr.mxu0 0.0
  %705 = vmatpush2.msra.mxu0 0.0
  %706 = vmatprep.mubr.f32.mxu0 0.0
  %707 = vmatmul.mubr.f32.gmra.mxu0 %v214
  %v708 = vpop.f32.mrf.mxu0
  %v709 = vadd.f32 %v579, %v708
  %v710 = vpop.f32.mrf.mxu0
  %711 = vmatprep.mubr.f32.mxu0 0.0
  %712 = vmatmul.mubr.f32.gmra.mxu0 %v217
  %v713 = vpop.f32.mrf.mxu0
  %v714 = vadd.f32 %v584, %v713
  %v715 = vpop.f32.mrf.mxu0
  %716 = vmatprep.mubr.f32.mxu0 0.0
  %717 = vmatmul.mubr.f32.gmra.mxu0 %v220
  %v718 = vpop.f32.mrf.mxu0
  %v719 = vadd.f32 %v589, %v718
  %v720 = vpop.f32.mrf.mxu0
  %721 = vmatprep.mubr.f32.mxu0 0.0
  %722 = vmatmul.mubr.f32.gmra.mxu0 %v223
  %v723 = vpop.f32.mrf.mxu0
  %v724 = vadd.f32 %v594, %v723
  %v725 = vpop.f32.mrf.mxu0
  %726 = vmatprep.mubr.f32.mxu0 0.0
  %727 = vmatmul.mubr.f32.gmra.mxu0 %v226
  %v728 = vpop.f32.mrf.mxu0
  %v729 = vadd.f32 %v599, %v728
  %v730 = vpop.f32.mrf.mxu0
  %731 = vmatprep.mubr.f32.mxu0 0.0
  %732 = vmatmul.mubr.f32.gmra.mxu0 %v229
  %v733 = vpop.f32.mrf.mxu0
  %v734 = vadd.f32 %v604, %v733
  %v735 = vpop.f32.mrf.mxu0
  %736 = vmatprep.mubr.f32.mxu0 0.0
  %737 = vmatmul.mubr.f32.gmra.mxu0 %v232
  %v738 = vpop.f32.mrf.mxu0
  %v739 = vadd.f32 %v609, %v738
  %v740 = vpop.f32.mrf.mxu0
  %741 = vmatprep.mubr.f32.mxu0 0.0
  %742 = vmatmul.mubr.f32.gmra.mxu0 %v235
  %v743 = vpop.f32.mrf.mxu0
  %v744 = vadd.f32 %v614, %v743
  %v745 = vpop.f32.mrf.mxu0
  %746 = vmatprep.mubr.f32.mxu0 0.0
  %747 = vmatmul.mubr.f32.gmra.mxu0 %v238
  %v748 = vpop.f32.mrf.mxu0
  %v749 = vadd.f32 %v619, %v748
  %v750 = vpop.f32.mrf.mxu0
  %751 = vmatprep.mubr.f32.mxu0 0.0
  %752 = vmatmul.mubr.f32.gmra.mxu0 %v241
  %v753 = vpop.f32.mrf.mxu0
  %v754 = vadd.f32 %v624, %v753
  %v755 = vpop.f32.mrf.mxu0
  %756 = vmatprep.mubr.f32.mxu0 0.0
  %757 = vmatmul.mubr.f32.gmra.mxu0 %v244
  %v758 = vpop.f32.mrf.mxu0
  %v759 = vadd.f32 %v629, %v758
  %v760 = vpop.f32.mrf.mxu0
  %761 = vmatprep.mubr.f32.mxu0 0.0
  %762 = vmatmul.mubr.f32.gmra.mxu0 %v247
  %v763 = vpop.f32.mrf.mxu0
  %v764 = vadd.f32 %v634, %v763
  %v765 = vpop.f32.mrf.mxu0
  %766 = vmatprep.mubr.f32.mxu0 0.0
  %767 = vmatmul.mubr.f32.gmra.mxu0 %v250
  %v768 = vpop.f32.mrf.mxu0
  %v769 = vadd.f32 %v639, %v768
  %v770 = vpop.f32.mrf.mxu0
  %771 = vdwg.mxu0
  %v772 = vmax.f32 %v709, 0.0
  %v773 = vmax.f32 %v714, 0.0
  %v774 = vmax.f32 %v719, 0.0
  %v775 = vmax.f32 %v724, 0.0
  %v776 = vmax.f32 %v729, 0.0
  %v777 = vmax.f32 %v734, 0.0
  %v778 = vmax.f32 %v739, 0.0
  %v779 = vmax.f32 %v744, 0.0
  %v780 = vmax.f32 %v749, 0.0
  %v781 = vmax.f32 %v754, 0.0
  %v782 = vmax.f32 %v759, 0.0
  %v783 = vmax.f32 %v764, 0.0
  %v784 = vmax.f32 %v769, 0.0
  %vm785 = vcmask 523264
  %786 = vst.msk [vmem:[%s3] sm:$0xff] %vm785, %v772
  %787 = vst.msk [vmem:[%s3 + $0x8] sm:$0xff] %vm785, %v773
  %788 = vst.msk [vmem:[%s3 + $0x10] sm:$0xff] %vm785, %v774
  %789 = vst.msk [vmem:[%s3 + $0x18] sm:$0xff] %vm785, %v775
  %790 = vst.msk [vmem:[%s3 + $0x20] sm:$0xff] %vm785, %v776
  %791 = vst.msk [vmem:[%s3 + $0x28] sm:$0xff] %vm785, %v777
  %792 = vst.msk [vmem:[%s3 + $0x30] sm:$0xff] %vm785, %v778
  %793 = vst.msk [vmem:[%s3 + $0x38] sm:$0xff] %vm785, %v779
  %794 = vst.msk [vmem:[%s3 + $0x40] sm:$0xff] %vm785, %v780
  %795 = vst.msk [vmem:[%s3 + $0x48] sm:$0xff] %vm785, %v781
  %796 = vst.msk [vmem:[%s3 + $0x50] sm:$0xff] %vm785, %v782
  %797 = vst.msk [vmem:[%s3 + $0x58] sm:$0xff] %vm785, %v783
  %vm798 = vcmask 517120
  %799 = vst.msk [vmem:[%s3 + $0x60] sm:$0x3] %vm798, %v784
  // Predicated region
  $region14: #{dqn_forward.4} parent=0 // pred_check
    _
  $region15: #{dqn_forward.4} parent=0 // pred_check_branch
    %801 = sbr.rel (0) target = $region17
  $region16: #{dqn_forward.4} parent=0 // pred_region
    _
  $region17: #{dqn_forward.4} parent=0 // pred_fallthru
    _
  // Predicated region
  $region18: #{dqn_forward.4} parent=0 // pred_check
    _
  $region19: #{dqn_forward.4} parent=0 // pred_check_branch
    %803 = sbr.rel (0) target = $region21
  $region20: #{dqn_forward.4} parent=0 // pred_region
    _
  $region21: #{dqn_forward.4} parent=0 // pred_fallthru
    _

// kernel: dqn_forward.5
$region0: #{dqn_forward.5}
  #allocation0 [shape = 'u32[]', space=smem, size = 0x4, offset = 0x4, fixed_abs, tag = 'smem constant byte address 0x4 - core index']
  #allocation1 [shape = 'u32[144,128]{1,0:T(1,128)}', space=vmem, size = 0x12000, scoped, tag = 'internal scratch']
  %s0 = inlined_call_operand.vmem [shape: f32[2,4,1600], index: 0, kind: input, shape index: {}]
  %s1 = inlined_call_operand.vmem [shape: f32[1600,64], index: 1, kind: input, shape index: {}]
  %s2 = inlined_call_operand.vmem [shape: f32[1,64], index: 2, kind: input, shape index: {}]
  %s3 = inlined_call_operand.vmem [shape: f32[256,4], index: 3, kind: input, shape index: {}]
  %s4 = inlined_call_operand.vmem [shape: f32[1,4], index: 4, kind: input, shape index: {}]
  %s5 = inlined_call_operand.hbm [shape: f32[2,1,4], index: 5, kind: output, shape index: {}]
  %s6 = sld [smem:[#allocation0]]
  $region53: #{dqn_forward.5} parent=0
    _
  %s8 = ssub.s32 1, %s6
  %s9 = scalar_select 0, %s8, %s6
  $region1: #{dqn_forward.5} parent=0
    #allocation2 [shape = 'u8[1024]{0}', space=vmem, size = 0x400, scoped, tag = 'output window, operand 0']
    #allocation3 [shape = 's32[2]{0}', space=sflag, size = 0x8, scoped, tag = 'scoped memory for dqn_forward.5']
    %10 = vsyncpa [#allocation3], 0
    %s11 = scalar_lea.sflag [#allocation3], 1
    %12 = vsyncpa %s11, 0
    loop: start=0, step=1, limit=4
    $region2: #{dqn_forward.5} parent=1 // loop_pre_header
      _
    $region3: #{dqn_forward.5} parent=1 // loop_header
      %s14 = sphi 0, %s18
      %p15 = scmp.ge.s32.totalorder %s14, 4
      %s24 = sphi 0, %s26
      %s27 = sphi 0, %s24
      %s28 = sphi 0, %s27
      %s44 = sphi 0, %s28
      %s48 = sphi 0, %s48
      %s50 = sphi 0, %s48
      %s51 = sphi 0, %s50
      %s65 = sphi 0, %s51
      %s69 = sphi 0, %s69
      %s71 = sphi 0, %s69
      %s72 = sphi 0, %s71
      %s86 = sphi 0, %s72
      %s90 = sphi 0, %s90
      %s92 = sphi 0, %s90
      %s93 = sphi 0, %s92
      %s107 = sphi 0, %s93
      %s111 = sphi 0, %s111
      %s113 = sphi 0, %s111
      %s114 = sphi 0, %s113
      %s128 = sphi 0, %s114
      %s134 = sphi 0, %s136
      %s137 = sphi 0, %s134
      %s138 = sphi 0, %s137
      %s154 = sphi 0, %s138
    $region4: #{dqn_forward.5} parent=1 // loop_header_branch
      %17 = sbr.rel (%p15) target = $region8
    $region5: #{dqn_forward.5} parent=1 // loop_body
      %s19 = ssub.s32 %s14, 1
      %s20 = ssub.s32 %s14, 2
      %s21 = sadd.s32 %s14, 1
      %s22 = ssub.s32 %s14, %s21
      %p23 = scmp.eq.s32.totalorder %s22, 0
      %s25 = sadd.s32 %s24, 1
      %s26 = scalar_select %p23, %s24, %s25
      %p29 = pneg %p23
      %p30 = scmp.eq.s32.totalorder %s14, 1
      %p31 = por %p29, %p30
      %p32 = scmp.ne.s32.totalorder %s24, %s27
      %p33 = scmp.eq.s32.totalorder %s14, 0
      %p34 = por %p32, %p33
      %p35 = scmp.ne.s32.totalorder %s24, %s27
      %p36 = scmp.eq.s32.totalorder %s19, 1
      %p37 = por %p35, %p36
      %p38 = scmp.ne.s32.totalorder %s27, %s28
      %p39 = scmp.eq.s32.totalorder %s19, 0
      %p40 = por %p38, %p39
      %p41 = scmp.ne.s32.totalorder %s27, %s28
      %p42 = scmp.eq.s32.totalorder %s20, 1
      %p43 = por %p41, %p42
      %p45 = scmp.ne.s32.totalorder %s28, %s44
      %p46 = scmp.eq.s32.totalorder %s20, 0
      %p47 = por %p45, %p46
      %s49 = sadd.s32 %s48, 1
      %p52 = scmp.eq.s32.totalorder %s14, 1
      %p53 = scmp.ne.s32.totalorder %s48, %s50
      %p54 = scmp.eq.s32.totalorder %s14, 0
      %p55 = por %p53, %p54
      %p56 = scmp.ne.s32.totalorder %s48, %s50
      %p57 = scmp.eq.s32.totalorder %s19, 1
      %p58 = por %p56, %p57
      %p59 = scmp.ne.s32.totalorder %s50, %s51
      %p60 = scmp.eq.s32.totalorder %s19, 0
      %p61 = por %p59, %p60
      %p62 = scmp.ne.s32.totalorder %s50, %s51
      %p63 = scmp.eq.s32.totalorder %s20, 1
      %p64 = por %p62, %p63
      %p66 = scmp.ne.s32.totalorder %s51, %s65
      %p67 = scmp.eq.s32.totalorder %s20, 0
      %p68 = por %p66, %p67
      %s70 = sadd.s32 %s69, 1
      %p73 = scmp.eq.s32.totalorder %s14, 1
      %p74 = scmp.ne.s32.totalorder %s69, %s71
      %p75 = scmp.eq.s32.totalorder %s14, 0
      %p76 = por %p74, %p75
      %p77 = scmp.ne.s32.totalorder %s69, %s71
      %p78 = scmp.eq.s32.totalorder %s19, 1
      %p79 = por %p77, %p78
      %p80 = scmp.ne.s32.totalorder %s71, %s72
      %p81 = scmp.eq.s32.totalorder %s19, 0
      %p82 = por %p80, %p81
      %p83 = scmp.ne.s32.totalorder %s71, %s72
      %p84 = scmp.eq.s32.totalorder %s20, 1
      %p85 = por %p83, %p84
      %p87 = scmp.ne.s32.totalorder %s72, %s86
      %p88 = scmp.eq.s32.totalorder %s20, 0
      %p89 = por %p87, %p88
      %s91 = sadd.s32 %s90, 1
      %p94 = scmp.eq.s32.totalorder %s14, 1
      %p95 = scmp.ne.s32.totalorder %s90, %s92
      %p96 = scmp.eq.s32.totalorder %s14, 0
      %p97 = por %p95, %p96
      %p98 = scmp.ne.s32.totalorder %s90, %s92
      %p99 = scmp.eq.s32.totalorder %s19, 1
      %p100 = por %p98, %p99
      %p101 = scmp.ne.s32.totalorder %s92, %s93
      %p102 = scmp.eq.s32.totalorder %s19, 0
      %p103 = por %p101, %p102
      %p104 = scmp.ne.s32.totalorder %s92, %s93
      %p105 = scmp.eq.s32.totalorder %s20, 1
      %p106 = por %p104, %p105
      %p108 = scmp.ne.s32.totalorder %s93, %s107
      %p109 = scmp.eq.s32.totalorder %s20, 0
      %p110 = por %p108, %p109
      %s112 = sadd.s32 %s111, 1
      %p115 = scmp.eq.s32.totalorder %s14, 1
      %p116 = scmp.ne.s32.totalorder %s111, %s113
      %p117 = scmp.eq.s32.totalorder %s14, 0
      %p118 = por %p116, %p117
      %p119 = scmp.ne.s32.totalorder %s111, %s113
      %p120 = scmp.eq.s32.totalorder %s19, 1
      %p121 = por %p119, %p120
      %p122 = scmp.ne.s32.totalorder %s113, %s114
      %p123 = scmp.eq.s32.totalorder %s19, 0
      %p124 = por %p122, %p123
      %p125 = scmp.ne.s32.totalorder %s113, %s114
      %p126 = scmp.eq.s32.totalorder %s20, 1
      %p127 = por %p125, %p126
      %p129 = scmp.ne.s32.totalorder %s114, %s128
      %p130 = scmp.eq.s32.totalorder %s20, 0
      %p131 = por %p129, %p130
      %s132 = ssub.s32 %s14, %s21
      %p133 = scmp.eq.s32.totalorder %s132, 0
      %s135 = sadd.s32 %s134, 1
      %s136 = scalar_select %p133, %s134, %s135
      %p139 = pneg %p133
      %p140 = scmp.eq.s32.totalorder %s14, 1
      %p141 = por %p139, %p140
      %p142 = scmp.ne.s32.totalorder %s134, %s137
      %p143 = scmp.eq.s32.totalorder %s14, 0
      %p144 = por %p142, %p143
      %p145 = scmp.ne.s32.totalorder %s134, %s137
      %p146 = scmp.eq.s32.totalorder %s19, 1
      %p147 = por %p145, %p146
      %p148 = scmp.ne.s32.totalorder %s137, %s138
      %p149 = scmp.eq.s32.totalorder %s19, 0
      %p150 = por %p148, %p149
      %p151 = scmp.ne.s32.totalorder %s137, %s138
      %p152 = scmp.eq.s32.totalorder %s20, 1
      %p153 = por %p151, %p152
      %p155 = scmp.ne.s32.totalorder %s138, %s154
      %p156 = scmp.eq.s32.totalorder %s20, 0
      %p157 = por %p155, %p156
      %p158 = scmp.le.s32.totalorder 1, %s14
      %p159 = scmp.lt.s32.totalorder %s14, 3
      %p160 = pnand %p158, %p159
      %p161 = pneg %p160
      // Predicated region
      $region9: #{dqn_forward.5} parent=5 // pred_check
        _
      $region10: #{dqn_forward.5} parent=5 // pred_check_branch
        %163 = sbr.rel (%p160) target = $region12
      $region11: #{dqn_forward.5} parent=5 // pred_region
        %s164 = ssub.s32 %s14, 1
        // Predicated region
        $region13: #{dqn_forward.5} parent=11 // pred_check
          %p165 = pneg %p61
        $region14: #{dqn_forward.5} parent=11 // pred_check_branch
          %167 = sbr.rel (%p165) target = $region16
        $region15: #{dqn_forward.5} parent=11 // pred_region
          _
        $region16: #{dqn_forward.5} parent=11 // pred_fallthru
          _
        // Predicated region
        $region17: #{dqn_forward.5} parent=11 // pred_check
          %p168 = pneg %p82
        $region18: #{dqn_forward.5} parent=11 // pred_check_branch
          %170 = sbr.rel (%p168) target = $region20
        $region19: #{dqn_forward.5} parent=11 // pred_region
          _
        $region20: #{dqn_forward.5} parent=11 // pred_fallthru
          _
        // Predicated region
        $region21: #{dqn_forward.5} parent=11 // pred_check
          %p171 = pneg %p103
        $region22: #{dqn_forward.5} parent=11 // pred_check_branch
          %173 = sbr.rel (%p171) target = $region24
        $region23: #{dqn_forward.5} parent=11 // pred_region
          _
        $region24: #{dqn_forward.5} parent=11 // pred_fallthru
          _
        // Predicated region
        $region25: #{dqn_forward.5} parent=11 // pred_check
          %p174 = pneg %p124
        $region26: #{dqn_forward.5} parent=11 // pred_check_branch
          %176 = sbr.rel (%p174) target = $region28
        $region27: #{dqn_forward.5} parent=11 // pred_region
          _
        $region28: #{dqn_forward.5} parent=11 // pred_fallthru
          _
      $region12: #{dqn_forward.5} parent=5 // pred_fallthru
        _
      %p177 = scmp.lt.s32.totalorder %s14, 2
      // Predicated region
      $region29: #{dqn_forward.5} parent=5 // pred_check
        %p178 = pneg %p177
      $region30: #{dqn_forward.5} parent=5 // pred_check_branch
        %180 = sbr.rel (%p178) target = $region32
      $region31: #{dqn_forward.5} parent=5 // pred_region
        // Predicated region
        $region33: #{dqn_forward.5} parent=31 // pred_check
          %p181 = pneg %p34
        $region34: #{dqn_forward.5} parent=31 // pred_check_branch
          %183 = sbr.rel (%p181) target = $region36
        $region35: #{dqn_forward.5} parent=31 // pred_region
          %p184 = scmp.lt.s32.totalorder %s14, 1
          %s185 = scalar_select %p184, %s14, 1
          %s186 = smul.addr %s185, 13
          %s187 = smul.addr %s186, 4
          %s188 = scalar_lea.vmem %s0, %s187
        $region36: #{dqn_forward.5} parent=31 // pred_fallthru
          _
      $region32: #{dqn_forward.5} parent=5 // pred_fallthru
        _
      %p189 = scmp.le.s32.totalorder 1, %s14
      %p190 = scmp.lt.s32.totalorder %s14, 3
      %p191 = pnand %p189, %p190
      %p192 = pneg %p191
      // Predicated region
      $region37: #{dqn_forward.5} parent=5 // pred_check
        _
      $region38: #{dqn_forward.5} parent=5 // pred_check_branch
        %194 = sbr.rel (%p191) target = $region40
      $region39: #{dqn_forward.5} parent=5 // pred_region
        %s195 = ssub.s32 %s14, 1
        %p196 = scmp.lt.s32.totalorder %s19, 1
        %s197 = scalar_select %p196, %s19, 1
        %s198 = smul.addr %s197, 13
        %s199 = smul.addr %s198, 4
        %s200 = scalar_lea.vmem %s0, %s199
        %p201 = pneg %p40
        %p202 = pneg %p37
        %p203 = pneg %p61
        %p204 = pneg %p58
        %p205 = pneg %p82
        %p206 = pneg %p79
        %p207 = pneg %p103
        %p208 = pneg %p100
        %p209 = pneg %p124
        %p210 = pneg %p121
        %p211 = pneg %p150
        %p212 = pneg %p147
        %s213 = sand.u32 %s137, 1
        %s214 = scalar_lea.sflag [#allocation3], %s213
        %s215 = sand.u32 %s137, 1
        %s216 = scalar_lea.vmem [#allocation2], %s215
        %p217 = scmp.lt.s32.totalorder %s19, 1
        %s218 = scalar_select %p217, %s19, 1
        %s219 = smul.addr %s218, 13
        %s220 = smul.addr %s219, 4
        %s221 = scalar_lea.vmem %s0, %s220
        %v222 = vld [vmem:[%s221] sm:$0xff]
        %v223 = vld [vmem:[%s221 + $0x8] sm:$0xff]
        %v224 = vld [vmem:[%s221 + $0x10] sm:$0xff]
        %v225 = vld [vmem:[%s221 + $0x18] sm:$0xff]
        %v226 = vld [vmem:[%s221 + $0x20] sm:$0xff]
        %v227 = vld [vmem:[%s221 + $0x28] sm:$0xff]
        %v228 = vld [vmem:[%s221 + $0x30] sm:$0xf]
        %v229 = vld [vmem:[%s1] sm:$0xff]
        %v230 = vld [vmem:[%s1 + $0x8] sm:$0xff]
        %v231 = vld [vmem:[%s1 + $0x10] sm:$0xff]
        %v232 = vld [vmem:[%s1 + $0x18] sm:$0xff]
        %v233 = vld [vmem:[%s1 + $0x20] sm:$0xff]
        %v234 = vld [vmem:[%s1 + $0x28] sm:$0xff]
        %v235 = vld [vmem:[%s1 + $0x30] sm:$0xff]
        %v236 = vld [vmem:[%s1 + $0x38] sm:$0xff]
        %v237 = vld [vmem:[%s1 + $0x40] sm:$0xff]
        %v238 = vld [vmem:[%s1 + $0x48] sm:$0xff]
        %v239 = vld [vmem:[%s1 + $0x50] sm:$0xff]
        %v240 = vld [vmem:[%s1 + $0x58] sm:$0xff]
        %v241 = vld [vmem:[%s1 + $0x60] sm:$0xff]
        %v242 = vld [vmem:[%s1 + $0x68] sm:$0xff]
        %v243 = vld [vmem:[%s1 + $0x70] sm:$0xff]
        %v244 = vld [vmem:[%s1 + $0x78] sm:$0xff]
        %v245 = vld [vmem:[%s1 + $0x80] sm:$0xff]
        %v246 = vld [vmem:[%s1 + $0x88] sm:$0xff]
        %v247 = vld [vmem:[%s1 + $0x90] sm:$0xff]
        %v248 = vld [vmem:[%s1 + $0x98] sm:$0xff]
        %v249 = vld [vmem:[%s1 + $0xa0] sm:$0xff]
        %v250 = vld [vmem:[%s1 + $0xa8] sm:$0xff]
        %v251 = vld [vmem:[%s1 + $0xb0] sm:$0xff]
        %v252 = vld [vmem:[%s1 + $0xb8] sm:$0xff]
        %v253 = vld [vmem:[%s1 + $0xc0] sm:$0xff]
        %v254 = vld [vmem:[%s1 + $0xc8] sm:$0xff]
        %v255 = vld [vmem:[%s1 + $0xd0] sm:$0xff]
        %v256 = vld [vmem:[%s1 + $0xd8] sm:$0xff]
        %v257 = vld [vmem:[%s1 + $0xe0] sm:$0xff]
        %v258 = vld [vmem:[%s1 + $0xe8] sm:$0xff]
        %v259 = vld [vmem:[%s1 + $0xf0] sm:$0xff]
        %v260 = vld [vmem:[%s1 + $0xf8] sm:$0xff]
        %v261 = vld [vmem:[%s1 + $0x100] sm:$0xff]
        %v262 = vld [vmem:[%s1 + $0x108] sm:$0xff]
        %v263 = vld [vmem:[%s1 + $0x110] sm:$0xff]
        %v264 = vld [vmem:[%s1 + $0x118] sm:$0xff]
        %v265 = vld [vmem:[%s1 + $0x120] sm:$0xff]
        %v266 = vld [vmem:[%s1 + $0x128] sm:$0xff]
        %v267 = vld [vmem:[%s1 + $0x130] sm:$0xff]
        %v268 = vld [vmem:[%s1 + $0x138] sm:$0xff]
        %v269 = vld [vmem:[%s1 + $0x140] sm:$0xff]
        %v270 = vld [vmem:[%s1 + $0x148] sm:$0xff]
        %v271 = vld [vmem:[%s1 + $0x150] sm:$0xff]
        %v272 = vld [vmem:[%s1 + $0x158] sm:$0xff]
        %v273 = vld [vmem:[%s1 + $0x160] sm:$0xff]
        %v274 = vld [vmem:[%s1 + $0x168] sm:$0xff]
        %v275 = vld [vmem:[%s1 + $0x170] sm:$0xff]
        %v276 = vld [vmem:[%s1 + $0x178] sm:$0xff]
        %v277 = vld [vmem:[%s1 + $0x180] sm:$0xff]
        %v278 = vld [vmem:[%s1 + $0x188] sm:$0xff]
        %v279 = vld [vmem:[%s1 + $0x190] sm:$0xff]
        %v280 = vld [vmem:[%s1 + $0x198] sm:$0xff]
        %v281 = vld [vmem:[%s1 + $0x1a0] sm:$0xff]
        %v282 = vld [vmem:[%s1 + $0x1a8] sm:$0xff]
        %v283 = vld [vmem:[%s1 + $0x1b0] sm:$0xff]
        %v284 = vld [vmem:[%s1 + $0x1b8] sm:$0xff]
        %v285 = vld [vmem:[%s1 + $0x1c0] sm:$0xff]
        %v286 = vld [vmem:[%s1 + $0x1c8] sm:$0xff]
        %v287 = vld [vmem:[%s1 + $0x1d0] sm:$0xff]
        %v288 = vld [vmem:[%s1 + $0x1d8] sm:$0xff]
        %v289 = vld [vmem:[%s1 + $0x1e0] sm:$0xff]
        %v290 = vld [vmem:[%s1 + $0x1e8] sm:$0xff]
        %v291 = vld [vmem:[%s1 + $0x1f0] sm:$0xff]
        %v292 = vld [vmem:[%s1 + $0x1f8] sm:$0xff]
        %v293 = vld [vmem:[%s1 + $0x200] sm:$0xff]
        %v294 = vld [vmem:[%s1 + $0x208] sm:$0xff]
        %v295 = vld [vmem:[%s1 + $0x210] sm:$0xff]
        %v296 = vld [vmem:[%s1 + $0x218] sm:$0xff]
        %v297 = vld [vmem:[%s1 + $0x220] sm:$0xff]
        %v298 = vld [vmem:[%s1 + $0x228] sm:$0xff]
        %v299 = vld [vmem:[%s1 + $0x230] sm:$0xff]
        %v300 = vld [vmem:[%s1 + $0x238] sm:$0xff]
        %v301 = vld [vmem:[%s1 + $0x240] sm:$0xff]
        %v302 = vld [vmem:[%s1 + $0x248] sm:$0xff]
        %v303 = vld [vmem:[%s1 + $0x250] sm:$0xff]
        %v304 = vld [vmem:[%s1 + $0x258] sm:$0xff]
        %v305 = vld [vmem:[%s1 + $0x260] sm:$0xff]
        %v306 = vld [vmem:[%s1 + $0x268] sm:$0xff]
        %v307 = vld [vmem:[%s1 + $0x270] sm:$0xff]
        %v308 = vld [vmem:[%s1 + $0x278] sm:$0xff]
        %v309 = vld [vmem:[%s1 + $0x280] sm:$0xff]
        %v310 = vld [vmem:[%s1 + $0x288] sm:$0xff]
        %v311 = vld [vmem:[%s1 + $0x290] sm:$0xff]
        %v312 = vld [vmem:[%s1 + $0x298] sm:$0xff]
        %v313 = vld [vmem:[%s1 + $0x2a0] sm:$0xff]
        %v314 = vld [vmem:[%s1 + $0x2a8] sm:$0xff]
        %v315 = vld [vmem:[%s1 + $0x2b0] sm:$0xff]
        %v316 = vld [vmem:[%s1 + $0x2b8] sm:$0xff]
        %v317 = vld [vmem:[%s1 + $0x2c0] sm:$0xff]
        %v318 = vld [vmem:[%s1 + $0x2c8] sm:$0xff]
        %v319 = vld [vmem:[%s1 + $0x2d0] sm:$0xff]
        %v320 = vld [vmem:[%s1 + $0x2d8] sm:$0xff]
        %v321 = vld [vmem:[%s1 + $0x2e0] sm:$0xff]
        %v322 = vld [vmem:[%s1 + $0x2e8] sm:$0xff]
        %v323 = vld [vmem:[%s1 + $0x2f0] sm:$0xff]
        %v324 = vld [vmem:[%s1 + $0x2f8] sm:$0xff]
        %v325 = vld [vmem:[%s1 + $0x300] sm:$0xff]
        %v326 = vld [vmem:[%s1 + $0x308] sm:$0xff]
        %v327 = vld [vmem:[%s1 + $0x310] sm:$0xff]
        %v328 = vld [vmem:[%s1 + $0x318] sm:$0xff]
        %v329 = vld [vmem:[%s1 + $0x320] sm:$0xff]
        %v330 = vld [vmem:[%s1 + $0x328] sm:$0xff]
        %v331 = vld [vmem:[%s1 + $0x330] sm:$0xff]
        %v332 = vld [vmem:[%s1 + $0x338] sm:$0xff]
        %v333 = vld [vmem:[%s1 + $0x340] sm:$0xff]
        %v334 = vld [vmem:[%s1 + $0x348] sm:$0xff]
        %v335 = vld [vmem:[%s1 + $0x350] sm:$0xff]
        %v336 = vld [vmem:[%s1 + $0x358] sm:$0xff]
        %v337 = vld [vmem:[%s1 + $0x360] sm:$0xff]
        %v338 = vld [vmem:[%s1 + $0x368] sm:$0xff]
        %v339 = vld [vmem:[%s1 + $0x370] sm:$0xff]
        %v340 = vld [vmem:[%s1 + $0x378] sm:$0xff]
        %v341 = vld [vmem:[%s1 + $0x380] sm:$0xff]
        %v342 = vld [vmem:[%s1 + $0x388] sm:$0xff]
        %v343 = vld [vmem:[%s1 + $0x390] sm:$0xff]
        %v344 = vld [vmem:[%s1 + $0x398] sm:$0xff]
        %v345 = vld [vmem:[%s1 + $0x3a0] sm:$0xff]
        %v346 = vld [vmem:[%s1 + $0x3a8] sm:$0xff]
        %v347 = vld [vmem:[%s1 + $0x3b0] sm:$0xff]
        %v348 = vld [vmem:[%s1 + $0x3b8] sm:$0xff]
        %v349 = vld [vmem:[%s1 + $0x3c0] sm:$0xff]
        %v350 = vld [vmem:[%s1 + $0x3c8] sm:$0xff]
        %v351 = vld [vmem:[%s1 + $0x3d0] sm:$0xff]
        %v352 = vld [vmem:[%s1 + $0x3d8] sm:$0xff]
        %v353 = vld [vmem:[%s1 + $0x3e0] sm:$0xff]
        %v354 = vld [vmem:[%s1 + $0x3e8] sm:$0xff]
        %v355 = vld [vmem:[%s1 + $0x3f0] sm:$0xff]
        %v356 = vld [vmem:[%s1 + $0x3f8] sm:$0xff]
        %v357 = vld [vmem:[%s1 + $0x400] sm:$0xff]
        %v358 = vld [vmem:[%s1 + $0x408] sm:$0xff]
        %v359 = vld [vmem:[%s1 + $0x410] sm:$0xff]
        %v360 = vld [vmem:[%s1 + $0x418] sm:$0xff]
        %v361 = vld [vmem:[%s1 + $0x420] sm:$0xff]
        %v362 = vld [vmem:[%s1 + $0x428] sm:$0xff]
        %v363 = vld [vmem:[%s1 + $0x430] sm:$0xff]
        %v364 = vld [vmem:[%s1 + $0x438] sm:$0xff]
        %v365 = vld [vmem:[%s1 + $0x440] sm:$0xff]
        %v366 = vld [vmem:[%s1 + $0x448] sm:$0xff]
        %v367 = vld [vmem:[%s1 + $0x450] sm:$0xff]
        %v368 = vld [vmem:[%s1 + $0x458] sm:$0xff]
        %v369 = vld [vmem:[%s1 + $0x460] sm:$0xff]
        %v370 = vld [vmem:[%s1 + $0x468] sm:$0xff]
        %v371 = vld [vmem:[%s1 + $0x470] sm:$0xff]
        %v372 = vld [vmem:[%s1 + $0x478] sm:$0xff]
        %v373 = vld [vmem:[%s1 + $0x480] sm:$0xff]
        %v374 = vld [vmem:[%s1 + $0x488] sm:$0xff]
        %v375 = vld [vmem:[%s1 + $0x490] sm:$0xff]
        %v376 = vld [vmem:[%s1 + $0x498] sm:$0xff]
        %v377 = vld [vmem:[%s1 + $0x4a0] sm:$0xff]
        %v378 = vld [vmem:[%s1 + $0x4a8] sm:$0xff]
        %v379 = vld [vmem:[%s1 + $0x4b0] sm:$0xff]
        %v380 = vld [vmem:[%s1 + $0x4b8] sm:$0xff]
        %v381 = vld [vmem:[%s1 + $0x4c0] sm:$0xff]
        %v382 = vld [vmem:[%s1 + $0x4c8] sm:$0xff]
        %v383 = vld [vmem:[%s1 + $0x4d0] sm:$0xff]
        %v384 = vld [vmem:[%s1 + $0x4d8] sm:$0xff]
        %v385 = vld [vmem:[%s1 + $0x4e0] sm:$0xff]
        %v386 = vld [vmem:[%s1 + $0x4e8] sm:$0xff]
        %v387 = vld [vmem:[%s1 + $0x4f0] sm:$0xff]
        %v388 = vld [vmem:[%s1 + $0x4f8] sm:$0xff]
        %v389 = vld [vmem:[%s1 + $0x500] sm:$0xff]
        %v390 = vld [vmem:[%s1 + $0x508] sm:$0xff]
        %v391 = vld [vmem:[%s1 + $0x510] sm:$0xff]
        %v392 = vld [vmem:[%s1 + $0x518] sm:$0xff]
        %v393 = vld [vmem:[%s1 + $0x520] sm:$0xff]
        %v394 = vld [vmem:[%s1 + $0x528] sm:$0xff]
        %v395 = vld [vmem:[%s1 + $0x530] sm:$0xff]
        %v396 = vld [vmem:[%s1 + $0x538] sm:$0xff]
        %v397 = vld [vmem:[%s1 + $0x540] sm:$0xff]
        %v398 = vld [vmem:[%s1 + $0x548] sm:$0xff]
        %v399 = vld [vmem:[%s1 + $0x550] sm:$0xff]
        %v400 = vld [vmem:[%s1 + $0x558] sm:$0xff]
        %v401 = vld [vmem:[%s1 + $0x560] sm:$0xff]
        %v402 = vld [vmem:[%s1 + $0x568] sm:$0xff]
        %v403 = vld [vmem:[%s1 + $0x570] sm:$0xff]
        %v404 = vld [vmem:[%s1 + $0x578] sm:$0xff]
        %v405 = vld [vmem:[%s1 + $0x580] sm:$0xff]
        %v406 = vld [vmem:[%s1 + $0x588] sm:$0xff]
        %v407 = vld [vmem:[%s1 + $0x590] sm:$0xff]
        %v408 = vld [vmem:[%s1 + $0x598] sm:$0xff]
        %v409 = vld [vmem:[%s1 + $0x5a0] sm:$0xff]
        %v410 = vld [vmem:[%s1 + $0x5a8] sm:$0xff]
        %v411 = vld [vmem:[%s1 + $0x5b0] sm:$0xff]
        %v412 = vld [vmem:[%s1 + $0x5b8] sm:$0xff]
        %v413 = vld [vmem:[%s1 + $0x5c0] sm:$0xff]
        %v414 = vld [vmem:[%s1 + $0x5c8] sm:$0xff]
        %v415 = vld [vmem:[%s1 + $0x5d0] sm:$0xff]
        %v416 = vld [vmem:[%s1 + $0x5d8] sm:$0xff]
        %v417 = vld [vmem:[%s1 + $0x5e0] sm:$0xff]
        %v418 = vld [vmem:[%s1 + $0x5e8] sm:$0xff]
        %v419 = vld [vmem:[%s1 + $0x5f0] sm:$0xff]
        %v420 = vld [vmem:[%s1 + $0x5f8] sm:$0xff]
        %v421 = vld [vmem:[%s1 + $0x600] sm:$0xff]
        %v422 = vld [vmem:[%s1 + $0x608] sm:$0xff]
        %v423 = vld [vmem:[%s1 + $0x610] sm:$0xff]
        %v424 = vld [vmem:[%s1 + $0x618] sm:$0xff]
        %v425 = vld [vmem:[%s1 + $0x620] sm:$0xff]
        %v426 = vld [vmem:[%s1 + $0x628] sm:$0xff]
        %v427 = vld [vmem:[%s1 + $0x630] sm:$0xff]
        %v428 = vld [vmem:[%s1 + $0x638] sm:$0xff]
        %v429 = vld [vmem:[%s2] sm:$0x1]
        %v431 = vlaneseq
        %v432 = vshrl.u32 %v431, 7
        %v433 = vsub.s32 0, %v432
        %v434 = vrot.slane %v429, %v433
        %v443 = vcombine.high %v222, %v222
        %v444 = vcombine.high %v223, %v223
        %v445 = vcombine.high %v224, %v224
        %v446 = vcombine.high %v225, %v225
        %v447 = vcombine.high %v226, %v226
        %v448 = vcombine.high %v227, %v227
        %vm455 = vcmask 523264
        %v456 = vsel %vm455, %v228, 0
        %458 = vmatprep.subr.mxu0 0.0
        %459 = vmatpush1.msra.mxu0 %v244
        %460 = vmatprep.subr.mxu0 0.0
        %461 = vmatpush1.msra.mxu0 %v243
        %462 = vmatprep.subr.mxu0 0.0
        %463 = vmatpush1.msra.mxu0 %v242
        %464 = vmatprep.subr.mxu0 0.0
        %465 = vmatpush1.msra.mxu0 %v241
        %466 = vmatprep.subr.mxu0 0.0
        %467 = vmatpush1.msra.mxu0 %v240
        %468 = vmatprep.subr.mxu0 0.0
        %469 = vmatpush1.msra.mxu0 %v239
        %470 = vmatprep.subr.mxu0 0.0
        %471 = vmatpush1.msra.mxu0 %v238
        %472 = vmatprep.subr.mxu0 0.0
        %473 = vmatpush1.msra.mxu0 %v237
        %474 = vmatprep.subr.mxu0 0.0
        %475 = vmatpush1.msra.mxu0 %v236
        %476 = vmatprep.subr.mxu0 0.0
        %477 = vmatpush1.msra.mxu0 %v235
        %478 = vmatprep.subr.mxu0 0.0
        %479 = vmatpush1.msra.mxu0 %v234
        %480 = vmatprep.subr.mxu0 0.0
        %481 = vmatpush1.msra.mxu0 %v233
        %482 = vmatprep.subr.mxu0 0.0
        %483 = vmatpush1.msra.mxu0 %v232
        %484 = vmatprep.subr.mxu0 0.0
        %485 = vmatpush1.msra.mxu0 %v231
        %486 = vmatprep.subr.mxu0 0.0
        %487 = vmatpush1.msra.mxu0 %v230
        %488 = vmatprep.subr.mxu0 0.0
        %489 = vmatpush1.msra.mxu0 %v229
        %490 = vmatprep.subr.mxu0 0.0
        %491 = vmatpush2.msra.mxu0 %v260
        %492 = vmatprep.subr.mxu0 0.0
        %493 = vmatpush2.msra.mxu0 %v259
        %494 = vmatprep.subr.mxu0 0.0
        %495 = vmatpush2.msra.mxu0 %v258
        %496 = vmatprep.subr.mxu0 0.0
        %497 = vmatpush2.msra.mxu0 %v257
        %498 = vmatprep.subr.mxu0 0.0
        %499 = vmatpush2.msra.mxu0 %v256
        %500 = vmatprep.subr.mxu0 0.0
        %501 = vmatpush2.msra.mxu0 %v255
        %502 = vmatprep.subr.mxu0 0.0
        %503 = vmatpush2.msra.mxu0 %v254
        %504 = vmatprep.subr.mxu0 0.0
        %505 = vmatpush2.msra.mxu0 %v253
        %506 = vmatprep.subr.mxu0 0.0
        %507 = vmatpush2.msra.mxu0 %v252
        %508 = vmatprep.subr.mxu0 0.0
        %509 = vmatpush2.msra.mxu0 %v251
        %510 = vmatprep.subr.mxu0 0.0
        %511 = vmatpush2.msra.mxu0 %v250
        %512 = vmatprep.subr.mxu0 0.0
        %513 = vmatpush2.msra.mxu0 %v249
        %514 = vmatprep.subr.mxu0 0.0
        %515 = vmatpush2.msra.mxu0 %v248
        %516 = vmatprep.subr.mxu0 0.0
        %517 = vmatpush2.msra.mxu0 %v247
        %518 = vmatprep.subr.mxu0 0.0
        %519 = vmatpush2.msra.mxu0 %v246
        %520 = vmatprep.subr.mxu0 0.0
        %521 = vmatpush2.msra.mxu0 %v245
        %522 = vmatprep.mubr.f32.mxu0 %v443
        %523 = vmatmul.mubr.f32.gmra.mxu0 %v222
        %v524 = vpop.f32.mrf.mxu0
        %v525 = vadd.f32 %v434, %v524
        %v526 = vpop.f32.mrf.mxu0
        %527 = vdwg.mxu0
        %528 = vmatprep.subr.mxu0 0.0
        %529 = vmatpush1.msra.mxu0 %v276
        %530 = vmatprep.subr.mxu0 0.0
        %531 = vmatpush1.msra.mxu0 %v275
        %532 = vmatprep.subr.mxu0 0.0
        %533 = vmatpush1.msra.mxu0 %v274
        %534 = vmatprep.subr.mxu0 0.0
        %535 = vmatpush1.msra.mxu0 %v273
        %536 = vmatprep.subr.mxu0 0.0
        %537 = vmatpush1.msra.mxu0 %v272
        %538 = vmatprep.subr.mxu0 0.0
        %539 = vmatpush1.msra.mxu0 %v271
        %540 = vmatprep.subr.mxu0 0.0
        %541 = vmatpush1.msra.mxu0 %v270
        %542 = vmatprep.subr.mxu0 0.0
        %543 = vmatpush1.msra.mxu0 %v269
        %544 = vmatprep.subr.mxu0 0.0
        %545 = vmatpush1.msra.mxu0 %v268
        %546 = vmatprep.subr.mxu0 0.0
        %547 = vmatpush1.msra.mxu0 %v267
        %548 = vmatprep.subr.mxu0 0.0
        %549 = vmatpush1.msra.mxu0 %v266
        %550 = vmatprep.subr.mxu0 0.0
        %551 = vmatpush1.msra.mxu0 %v265
        %552 = vmatprep.subr.mxu0 0.0
        %553 = vmatpush1.msra.mxu0 %v264
        %554 = vmatprep.subr.mxu0 0.0
        %555 = vmatpush1.msra.mxu0 %v263
        %556 = vmatprep.subr.mxu0 0.0
        %557 = vmatpush1.msra.mxu0 %v262
        %558 = vmatprep.subr.mxu0 0.0
        %559 = vmatpush1.msra.mxu0 %v261
        %560 = vmatprep.subr.mxu0 0.0
        %561 = vmatpush2.msra.mxu0 %v292
        %562 = vmatprep.subr.mxu0 0.0
        %563 = vmatpush2.msra.mxu0 %v291
        %564 = vmatprep.subr.mxu0 0.0
        %565 = vmatpush2.msra.mxu0 %v290
        %566 = vmatprep.subr.mxu0 0.0
        %567 = vmatpush2.msra.mxu0 %v289
        %568 = vmatprep.subr.mxu0 0.0
        %569 = vmatpush2.msra.mxu0 %v288
        %570 = vmatprep.subr.mxu0 0.0
        %571 = vmatpush2.msra.mxu0 %v287
        %572 = vmatprep.subr.mxu0 0.0
        %573 = vmatpush2.msra.mxu0 %v286
        %574 = vmatprep.subr.mxu0 0.0
        %575 = vmatpush2.msra.mxu0 %v285
        %576 = vmatprep.subr.mxu0 0.0
        %577 = vmatpush2.msra.mxu0 %v284
        %578 = vmatprep.subr.mxu0 0.0
        %579 = vmatpush2.msra.mxu0 %v283
        %580 = vmatprep.subr.mxu0 0.0
        %581 = vmatpush2.msra.mxu0 %v282
        %582 = vmatprep.subr.mxu0 0.0
        %583 = vmatpush2.msra.mxu0 %v281
        %584 = vmatprep.subr.mxu0 0.0
        %585 = vmatpush2.msra.mxu0 %v280
        %586 = vmatprep.subr.mxu0 0.0
        %587 = vmatpush2.msra.mxu0 %v279
        %588 = vmatprep.subr.mxu0 0.0
        %589 = vmatpush2.msra.mxu0 %v278
        %590 = vmatprep.subr.mxu0 0.0
        %591 = vmatpush2.msra.mxu0 %v277
        %592 = vmatprep.mubr.f32.mxu0 %v444
        %593 = vmatmul.mubr.f32.gmra.mxu0 %v223
        %v594 = vpop.f32.mrf.mxu0
        %v595 = vadd.f32 %v525, %v594
        %v596 = vpop.f32.mrf.mxu0
        %597 = vdwg.mxu0
        %598 = vmatprep.subr.mxu0 0.0
        %599 = vmatpush1.msra.mxu0 %v308
        %600 = vmatprep.subr.mxu0 0.0
        %601 = vmatpush1.msra.mxu0 %v307
        %602 = vmatprep.subr.mxu0 0.0
        %603 = vmatpush1.msra.mxu0 %v306
        %604 = vmatprep.subr.mxu0 0.0
        %605 = vmatpush1.msra.mxu0 %v305
        %606 = vmatprep.subr.mxu0 0.0
        %607 = vmatpush1.msra.mxu0 %v304
        %608 = vmatprep.subr.mxu0 0.0
        %609 = vmatpush1.msra.mxu0 %v303
        %610 = vmatprep.subr.mxu0 0.0
        %611 = vmatpush1.msra.mxu0 %v302
        %612 = vmatprep.subr.mxu0 0.0
        %613 = vmatpush1.msra.mxu0 %v301
        %614 = vmatprep.subr.mxu0 0.0
        %615 = vmatpush1.msra.mxu0 %v300
        %616 = vmatprep.subr.mxu0 0.0
        %617 = vmatpush1.msra.mxu0 %v299
        %618 = vmatprep.subr.mxu0 0.0
        %619 = vmatpush1.msra.mxu0 %v298
        %620 = vmatprep.subr.mxu0 0.0
        %621 = vmatpush1.msra.mxu0 %v297
        %622 = vmatprep.subr.mxu0 0.0
        %623 = vmatpush1.msra.mxu0 %v296
        %624 = vmatprep.subr.mxu0 0.0
        %625 = vmatpush1.msra.mxu0 %v295
        %626 = vmatprep.subr.mxu0 0.0
        %627 = vmatpush1.msra.mxu0 %v294
        %628 = vmatprep.subr.mxu0 0.0
        %629 = vmatpush1.msra.mxu0 %v293
        %630 = vmatprep.subr.mxu0 0.0
        %631 = vmatpush2.msra.mxu0 %v324
        %632 = vmatprep.subr.mxu0 0.0
        %633 = vmatpush2.msra.mxu0 %v323
        %634 = vmatprep.subr.mxu0 0.0
        %635 = vmatpush2.msra.mxu0 %v322
        %636 = vmatprep.subr.mxu0 0.0
        %637 = vmatpush2.msra.mxu0 %v321
        %638 = vmatprep.subr.mxu0 0.0
        %639 = vmatpush2.msra.mxu0 %v320
        %640 = vmatprep.subr.mxu0 0.0
        %641 = vmatpush2.msra.mxu0 %v319
        %642 = vmatprep.subr.mxu0 0.0
        %643 = vmatpush2.msra.mxu0 %v318
        %644 = vmatprep.subr.mxu0 0.0
        %645 = vmatpush2.msra.mxu0 %v317
        %646 = vmatprep.subr.mxu0 0.0
        %647 = vmatpush2.msra.mxu0 %v316
        %648 = vmatprep.subr.mxu0 0.0
        %649 = vmatpush2.msra.mxu0 %v315
        %650 = vmatprep.subr.mxu0 0.0
        %651 = vmatpush2.msra.mxu0 %v314
        %652 = vmatprep.subr.mxu0 0.0
        %653 = vmatpush2.msra.mxu0 %v313
        %654 = vmatprep.subr.mxu0 0.0
        %655 = vmatpush2.msra.mxu0 %v312
        %656 = vmatprep.subr.mxu0 0.0
        %657 = vmatpush2.msra.mxu0 %v311
        %658 = vmatprep.subr.mxu0 0.0
        %659 = vmatpush2.msra.mxu0 %v310
        %660 = vmatprep.subr.mxu0 0.0
        %661 = vmatpush2.msra.mxu0 %v309
        %662 = vmatprep.mubr.f32.mxu0 %v445
        %663 = vmatmul.mubr.f32.gmra.mxu0 %v224
        %v664 = vpop.f32.mrf.mxu0
        %v665 = vadd.f32 %v595, %v664
        %v666 = vpop.f32.mrf.mxu0
        %667 = vdwg.mxu0
        %668 = vmatprep.subr.mxu0 0.0
        %669 = vmatpush1.msra.mxu0 %v340
        %670 = vmatprep.subr.mxu0 0.0
        %671 = vmatpush1.msra.mxu0 %v339
        %672 = vmatprep.subr.mxu0 0.0
        %673 = vmatpush1.msra.mxu0 %v338
        %674 = vmatprep.subr.mxu0 0.0
        %675 = vmatpush1.msra.mxu0 %v337
        %676 = vmatprep.subr.mxu0 0.0
        %677 = vmatpush1.msra.mxu0 %v336
        %678 = vmatprep.subr.mxu0 0.0
        %679 = vmatpush1.msra.mxu0 %v335
        %680 = vmatprep.subr.mxu0 0.0
        %681 = vmatpush1.msra.mxu0 %v334
        %682 = vmatprep.subr.mxu0 0.0
        %683 = vmatpush1.msra.mxu0 %v333
        %684 = vmatprep.subr.mxu0 0.0
        %685 = vmatpush1.msra.mxu0 %v332
        %686 = vmatprep.subr.mxu0 0.0
        %687 = vmatpush1.msra.mxu0 %v331
        %688 = vmatprep.subr.mxu0 0.0
        %689 = vmatpush1.msra.mxu0 %v330
        %690 = vmatprep.subr.mxu0 0.0
        %691 = vmatpush1.msra.mxu0 %v329
        %692 = vmatprep.subr.mxu0 0.0
        %693 = vmatpush1.msra.mxu0 %v328
        %694 = vmatprep.subr.mxu0 0.0
        %695 = vmatpush1.msra.mxu0 %v327
        %696 = vmatprep.subr.mxu0 0.0
        %697 = vmatpush1.msra.mxu0 %v326
        %698 = vmatprep.subr.mxu0 0.0
        %699 = vmatpush1.msra.mxu0 %v325
        %700 = vmatprep.subr.mxu0 0.0
        %701 = vmatpush2.msra.mxu0 %v356
        %702 = vmatprep.subr.mxu0 0.0
        %703 = vmatpush2.msra.mxu0 %v355
        %704 = vmatprep.subr.mxu0 0.0
        %705 = vmatpush2.msra.mxu0 %v354
        %706 = vmatprep.subr.mxu0 0.0
        %707 = vmatpush2.msra.mxu0 %v353
        %708 = vmatprep.subr.mxu0 0.0
        %709 = vmatpush2.msra.mxu0 %v352
        %710 = vmatprep.subr.mxu0 0.0
        %711 = vmatpush2.msra.mxu0 %v351
        %712 = vmatprep.subr.mxu0 0.0
        %713 = vmatpush2.msra.mxu0 %v350
        %714 = vmatprep.subr.mxu0 0.0
        %715 = vmatpush2.msra.mxu0 %v349
        %716 = vmatprep.subr.mxu0 0.0
        %717 = vmatpush2.msra.mxu0 %v348
        %718 = vmatprep.subr.mxu0 0.0
        %719 = vmatpush2.msra.mxu0 %v347
        %720 = vmatprep.subr.mxu0 0.0
        %721 = vmatpush2.msra.mxu0 %v346
        %722 = vmatprep.subr.mxu0 0.0
        %723 = vmatpush2.msra.mxu0 %v345
        %724 = vmatprep.subr.mxu0 0.0
        %725 = vmatpush2.msra.mxu0 %v344
        %726 = vmatprep.subr.mxu0 0.0
        %727 = vmatpush2.msra.mxu0 %v343
        %728 = vmatprep.subr.mxu0 0.0
        %729 = vmatpush2.msra.mxu0 %v342
        %730 = vmatprep.subr.mxu0 0.0
        %731 = vmatpush2.msra.mxu0 %v341
        %732 = vmatprep.mubr.f32.mxu0 %v446
        %733 = vmatmul.mubr.f32.gmra.mxu0 %v225
        %v734 = vpop.f32.mrf.mxu0
        %v735 = vadd.f32 %v665, %v734
        %v736 = vpop.f32.mrf.mxu0
        %737 = vdwg.mxu0
        %738 = vmatprep.subr.mxu0 0.0
        %739 = vmatpush1.msra.mxu0 %v372
        %740 = vmatprep.subr.mxu0 0.0
        %741 = vmatpush1.msra.mxu0 %v371
        %742 = vmatprep.subr.mxu0 0.0
        %743 = vmatpush1.msra.mxu0 %v370
        %744 = vmatprep.subr.mxu0 0.0
        %745 = vmatpush1.msra.mxu0 %v369
        %746 = vmatprep.subr.mxu0 0.0
        %747 = vmatpush1.msra.mxu0 %v368
        %748 = vmatprep.subr.mxu0 0.0
        %749 = vmatpush1.msra.mxu0 %v367
        %750 = vmatprep.subr.mxu0 0.0
        %751 = vmatpush1.msra.mxu0 %v366
        %752 = vmatprep.subr.mxu0 0.0
        %753 = vmatpush1.msra.mxu0 %v365
        %754 = vmatprep.subr.mxu0 0.0
        %755 = vmatpush1.msra.mxu0 %v364
        %756 = vmatprep.subr.mxu0 0.0
        %757 = vmatpush1.msra.mxu0 %v363
        %758 = vmatprep.subr.mxu0 0.0
        %759 = vmatpush1.msra.mxu0 %v362
        %760 = vmatprep.subr.mxu0 0.0
        %761 = vmatpush1.msra.mxu0 %v361
        %762 = vmatprep.subr.mxu0 0.0
        %763 = vmatpush1.msra.mxu0 %v360
        %764 = vmatprep.subr.mxu0 0.0
        %765 = vmatpush1.msra.mxu0 %v359
        %766 = vmatprep.subr.mxu0 0.0
        %767 = vmatpush1.msra.mxu0 %v358
        %768 = vmatprep.subr.mxu0 0.0
        %769 = vmatpush1.msra.mxu0 %v357
        %770 = vmatprep.subr.mxu0 0.0
        %771 = vmatpush2.msra.mxu0 %v388
        %772 = vmatprep.subr.mxu0 0.0
        %773 = vmatpush2.msra.mxu0 %v387
        %774 = vmatprep.subr.mxu0 0.0
        %775 = vmatpush2.msra.mxu0 %v386
        %776 = vmatprep.subr.mxu0 0.0
        %777 = vmatpush2.msra.mxu0 %v385
        %778 = vmatprep.subr.mxu0 0.0
        %779 = vmatpush2.msra.mxu0 %v384
        %780 = vmatprep.subr.mxu0 0.0
        %781 = vmatpush2.msra.mxu0 %v383
        %782 = vmatprep.subr.mxu0 0.0
        %783 = vmatpush2.msra.mxu0 %v382
        %784 = vmatprep.subr.mxu0 0.0
        %785 = vmatpush2.msra.mxu0 %v381
        %786 = vmatprep.subr.mxu0 0.0
        %787 = vmatpush2.msra.mxu0 %v380
        %788 = vmatprep.subr.mxu0 0.0
        %789 = vmatpush2.msra.mxu0 %v379
        %790 = vmatprep.subr.mxu0 0.0
        %791 = vmatpush2.msra.mxu0 %v378
        %792 = vmatprep.subr.mxu0 0.0
        %793 = vmatpush2.msra.mxu0 %v377
        %794 = vmatprep.subr.mxu0 0.0
        %795 = vmatpush2.msra.mxu0 %v376
        %796 = vmatprep.subr.mxu0 0.0
        %797 = vmatpush2.msra.mxu0 %v375
        %798 = vmatprep.subr.mxu0 0.0
        %799 = vmatpush2.msra.mxu0 %v374
        %800 = vmatprep.subr.mxu0 0.0
        %801 = vmatpush2.msra.mxu0 %v373
        %802 = vmatprep.mubr.f32.mxu0 %v447
        %803 = vmatmul.mubr.f32.gmra.mxu0 %v226
        %v804 = vpop.f32.mrf.mxu0
        %v805 = vadd.f32 %v735, %v804
        %v806 = vpop.f32.mrf.mxu0
        %807 = vdwg.mxu0
        %808 = vmatprep.subr.mxu0 0.0
        %809 = vmatpush1.msra.mxu0 %v404
        %810 = vmatprep.subr.mxu0 0.0
        %811 = vmatpush1.msra.mxu0 %v403
        %812 = vmatprep.subr.mxu0 0.0
        %813 = vmatpush1.msra.mxu0 %v402
        %814 = vmatprep.subr.mxu0 0.0
        %815 = vmatpush1.msra.mxu0 %v401
        %816 = vmatprep.subr.mxu0 0.0
        %817 = vmatpush1.msra.mxu0 %v400
        %818 = vmatprep.subr.mxu0 0.0
        %819 = vmatpush1.msra.mxu0 %v399
        %820 = vmatprep.subr.mxu0 0.0
        %821 = vmatpush1.msra.mxu0 %v398
        %822 = vmatprep.subr.mxu0 0.0
        %823 = vmatpush1.msra.mxu0 %v397
        %824 = vmatprep.subr.mxu0 0.0
        %825 = vmatpush1.msra.mxu0 %v396
        %826 = vmatprep.subr.mxu0 0.0
        %827 = vmatpush1.msra.mxu0 %v395
        %828 = vmatprep.subr.mxu0 0.0
        %829 = vmatpush1.msra.mxu0 %v394
        %830 = vmatprep.subr.mxu0 0.0
        %831 = vmatpush1.msra.mxu0 %v393
        %832 = vmatprep.subr.mxu0 0.0
        %833 = vmatpush1.msra.mxu0 %v392
        %834 = vmatprep.subr.mxu0 0.0
        %835 = vmatpush1.msra.mxu0 %v391
        %836 = vmatprep.subr.mxu0 0.0
        %837 = vmatpush1.msra.mxu0 %v390
        %838 = vmatprep.subr.mxu0 0.0
        %839 = vmatpush1.msra.mxu0 %v389
        %840 = vmatprep.subr.mxu0 0.0
        %841 = vmatpush2.msra.mxu0 %v420
        %842 = vmatprep.subr.mxu0 0.0
        %843 = vmatpush2.msra.mxu0 %v419
        %844 = vmatprep.subr.mxu0 0.0
        %845 = vmatpush2.msra.mxu0 %v418
        %846 = vmatprep.subr.mxu0 0.0
        %847 = vmatpush2.msra.mxu0 %v417
        %848 = vmatprep.subr.mxu0 0.0
        %849 = vmatpush2.msra.mxu0 %v416
        %850 = vmatprep.subr.mxu0 0.0
        %851 = vmatpush2.msra.mxu0 %v415
        %852 = vmatprep.subr.mxu0 0.0
        %853 = vmatpush2.msra.mxu0 %v414
        %854 = vmatprep.subr.mxu0 0.0
        %855 = vmatpush2.msra.mxu0 %v413
        %856 = vmatprep.subr.mxu0 0.0
        %857 = vmatpush2.msra.mxu0 %v412
        %858 = vmatprep.subr.mxu0 0.0
        %859 = vmatpush2.msra.mxu0 %v411
        %860 = vmatprep.subr.mxu0 0.0
        %861 = vmatpush2.msra.mxu0 %v410
        %862 = vmatprep.subr.mxu0 0.0
        %863 = vmatpush2.msra.mxu0 %v409
        %864 = vmatprep.subr.mxu0 0.0
        %865 = vmatpush2.msra.mxu0 %v408
        %866 = vmatprep.subr.mxu0 0.0
        %867 = vmatpush2.msra.mxu0 %v407
        %868 = vmatprep.subr.mxu0 0.0
        %869 = vmatpush2.msra.mxu0 %v406
        %870 = vmatprep.subr.mxu0 0.0
        %871 = vmatpush2.msra.mxu0 %v405
        %872 = vmatprep.mubr.f32.mxu0 %v448
        %873 = vmatmul.mubr.f32.gmra.mxu0 %v227
        %v874 = vpop.f32.mrf.mxu0
        %v875 = vadd.f32 %v805, %v874
        %v876 = vpop.f32.mrf.mxu0
        %877 = vdwg.mxu0
        %878 = vmatprep.subr.mxu0 0.0
        %879 = vmatpush1.msra.mxu0 0.0
        %880 = vmatprep.subr.mxu0 0.0
        %881 = vmatpush1.msra.mxu0 0.0
        %882 = vmatprep.subr.mxu0 0.0
        %883 = vmatpush1.msra.mxu0 0.0
        %884 = vmatprep.subr.mxu0 0.0
        %885 = vmatpush1.msra.mxu0 0.0
        %886 = vmatprep.subr.mxu0 0.0
        %887 = vmatpush1.msra.mxu0 0.0
        %888 = vmatprep.subr.mxu0 0.0
        %889 = vmatpush1.msra.mxu0 0.0
        %890 = vmatprep.subr.mxu0 0.0
        %891 = vmatpush1.msra.mxu0 0.0
        %892 = vmatprep.subr.mxu0 0.0
        %893 = vmatpush1.msra.mxu0 0.0
        %894 = vmatprep.subr.mxu0 0.0
        %895 = vmatpush1.msra.mxu0 %v428
        %896 = vmatprep.subr.mxu0 0.0
        %897 = vmatpush1.msra.mxu0 %v427
        %898 = vmatprep.subr.mxu0 0.0
        %899 = vmatpush1.msra.mxu0 %v426
        %900 = vmatprep.subr.mxu0 0.0
        %901 = vmatpush1.msra.mxu0 %v425
        %902 = vmatprep.subr.mxu0 0.0
        %903 = vmatpush1.msra.mxu0 %v424
        %904 = vmatprep.subr.mxu0 0.0
        %905 = vmatpush1.msra.mxu0 %v423
        %906 = vmatprep.subr.mxu0 0.0
        %907 = vmatpush1.msra.mxu0 %v422
        %908 = vmatprep.subr.mxu0 0.0
        %909 = vmatpush1.msra.mxu0 %v421
        %910 = vmatprep.subr.mxu0 0.0
        %911 = vmatpush2.msra.mxu0 0.0
        %912 = vmatprep.subr.mxu0 0.0
        %913 = vmatpush2.msra.mxu0 0.0
        %914 = vmatprep.subr.mxu0 0.0
        %915 = vmatpush2.msra.mxu0 0.0
        %916 = vmatprep.subr.mxu0 0.0
        %917 = vmatpush2.msra.mxu0 0.0
        %918 = vmatprep.subr.mxu0 0.0
        %919 = vmatpush2.msra.mxu0 0.0
        %920 = vmatprep.subr.mxu0 0.0
        %921 = vmatpush2.msra.mxu0 0.0
        %922 = vmatprep.subr.mxu0 0.0
        %923 = vmatpush2.msra.mxu0 0.0
        %924 = vmatprep.subr.mxu0 0.0
        %925 = vmatpush2.msra.mxu0 0.0
        %926 = vmatprep.subr.mxu0 0.0
        %927 = vmatpush2.msra.mxu0 0.0
        %928 = vmatprep.subr.mxu0 0.0
        %929 = vmatpush2.msra.mxu0 0.0
        %930 = vmatprep.subr.mxu0 0.0
        %931 = vmatpush2.msra.mxu0 0.0
        %932 = vmatprep.subr.mxu0 0.0
        %933 = vmatpush2.msra.mxu0 0.0
        %934 = vmatprep.subr.mxu0 0.0
        %935 = vmatpush2.msra.mxu0 0.0
        %936 = vmatprep.subr.mxu0 0.0
        %937 = vmatpush2.msra.mxu0 0.0
        %938 = vmatprep.subr.mxu0 0.0
        %939 = vmatpush2.msra.mxu0 0.0
        %940 = vmatprep.subr.mxu0 0.0
        %941 = vmatpush2.msra.mxu0 0.0
        %942 = vmatprep.mubr.f32.mxu0 0.0
        %943 = vmatmul.mubr.f32.gmra.mxu0 %v456
        %v944 = vpop.f32.mrf.mxu0
        %v945 = vadd.f32 %v875, %v944
        %v946 = vpop.f32.mrf.mxu0
        %947 = vdwg.mxu0
        %v948 = vmax.f32 %v945, 0.0
        %v949 = vld [vmem:[%s3] sm:$0xff]
        %v950 = vld [vmem:[%s3 + $0x8] sm:$0xff]
        %v951 = vld [vmem:[%s3 + $0x10] sm:$0xff]
        %v952 = vld [vmem:[%s3 + $0x18] sm:$0xff]
        %v953 = vld [vmem:[%s3 + $0x20] sm:$0xff]
        %v954 = vld [vmem:[%s3 + $0x28] sm:$0xff]
        %v955 = vld [vmem:[%s3 + $0x30] sm:$0xff]
        %v956 = vld [vmem:[%s3 + $0x38] sm:$0xff]
        %v957 = vld [vmem:[%s3 + $0x40] sm:$0xff]
        %v958 = vld [vmem:[%s3 + $0x48] sm:$0xff]
        %v959 = vld [vmem:[%s3 + $0x50] sm:$0xff]
        %v960 = vld [vmem:[%s3 + $0x58] sm:$0xff]
        %v961 = vld [vmem:[%s3 + $0x60] sm:$0xff]
        %v962 = vld [vmem:[%s3 + $0x68] sm:$0xff]
        %v963 = vld [vmem:[%s3 + $0x70] sm:$0xff]
        %v964 = vld [vmem:[%s3 + $0x78] sm:$0xff]
        %v965 = vld [vmem:[%s3 + $0x80] sm:$0xff]
        %v966 = vld [vmem:[%s3 + $0x88] sm:$0xff]
        %v967 = vld [vmem:[%s3 + $0x90] sm:$0xff]
        %v968 = vld [vmem:[%s3 + $0x98] sm:$0xff]
        %v969 = vld [vmem:[%s3 + $0xa0] sm:$0xff]
        %v970 = vld [vmem:[%s3 + $0xa8] sm:$0xff]
        %v971 = vld [vmem:[%s3 + $0xb0] sm:$0xff]
        %v972 = vld [vmem:[%s3 + $0xb8] sm:$0xff]
        %v973 = vld [vmem:[%s3 + $0xc0] sm:$0xff]
        %v974 = vld [vmem:[%s3 + $0xc8] sm:$0xff]
        %v975 = vld [vmem:[%s3 + $0xd0] sm:$0xff]
        %v976 = vld [vmem:[%s3 + $0xd8] sm:$0xff]
        %v977 = vld [vmem:[%s3 + $0xe0] sm:$0xff]
        %v978 = vld [vmem:[%s3 + $0xe8] sm:$0xff]
        %v979 = vld [vmem:[%s3 + $0xf0] sm:$0xff]
        %v980 = vld [vmem:[%s3 + $0xf8] sm:$0xff]
        %v981 = vld [vmem:[%s4] sm:$0x1]
        %v983 = vsel %vm455, %v948, 0
        %985 = vmatprep.subr.mxu0 0.0
        %986 = vmatpush1.msra.mxu0 0.0
        %987 = vmatprep.subr.mxu0 0.0
        %988 = vmatpush1.msra.mxu0 0.0
        %989 = vmatprep.subr.mxu0 0.0
        %990 = vmatpush1.msra.mxu0 0.0
        %991 = vmatprep.subr.mxu0 0.0
        %992 = vmatpush1.msra.mxu0 0.0
        %993 = vmatprep.subr.mxu0 0.0
        %994 = vmatpush1.msra.mxu0 0.0
        %995 = vmatprep.subr.mxu0 0.0
        %996 = vmatpush1.msra.mxu0 0.0
        %997 = vmatprep.subr.mxu0 0.0
        %998 = vmatpush1.msra.mxu0 0.0
        %999 = vmatprep.subr.mxu0 0.0
        %1000 = vmatpush1.msra.mxu0 0.0
        %1001 = vmatprep.subr.mxu0 0.0
        %1002 = vmatpush1.msra.mxu0 %v956
        %1003 = vmatprep.subr.mxu0 0.0
        %1004 = vmatpush1.msra.mxu0 %v955
        %1005 = vmatprep.subr.mxu0 0.0
        %1006 = vmatpush1.msra.mxu0 %v954
        %1007 = vmatprep.subr.mxu0 0.0
        %1008 = vmatpush1.msra.mxu0 %v953
        %1009 = vmatprep.subr.mxu0 0.0
        %1010 = vmatpush1.msra.mxu0 %v952
        %1011 = vmatprep.subr.mxu0 0.0
        %1012 = vmatpush1.msra.mxu0 %v951
        %1013 = vmatprep.subr.mxu0 0.0
        %1014 = vmatpush1.msra.mxu0 %v950
        %1015 = vmatprep.subr.mxu0 0.0
        %1016 = vmatpush1.msra.mxu0 %v949
        %1017 = vmatprep.subr.mxu0 0.0
        %1018 = vmatpush2.msra.mxu0 0.0
        %1019 = vmatprep.subr.mxu0 0.0
        %1020 = vmatpush2.msra.mxu0 0.0
        %1021 = vmatprep.subr.mxu0 0.0
        %1022 = vmatpush2.msra.mxu0 0.0
        %1023 = vmatprep.subr.mxu0 0.0
        %1024 = vmatpush2.msra.mxu0 0.0
        %1025 = vmatprep.subr.mxu0 0.0
        %1026 = vmatpush2.msra.mxu0 0.0
        %1027 = vmatprep.subr.mxu0 0.0
        %1028 = vmatpush2.msra.mxu0 0.0
        %1029 = vmatprep.subr.mxu0 0.0
        %1030 = vmatpush2.msra.mxu0 0.0
        %1031 = vmatprep.subr.mxu0 0.0
        %1032 = vmatpush2.msra.mxu0 0.0
        %1033 = vmatprep.subr.mxu0 0.0
        %1034 = vmatpush2.msra.mxu0 0.0
        %1035 = vmatprep.subr.mxu0 0.0
        %1036 = vmatpush2.msra.mxu0 0.0
        %1037 = vmatprep.subr.mxu0 0.0
        %1038 = vmatpush2.msra.mxu0 0.0
        %1039 = vmatprep.subr.mxu0 0.0
        %1040 = vmatpush2.msra.mxu0 0.0
        %1041 = vmatprep.subr.mxu0 0.0
        %1042 = vmatpush2.msra.mxu0 0.0
        %1043 = vmatprep.subr.mxu0 0.0
        %1044 = vmatpush2.msra.mxu0 0.0
        %1045 = vmatprep.subr.mxu0 0.0
        %1046 = vmatpush2.msra.mxu0 0.0
        %1047 = vmatprep.subr.mxu0 0.0
        %1048 = vmatpush2.msra.mxu0 0.0
        %1049 = vmatprep.mubr.f32.mxu0 0.0
        %1050 = vmatmul.mubr.f32.gmra.mxu0 %v983
        %v1051 = vpop.f32.mrf.mxu0
        %v1052 = vadd.f32 0.0, %v1051
        %v1053 = vpop.f32.mrf.mxu0
        %1054 = vdwg.mxu0
        %v1055 = vadd.f32 %v981, %v1052
        %v1056 = vrot.slane %v948, 1
        %v1057 = vsel %vm455, %v1056, 0
        %1059 = vmatprep.subr.mxu0 0.0
        %1060 = vmatpush1.msra.mxu0 0.0
        %1061 = vmatprep.subr.mxu0 0.0
        %1062 = vmatpush1.msra.mxu0 0.0
        %1063 = vmatprep.subr.mxu0 0.0
        %1064 = vmatpush1.msra.mxu0 0.0
        %1065 = vmatprep.subr.mxu0 0.0
        %1066 = vmatpush1.msra.mxu0 0.0
        %1067 = vmatprep.subr.mxu0 0.0
        %1068 = vmatpush1.msra.mxu0 0.0
        %1069 = vmatprep.subr.mxu0 0.0
        %1070 = vmatpush1.msra.mxu0 0.0
        %1071 = vmatprep.subr.mxu0 0.0
        %1072 = vmatpush1.msra.mxu0 0.0
        %1073 = vmatprep.subr.mxu0 0.0
        %1074 = vmatpush1.msra.mxu0 0.0
        %1075 = vmatprep.subr.mxu0 0.0
        %1076 = vmatpush1.msra.mxu0 %v964
        %1077 = vmatprep.subr.mxu0 0.0
        %1078 = vmatpush1.msra.mxu0 %v963
        %1079 = vmatprep.subr.mxu0 0.0
        %1080 = vmatpush1.msra.mxu0 %v962
        %1081 = vmatprep.subr.mxu0 0.0
        %1082 = vmatpush1.msra.mxu0 %v961
        %1083 = vmatprep.subr.mxu0 0.0
        %1084 = vmatpush1.msra.mxu0 %v960
        %1085 = vmatprep.subr.mxu0 0.0
        %1086 = vmatpush1.msra.mxu0 %v959
        %1087 = vmatprep.subr.mxu0 0.0
        %1088 = vmatpush1.msra.mxu0 %v958
        %1089 = vmatprep.subr.mxu0 0.0
        %1090 = vmatpush1.msra.mxu0 %v957
        %1091 = vmatprep.subr.mxu0 0.0
        %1092 = vmatpush2.msra.mxu0 0.0
        %1093 = vmatprep.subr.mxu0 0.0
        %1094 = vmatpush2.msra.mxu0 0.0
        %1095 = vmatprep.subr.mxu0 0.0
        %1096 = vmatpush2.msra.mxu0 0.0
        %1097 = vmatprep.subr.mxu0 0.0
        %1098 = vmatpush2.msra.mxu0 0.0
        %1099 = vmatprep.subr.mxu0 0.0
        %1100 = vmatpush2.msra.mxu0 0.0
        %1101 = vmatprep.subr.mxu0 0.0
        %1102 = vmatpush2.msra.mxu0 0.0
        %1103 = vmatprep.subr.mxu0 0.0
        %1104 = vmatpush2.msra.mxu0 0.0
        %1105 = vmatprep.subr.mxu0 0.0
        %1106 = vmatpush2.msra.mxu0 0.0
        %1107 = vmatprep.subr.mxu0 0.0
        %1108 = vmatpush2.msra.mxu0 0.0
        %1109 = vmatprep.subr.mxu0 0.0
        %1110 = vmatpush2.msra.mxu0 0.0
        %1111 = vmatprep.subr.mxu0 0.0
        %1112 = vmatpush2.msra.mxu0 0.0
        %1113 = vmatprep.subr.mxu0 0.0
        %1114 = vmatpush2.msra.mxu0 0.0
        %1115 = vmatprep.subr.mxu0 0.0
        %1116 = vmatpush2.msra.mxu0 0.0
        %1117 = vmatprep.subr.mxu0 0.0
        %1118 = vmatpush2.msra.mxu0 0.0
        %1119 = vmatprep.subr.mxu0 0.0
        %1120 = vmatpush2.msra.mxu0 0.0
        %1121 = vmatprep.subr.mxu0 0.0
        %1122 = vmatpush2.msra.mxu0 0.0
        %1123 = vmatprep.mubr.f32.mxu0 0.0
        %1124 = vmatmul.mubr.f32.gmra.mxu0 %v1057
        %v1125 = vpop.f32.mrf.mxu0
        %v1126 = vadd.f32 0.0, %v1125
        %v1127 = vpop.f32.mrf.mxu0
        %1128 = vdwg.mxu0
        %v1129 = vadd.f32 %v1055, %v1126
        %v1130 = vrot.slane %v948, 2
        %v1131 = vsel %vm455, %v1130, 0
        %1133 = vmatprep.subr.mxu0 0.0
        %1134 = vmatpush1.msra.mxu0 0.0
        %1135 = vmatprep.subr.mxu0 0.0
        %1136 = vmatpush1.msra.mxu0 0.0
        %1137 = vmatprep.subr.mxu0 0.0
        %1138 = vmatpush1.msra.mxu0 0.0
        %1139 = vmatprep.subr.mxu0 0.0
        %1140 = vmatpush1.msra.mxu0 0.0
        %1141 = vmatprep.subr.mxu0 0.0
        %1142 = vmatpush1.msra.mxu0 0.0
        %1143 = vmatprep.subr.mxu0 0.0
        %1144 = vmatpush1.msra.mxu0 0.0
        %1145 = vmatprep.subr.mxu0 0.0
        %1146 = vmatpush1.msra.mxu0 0.0
        %1147 = vmatprep.subr.mxu0 0.0
        %1148 = vmatpush1.msra.mxu0 0.0
        %1149 = vmatprep.subr.mxu0 0.0
        %1150 = vmatpush1.msra.mxu0 %v972
        %1151 = vmatprep.subr.mxu0 0.0
        %1152 = vmatpush1.msra.mxu0 %v971
        %1153 = vmatprep.subr.mxu0 0.0
        %1154 = vmatpush1.msra.mxu0 %v970
        %1155 = vmatprep.subr.mxu0 0.0
        %1156 = vmatpush1.msra.mxu0 %v969
        %1157 = vmatprep.subr.mxu0 0.0
        %1158 = vmatpush1.msra.mxu0 %v968
        %1159 = vmatprep.subr.mxu0 0.0
        %1160 = vmatpush1.msra.mxu0 %v967
        %1161 = vmatprep.subr.mxu0 0.0
        %1162 = vmatpush1.msra.mxu0 %v966
        %1163 = vmatprep.subr.mxu0 0.0
        %1164 = vmatpush1.msra.mxu0 %v965
        %1165 = vmatprep.subr.mxu0 0.0
        %1166 = vmatpush2.msra.mxu0 0.0
        %1167 = vmatprep.subr.mxu0 0.0
        %1168 = vmatpush2.msra.mxu0 0.0
        %1169 = vmatprep.subr.mxu0 0.0
        %1170 = vmatpush2.msra.mxu0 0.0
        %1171 = vmatprep.subr.mxu0 0.0
        %1172 = vmatpush2.msra.mxu0 0.0
        %1173 = vmatprep.subr.mxu0 0.0
        %1174 = vmatpush2.msra.mxu0 0.0
        %1175 = vmatprep.subr.mxu0 0.0
        %1176 = vmatpush2.msra.mxu0 0.0
        %1177 = vmatprep.subr.mxu0 0.0
        %1178 = vmatpush2.msra.mxu0 0.0
        %1179 = vmatprep.subr.mxu0 0.0
        %1180 = vmatpush2.msra.mxu0 0.0
        %1181 = vmatprep.subr.mxu0 0.0
        %1182 = vmatpush2.msra.mxu0 0.0
        %1183 = vmatprep.subr.mxu0 0.0
        %1184 = vmatpush2.msra.mxu0 0.0
        %1185 = vmatprep.subr.mxu0 0.0
        %1186 = vmatpush2.msra.mxu0 0.0
        %1187 = vmatprep.subr.mxu0 0.0
        %1188 = vmatpush2.msra.mxu0 0.0
        %1189 = vmatprep.subr.mxu0 0.0
        %1190 = vmatpush2.msra.mxu0 0.0
        %1191 = vmatprep.subr.mxu0 0.0
        %1192 = vmatpush2.msra.mxu0 0.0
        %1193 = vmatprep.subr.mxu0 0.0
        %1194 = vmatpush2.msra.mxu0 0.0
        %1195 = vmatprep.subr.mxu0 0.0
        %1196 = vmatpush2.msra.mxu0 0.0
        %1197 = vmatprep.mubr.f32.mxu0 0.0
        %1198 = vmatmul.mubr.f32.gmra.mxu0 %v1131
        %v1199 = vpop.f32.mrf.mxu0
        %v1200 = vadd.f32 0.0, %v1199
        %v1201 = vpop.f32.mrf.mxu0
        %1202 = vdwg.mxu0
        %v1203 = vadd.f32 %v1129, %v1200
        %v1204 = vrot.slane %v948, 3
        %v1205 = vsel %vm455, %v1204, 0
        %1207 = vmatprep.subr.mxu0 0.0
        %1208 = vmatpush1.msra.mxu0 0.0
        %1209 = vmatprep.subr.mxu0 0.0
        %1210 = vmatpush1.msra.mxu0 0.0
        %1211 = vmatprep.subr.mxu0 0.0
        %1212 = vmatpush1.msra.mxu0 0.0
        %1213 = vmatprep.subr.mxu0 0.0
        %1214 = vmatpush1.msra.mxu0 0.0
        %1215 = vmatprep.subr.mxu0 0.0
        %1216 = vmatpush1.msra.mxu0 0.0
        %1217 = vmatprep.subr.mxu0 0.0
        %1218 = vmatpush1.msra.mxu0 0.0
        %1219 = vmatprep.subr.mxu0 0.0
        %1220 = vmatpush1.msra.mxu0 0.0
        %1221 = vmatprep.subr.mxu0 0.0
        %1222 = vmatpush1.msra.mxu0 0.0
        %1223 = vmatprep.subr.mxu0 0.0
        %1224 = vmatpush1.msra.mxu0 %v980
        %1225 = vmatprep.subr.mxu0 0.0
        %1226 = vmatpush1.msra.mxu0 %v979
        %1227 = vmatprep.subr.mxu0 0.0
        %1228 = vmatpush1.msra.mxu0 %v978
        %1229 = vmatprep.subr.mxu0 0.0
        %1230 = vmatpush1.msra.mxu0 %v977
        %1231 = vmatprep.subr.mxu0 0.0
        %1232 = vmatpush1.msra.mxu0 %v976
        %1233 = vmatprep.subr.mxu0 0.0
        %1234 = vmatpush1.msra.mxu0 %v975
        %1235 = vmatprep.subr.mxu0 0.0
        %1236 = vmatpush1.msra.mxu0 %v974
        %1237 = vmatprep.subr.mxu0 0.0
        %1238 = vmatpush1.msra.mxu0 %v973
        %1239 = vmatprep.subr.mxu0 0.0
        %1240 = vmatpush2.msra.mxu0 0.0
        %1241 = vmatprep.subr.mxu0 0.0
        %1242 = vmatpush2.msra.mxu0 0.0
        %1243 = vmatprep.subr.mxu0 0.0
        %1244 = vmatpush2.msra.mxu0 0.0
        %1245 = vmatprep.subr.mxu0 0.0
        %1246 = vmatpush2.msra.mxu0 0.0
        %1247 = vmatprep.subr.mxu0 0.0
        %1248 = vmatpush2.msra.mxu0 0.0
        %1249 = vmatprep.subr.mxu0 0.0
        %1250 = vmatpush2.msra.mxu0 0.0
        %1251 = vmatprep.subr.mxu0 0.0
        %1252 = vmatpush2.msra.mxu0 0.0
        %1253 = vmatprep.subr.mxu0 0.0
        %1254 = vmatpush2.msra.mxu0 0.0
        %1255 = vmatprep.subr.mxu0 0.0
        %1256 = vmatpush2.msra.mxu0 0.0
        %1257 = vmatprep.subr.mxu0 0.0
        %1258 = vmatpush2.msra.mxu0 0.0
        %1259 = vmatprep.subr.mxu0 0.0
        %1260 = vmatpush2.msra.mxu0 0.0
        %1261 = vmatprep.subr.mxu0 0.0
        %1262 = vmatpush2.msra.mxu0 0.0
        %1263 = vmatprep.subr.mxu0 0.0
        %1264 = vmatpush2.msra.mxu0 0.0
        %1265 = vmatprep.subr.mxu0 0.0
        %1266 = vmatpush2.msra.mxu0 0.0
        %1267 = vmatprep.subr.mxu0 0.0
        %1268 = vmatpush2.msra.mxu0 0.0
        %1269 = vmatprep.subr.mxu0 0.0
        %1270 = vmatpush2.msra.mxu0 0.0
        %1271 = vmatprep.mubr.f32.mxu0 0.0
        %1272 = vmatmul.mubr.f32.gmra.mxu0 %v1205
        %v1273 = vpop.f32.mrf.mxu0
        %v1274 = vadd.f32 0.0, %v1273
        %v1275 = vpop.f32.mrf.mxu0
        %1276 = vdwg.mxu0
        %v1277 = vadd.f32 %v1203, %v1274
        %vm1278 = vcmask 24576
        %1279 = vst.msk [vmem:[%s216] sm:$0x1] %vm1278, %v1277
        %s1280 = sand.u32 %s137, 1
        %s1281 = scalar_lea.sflag [#allocation3], %s1280
        %s1282 = sand.u32 %s137, 1
        %s1283 = scalar_lea.vmem [#allocation2], %s1282
        // Predicated region
        $region41: #{dqn_forward.5} parent=39 // pred_check
          %p1284 = pneg %p147
        $region42: #{dqn_forward.5} parent=39 // pred_check_branch
          %1286 = sbr.rel (%p1284) target = $region44
        $region43: #{dqn_forward.5} parent=39 // pred_region
          %s1288 = ssub.s32 16, 16
          %1289 = vsyncadd %s1281, %s1288
          %s1290 = smul.addr %s19, 16
          %s1291 = scalar_lea.hbm %s5, %s1290
          %s1293 = sshll.u32 %s1283, 4
          %s1294 = int_to_ptr.vmem [resolvable:$true] %s1293
          %1296 = dma.vmem_to_hbm [thread:$0]  %s1294, 16, %s1291, %s1281
        $region44: #{dqn_forward.5} parent=39 // pred_fallthru
          _
      $region40: #{dqn_forward.5} parent=5 // pred_fallthru
        _
      %p1297 = scmp.le.s32.totalorder 2, %s14
      // Predicated region
      $region45: #{dqn_forward.5} parent=5 // pred_check
        %p1298 = pneg %p1297
      $region46: #{dqn_forward.5} parent=5 // pred_check_branch
        %1300 = sbr.rel (%p1298) target = $region48
      $region47: #{dqn_forward.5} parent=5 // pred_region
        %s1301 = ssub.s32 %s14, 2
        // Predicated region
        $region49: #{dqn_forward.5} parent=47 // pred_check
          %p1302 = pneg %p153
        $region50: #{dqn_forward.5} parent=47 // pred_check_branch
          %1304 = sbr.rel (%p1302) target = $region52
        $region51: #{dqn_forward.5} parent=47 // pred_region
          %s1305 = sand.u32 %s138, 1
          %s1306 = scalar_lea.sflag [#allocation3], %s1305
          %s1307 = sand.u32 %s138, 1
          %s1308 = scalar_lea.vmem [#allocation2], %s1307
          %1309 = dma.done %s1306, 16
        $region52: #{dqn_forward.5} parent=47 // pred_fallthru
          _
      $region48: #{dqn_forward.5} parent=5 // pred_fallthru
        _
    $region6: #{dqn_forward.5} parent=1 // loop_footer
      %s18 = sadd.s32 1, %s14
    $region7: #{dqn_forward.5} parent=1 // loop_footer_branch
      %13 = sbr.rel target = $region3
    $region8: #{dqn_forward.5} parent=1 // loop_exit
      _
    %1310 = vsyncpa [#allocation3], 1
    %s1311 = scalar_lea.sflag [#allocation3], 1
    %1312 = vsyncpa %s1311, 1

</llo_original>
